<compile_context>
chip_gen: v5e
topology: v5e:2x2
jax: 0.10.0
libtpu: 0.0.40
codegen_flags: <defaults>
</compile_context>

<pallas_src>
import math
import functools

import jax
import jax.numpy as jnp
from jax.experimental import pallas as pl
from jax.experimental.pallas import tpu as pltpu


# ---------------------------------------------------------------------------
# Pallas conv3x3 kernel (bf16 MXU, fused bias + ReLU, in-kernel halo pad)
# ---------------------------------------------------------------------------
def _conv3x3_kernel(x_ref, w_ref, b_ref, o_ref, xpad_ref,
                    *, H, W, Cin, Cout_t, th, relu):
    # Build the zero halo in VMEM (single full aligned scratch store) — the
    # wrapper no longer does an HBM-level jnp.pad per conv.
    x = x_ref[0]                                           # (H, W, Cin) bf16
    zrow = jnp.zeros((1, W, Cin), x.dtype)
    zcol = jnp.zeros((H + 2, 1, Cin), x.dtype)
    xpad_ref[...] = jnp.concatenate(
        [zcol, jnp.concatenate([zrow, x, zrow], axis=0), zcol], axis=1)

    def tile(t):
        r0 = t * th
        rows = xpad_ref[pl.ds(r0, th + 2), :, :]           # (th+2, W+2, Cin)
        # One im2col slab per row tile -> a single MXU matmul with K = 9*Cin.
        taps = [rows[ky:ky + th, kx:kx + W, :]
                for ky in range(3) for kx in range(3)]
        patch = jnp.concatenate(taps, axis=-1).reshape(th * W, 9 * Cin)
        acc = jnp.dot(patch, w_ref[...],
                      preferred_element_type=jnp.float32)  # fp32 accumulate
        acc = acc + b_ref[...]
        if relu:
            acc = jnp.maximum(acc, 0.0)
        o_ref[:, pl.ds(r0, th), :, :] = (
            acc.reshape(1, th, W, Cout_t).astype(o_ref.dtype))

    nt = H // th
    if nt <= 8:
        for t in range(nt):                                # static unroll
            tile(t)
    else:
        def body(t, carry):
            tile(t)
            return carry
        jax.lax.fori_loop(0, nt, body, 0)


def conv3x3(x, prep):
    """3x3 conv, stride 1, pad 1, fused bias (+ optional ReLU).

    x: (N, H, W, Cin) float tensor (cast to bf16 if needed, usually a no-op).
    prep: dict built by prep_conv() -- bf16 (9*Cin, CoutP) weight, fp32 bias,
          true cout and relu flag.  Returns (N, H, W, cout_true) bf16.
    """
    N, H, W, Cin = x.shape
    w2d, b = prep['w'], prep['b']
    relu, cout_true = prep['relu'], prep['cout']
    K, Cout_p = w2d.shape
    assert K == 9 * Cin, (K, Cin)
    x = x.astype(jnp.bfloat16)                     # no-op when already bf16

    # Row tile keeps the per-tile fp32 accumulator small.
    th = next(t for t in (8, 4, 2, 1) if H % t == 0)
    # Cout tiling: 256-wide tiles for 512-channel layers -> smaller resident
    # weight (fits v7x 64 MiB VMEM comfortably) + second parallel grid axis.
    ct = 256 if (Cout_p > 256 and Cout_p % 256 == 0) else Cout_p
    nct = Cout_p // ct

    kernel = functools.partial(_conv3x3_kernel, H=H, W=W, Cin=Cin,
                               Cout_t=ct, th=th, relu=relu)
    out = pl.pallas_call(
        kernel,
        out_shape=jax.ShapeDtypeStruct((N, H, W, Cout_p), jnp.bfloat16),
        grid=(N, nct),
        in_specs=[
            pl.BlockSpec((1, H, W, Cin), lambda n, c: (n, 0, 0, 0)),
            pl.BlockSpec((K, ct), lambda n, c: (0, c)),
            pl.BlockSpec((1, ct), lambda n, c: (0, c)),
        ],
        out_specs=pl.BlockSpec((1, H, W, ct), lambda n, c: (n, 0, 0, c)),
        scratch_shapes=[pltpu.VMEM((H + 2, W + 2, Cin), jnp.bfloat16)],
        compiler_params=pltpu.CompilerParams(
            dimension_semantics=("parallel", "parallel"),
            vmem_limit_bytes=48 * 1024 * 1024),
    )(x, w2d, b)

    if Cout_p != cout_true:        # lane-padded "head" conv -> slice back
        out = out[..., :cout_true]
    return out


# ---------------------------------------------------------------------------
# Plain-JAX glue ops (memory-bound; XLA fuses them)
# ---------------------------------------------------------------------------
def batchnorm_train(x, eps=1e-5):
    # BatchNorm2d at init: weight=1, bias=0; training mode uses batch stats.
    xf = x.astype(jnp.float32)
    mean = jnp.mean(xf, axis=(0, 1, 2), keepdims=True)
    var = jnp.mean(jnp.square(xf - mean), axis=(0, 1, 2), keepdims=True)
    return ((xf - mean) * jax.lax.rsqrt(var + eps)).astype(x.dtype)


def maxpool2(x):
    N, H, W, C = x.shape
    return x.reshape(N, H // 2, 2, W // 2, 2, C).max(axis=(2, 4))


def upsample_bilinear(x, s):
    # matches nn.Upsample(mode='bilinear', align_corners=False)
    N, H, W, C = x.shape
    return jax.image.resize(x, (N, H * s, W * s, C), method='bilinear')


# ---------------------------------------------------------------------------
# Parameter construction (mirrors __init__ / _initialize_weights)
# ---------------------------------------------------------------------------
def kaiming_conv(key, cin, cout):
    fan_in = cin * 9
    bound = math.sqrt(6.0 / fan_in)   # kaiming_uniform(a=0, mode='fan_in')
    w = jax.random.uniform(key, (3, 3, cin, cout), jnp.float32, -bound, bound)
    b = jnp.zeros((cout,), jnp.float32)
    return w, b


def prep_conv(w, b, relu, pad_to=None):
    """Reshape to (9*Cin, Cout), optionally lane-pad Cout, cast to bf16 once."""
    kh, kw, cin, cout = w.shape
    w2d = jnp.reshape(w, (kh * kw * cin, cout))
    bb = b
    if pad_to is not None and cout < pad_to:
        w2d = jnp.pad(w2d, ((0, 0), (0, pad_to - cout)))
        bb = jnp.pad(bb, (0, pad_to - cout))
    return {'w': w2d.astype(jnp.bfloat16),
            'b': bb.reshape(1, -1).astype(jnp.float32),
            'cout': cout, 'relu': relu}


def conv_relu_layer(nk, cin, cout):
    w, b = kaiming_conv(nk(), cin, cout)
    return [('conv', prep_conv(w, b, relu=True))]


def conv_relu_maxpool_l(nk, cin, cout):
    return conv_relu_layer(nk, cin, cout) + [('bn',), ('maxpool',)]


def conv_relu_unpool_l(nk, cin, cout):
    return conv_relu_layer(nk, cin, cout) + [('bn',), ('upsample',)]


def fused_branch_pair(nk, cin, cout):
    """Two conv_relu_conv branches on the same input fused into one path via
    block-diagonal weights (one Pallas conv serves both branches; the tiny
    final Cout is lane-padded to 128)."""
    w1a, b1a = kaiming_conv(nk(), cin, cin)
    w2a, b2a = kaiming_conv(nk(), cin, cout)
    w1b, b1b = kaiming_conv(nk(), cin, cin)
    w2b, b2b = kaiming_conv(nk(), cin, cout)
    W1 = jnp.concatenate([w1a, w1b], axis=3)                  # (3,3,cin,2cin)
    B1 = jnp.concatenate([b1a, b1b])
    W2 = jnp.zeros((3, 3, 2 * cin, 2 * cout), jnp.float32)    # block-diagonal
    W2 = W2.at[:, :, :cin, :cout].set(w2a)
    W2 = W2.at[:, :, cin:, cout:].set(w2b)
    B2 = jnp.concatenate([b2a, b2b])
    return [('conv', prep_conv(W1, B1, relu=True)),
            ('conv', prep_conv(W2, B2, relu=False, pad_to=128))]


def get_mononet5(nk, channel_in, channel_out):
    m = []
    m += conv_relu_layer(nk, channel_in * 2, 32)
    m += conv_relu_layer(nk, 32, 32)
    m += conv_relu_maxpool_l(nk, 32, 32)
    m += conv_relu_layer(nk, 32, 64)
    m += conv_relu_maxpool_l(nk, 64, 64)
    m += conv_relu_layer(nk, 64, 128)
    m += conv_relu_maxpool_l(nk, 128, 128)
    m += conv_relu_layer(nk, 128, 256)
    m += conv_relu_maxpool_l(nk, 256, 256)
    m += conv_relu_layer(nk, 256, 512)
    m += conv_relu_maxpool_l(nk, 512, 512)
    m += conv_relu_layer(nk, 512, 512)
    m += conv_relu_layer(nk, 512, 512)
    m += conv_relu_unpool_l(nk, 512, 512)
    m += conv_relu_layer(nk, 512, 256)
    m += conv_relu_unpool_l(nk, 256, 256)
    m += conv_relu_layer(nk, 256, 128)
    m += conv_relu_unpool_l(nk, 128, 128)
    m += conv_relu_layer(nk, 128, 64)
    m += conv_relu_unpool_l(nk, 64, 64)
    m += conv_relu_layer(nk, 64, 32)
    m += conv_relu_unpool_l(nk, 32, 32)
    m += conv_relu_layer(nk, 32, 16)
    branch = fused_branch_pair(nk, 16, channel_out)   # branch1+branch2 fused
    return m, branch


def get_rectifynet2(nk, channel_in, channel_out):
    m = []
    m += conv_relu_layer(nk, channel_in, 64)
    for _ in range(6):
        m += conv_relu_layer(nk, 64, 64)
    w, b = kaiming_conv(nk(), 64, channel_out)
    m += [('conv', prep_conv(w, b, relu=False, pad_to=128))]
    return m


def make_flownet_params(nk):
    # TODO(synk): FlowNetS requires a pretrained checkpoint ('flownets_pytorch.pth');
    # replaced with a deterministic tiny conv stack producing 2-channel flow at 1/4 res.
    w1, b1 = kaiming_conv(nk(), 6, 16)
    w2, b2 = kaiming_conv(nk(), 16, 2)
    return {'conv1': prep_conv(w1 * 0.1, b1, relu=True),
            'conv2': prep_conv(w2 * 0.05, b2, relu=False, pad_to=128)}


# ---------------------------------------------------------------------------
# Forward helpers (mirror forward_singlePath / forward_flownets / static fns)
# ---------------------------------------------------------------------------
def forward_single_path(layers, x):
    stack = []
    temp = x
    for layer in layers:
        kind = layer[0]
        if kind == 'conv':
            temp = conv3x3(temp, layer[1])
        elif kind == 'bn':
            temp = batchnorm_train(temp)
        elif kind == 'maxpool':
            stack.append(temp)            # push pre-pool activation
            temp = maxpool2(temp)
        elif kind == 'upsample':
            temp = upsample_bilinear(temp, 2)
            temp = temp + stack.pop()     # skip connection (name != 'offset')
    return temp


def forward_flownets(params, x, div_flow=20.0):
    t = conv3x3(x, params['conv1'])
    N, H, W, C = t.shape
    t = t.reshape(N, H // 4, 4, W // 4, 4, C).mean(axis=(2, 4))  # -> 1/4 res
    t = conv3x3(t, params['conv2'])                              # 2-ch flow
    t = (div_flow / 2.0) * t.astype(jnp.float32)
    return upsample_bilinear(t, 4)


def flow_project(flow):
    # TODO(synk): FlowProjectionModule does forward splatting + hole filling
    # (custom CUDA op); use the linear-motion approximation F_{t->0} = -0.5 * F_{0->2}.
    return -0.5 * flow


@functools.partial(jax.jit, static_argnames=("filter_size",))
def filter_interpolate(ref, offset, filt, filter_size=4):
    """Adaptive warping: bilinear-blended filter_size x filter_size sampling.

    Shares the gather grid between adjacent taps: (fs+1)^2 = 25 gathers instead
    of 4*fs^2 = 64.  Data-dependent gather kept in plain JAX.
    TODO(synk): the original CUDA kernel's out-of-range-flow gating is
    approximated with index clamping; a VMEM-resident Pallas windowed sampler
    would remove the remaining HBM re-reads."""
    N, H, W, C = ref.shape
    ref = ref.astype(jnp.float32)
    filt = filt.astype(jnp.float32)
    offset = offset.astype(jnp.float32)
    yy, xx = jnp.meshgrid(jnp.arange(H, dtype=jnp.float32),
                          jnp.arange(W, dtype=jnp.float32), indexing='ij')
    fx = offset[..., 0]
    fy = offset[..., 1]
    x2 = xx[None] + fx
    y2 = yy[None] + fy
    ix = jnp.floor(x2).astype(jnp.int32)
    iy = jnp.floor(y2).astype(jnp.int32)
    alpha = (x2 - ix.astype(jnp.float32))[..., None]
    beta = (y2 - iy.astype(jnp.float32))[..., None]
    ix_L = ix + 1 - filter_size // 2
    iy_T = iy + 1 - filter_size // 2
    ref_flat = ref.reshape(N, H * W, C)

    def gather(yi, xi):
        yi = jnp.clip(yi, 0, H - 1)
        xi = jnp.clip(xi, 0, W - 1)
        idx = (yi * W + xi).reshape(N, H * W, 1)
        idx = jnp.broadcast_to(idx, (N, H * W, C))
        return jnp.take_along_axis(ref_flat, idx, axis=1).reshape(N, H, W, C)

    # Shared sample grid: G[j][i] = ref[iy_T + j, ix_L + i]
    G = [[gather(iy_T + j, ix_L + i) for i in range(filter_size + 1)]
         for j in range(filter_size + 1)]

    out = jnp.zeros_like(ref)
    for j in range(filter_size):
        for i in range(filter_size):
            wij = filt[..., j * filter_size + i][..., None]
            samp = ((1 - alpha) * (1 - beta) * G[j][i]
                    + alpha * (1 - beta) * G[j][i + 1]
                    + (1 - alpha) * beta * G[j + 1][i]
                    + alpha * beta * G[j + 1][i + 1])
            out = out + wij * samp
    return out


# ---------------------------------------------------------------------------
# MEMC_Net forward (training=True path)
# ---------------------------------------------------------------------------
def memc_net_forward(params, inp_nchw):
    """inp_nchw: (3, B, 3, H, W)  ->  (losses, offsets, filters, occlusions)."""
    assert inp_nchw.shape[0] == 3
    to_nhwc = lambda x: jnp.transpose(x, (0, 2, 3, 1))
    to_nchw = lambda x: jnp.transpose(x.astype(jnp.float32), (0, 3, 1, 2))
    bf = lambda x: x.astype(jnp.bfloat16)
    i0, i1, i2 = (to_nhwc(inp_nchw[k]) for k in range(3))
    B = i0.shape[0]

    # Cast the network inputs to bf16 once (kernels & weights are bf16).
    cur_offset_input = jnp.concatenate([bf(i0), bf(i2)], axis=-1)   # 6 channels
    cur_filter_input = cur_offset_input
    cur_occ_input = cur_offset_input

    # Both flow directions share weights -> batch-stack into one pass.
    flow_in = jnp.concatenate(
        [cur_offset_input,
         jnp.concatenate([cur_offset_input[..., 3:], cur_offset_input[..., :3]],
                         axis=-1)], axis=0)
    flows = forward_flownets(params['flownet'], flow_in)
    cur_offset_output = [flow_project(flows[:B]), flow_project(flows[B:])]

    temp = forward_single_path(params['filter_main'], cur_filter_input)
    filt_fused = forward_single_path(params['filter_branch'], temp)  # 32 ch
    cur_filter_output = [filt_fused[..., :16], filt_fused[..., 16:]]

    temp = forward_single_path(params['occ_main'], cur_occ_input)
    occ_fused = forward_single_path(params['occ_branch'], temp)      # 2 ch
    cur_occ_output = [0.5 + occ_fused[..., 0:1], 0.5 + occ_fused[..., 1:2]]

    ref0_w = filter_interpolate(i0, cur_offset_output[0], cur_filter_output[0])
    ref2_w = filter_interpolate(i2, cur_offset_output[1], cur_filter_output[1])
    # Occlusion-weighted blend: plain JAX elementwise (XLA fuses it).
    cur_output = (cur_occ_output[0].astype(jnp.float32) * ref0_w
                  + cur_occ_output[1].astype(jnp.float32) * ref2_w)

    rectify_input = jnp.concatenate(
        [bf(cur_output), bf(cur_offset_output[0]), bf(cur_offset_output[1]),
         cur_filter_output[0], cur_filter_output[1],
         bf(cur_occ_output[0]), bf(cur_occ_output[1])], axis=-1)    # 41 ch
    cur_output_rectified = cur_output + forward_single_path(
        params['rectify'], rectify_input).astype(jnp.float32)

    losses = [to_nchw(cur_output - i1), to_nchw(cur_output_rectified - i1)]
    offsets = [[to_nchw(o) for o in cur_offset_output]]
    filters = [[to_nchw(f) for f in cur_filter_output]]
    occlusions = [[to_nchw(o) for o in cur_occ_output]]
    return losses, offsets, filters, occlusions


# ---------------------------------------------------------------------------
if __name__ == "__main__":
    master = jax.random.PRNGKey(0)
    pkey, dkey = jax.random.split(master)
    key_iter = iter(jax.random.split(pkey, 256))
    nk = lambda: next(key_iter)

    filter_size = 4
    params = {}
    params['filter_main'], params['filter_branch'] = get_mononet5(
        nk, 3, filter_size * filter_size)
    params['occ_main'], params['occ_branch'] = get_mononet5(nk, 3, 1)
    params['rectify'] = get_rectifynet2(nk, 3 + 4 + 32 + 2, 3)
    params['flownet'] = make_flownet_params(nk)

    # input: (3 frames, batch=2, 3 channels, 32x32) — 32 is the minimum spatial
    # size (5 max-pool levels) consistent with the module.
    B, H, W = 2, 32, 32
    inp = jax.random.uniform(dkey, (3, B, 3, H, W), jnp.float32)

    out = memc_net_forward(params, inp)
    jax.block_until_ready(out)
    print("KERNEL_OK")
</pallas_src>

<mosaic_0001>
module attributes {stable_mosaic.version = 11 : i64} {
  func.func @_conv3x3_kernel(%arg0: i32, %arg1: i32, %arg2: memref<1x32x32x6xbf16, #tpu.memory_space<vmem>>, %arg3: memref<54x16xbf16, #tpu.memory_space<vmem>>, %arg4: memref<1x16xf32, #tpu.memory_space<vmem>>, %arg5: memref<1x32x32x16xbf16, #tpu.memory_space<vmem>>, %arg6: memref<34x34x6xbf16, #tpu.memory_space<vmem>>) attributes {dimension_semantics = [#tpu.dimension_semantics<parallel>, #tpu.dimension_semantics<parallel>], iteration_bounds = array<i64: 4, 1>, scalar_prefetch = 0 : i64, scratch_operands = 1 : i64, tpu.core_type = #tpu.core_type<tc>, window_params = [{transform_indices = @transform_0, window_bounds = array<i64: 1, 32, 32, 6>}, {transform_indices = @transform_1, window_bounds = array<i64: 54, 16>}, {transform_indices = @transform_2, window_bounds = array<i64: 1, 16>}, {transform_indices = @transform_3, window_bounds = array<i64: 1, 32, 32, 16>}]} {
    %c0 = arith.constant 0 : index
    %c0_0 = arith.constant 0 : index
    %c0_1 = arith.constant 0 : index
    %c0_2 = arith.constant 0 : index
    %0 = vector.load %arg2[%c0, %c0_0, %c0_1, %c0_2] : memref<1x32x32x6xbf16, #tpu.memory_space<vmem>>, vector<1x32x32x6xbf16>
    %1 = vector.shape_cast %0 : vector<1x32x32x6xbf16> to vector<32x32x6xbf16>
    %cst = arith.constant 0.000000e+00 : bf16
    %2 = vector.broadcast %cst : bf16 to vector<1x32x6xbf16>
    %cst_3 = arith.constant 0.000000e+00 : bf16
    %3 = vector.broadcast %cst_3 : bf16 to vector<34x1x6xbf16>
    %4 = tpu.concatenate %2, %1, %2 in 0 : vector<1x32x6xbf16>, vector<32x32x6xbf16>, vector<1x32x6xbf16> -> vector<34x32x6xbf16>
    %5 = tpu.concatenate %3, %4, %3 in 1 : vector<34x1x6xbf16>, vector<34x32x6xbf16>, vector<34x1x6xbf16> -> vector<34x34x6xbf16>
    %c0_4 = arith.constant 0 : index
    %c0_5 = arith.constant 0 : index
    %c0_6 = arith.constant 0 : index
    %6 = vector.load %arg6[%c0_4, %c0_5, %c0_6] : memref<34x34x6xbf16, #tpu.memory_space<vmem>>, vector<34x34x6xbf16>
    tpu.vector_store %arg6[%c0_4, %c0_5, %c0_6], %5 {strides = array<i32>} : memref<34x34x6xbf16, #tpu.memory_space<vmem>>, vector<34x34x6xbf16>,
    %c0_7 = arith.constant 0 : index
    %c0_8 = arith.constant 0 : index
    %c0_9 = arith.constant 0 : index
    %7 = vector.load %arg6[%c0_7, %c0_8, %c0_9] : memref<34x34x6xbf16, #tpu.memory_space<vmem>>, vector<10x34x6xbf16>
    %8 = vector.extract_strided_slice %7 {offsets = [0, 0, 0], sizes = [8, 32, 6], strides = [1, 1, 1]} : vector<10x34x6xbf16> to vector<8x32x6xbf16>
    %9 = vector.extract_strided_slice %7 {offsets = [0, 1, 0], sizes = [8, 32, 6], strides = [1, 1, 1]} : vector<10x34x6xbf16> to vector<8x32x6xbf16>
    %10 = vector.extract_strided_slice %7 {offsets = [0, 2, 0], sizes = [8, 32, 6], strides = [1, 1, 1]} : vector<10x34x6xbf16> to vector<8x32x6xbf16>
    %11 = vector.extract_strided_slice %7 {offsets = [1, 0, 0], sizes = [8, 32, 6], strides = [1, 1, 1]} : vector<10x34x6xbf16> to vector<8x32x6xbf16>
    %12 = vector.extract_strided_slice %7 {offsets = [1, 1, 0], sizes = [8, 32, 6], strides = [1, 1, 1]} : vector<10x34x6xbf16> to vector<8x32x6xbf16>
    %13 = vector.extract_strided_slice %7 {offsets = [1, 2, 0], sizes = [8, 32, 6], strides = [1, 1, 1]} : vector<10x34x6xbf16> to vector<8x32x6xbf16>
    %14 = vector.extract_strided_slice %7 {offsets = [2, 0, 0], sizes = [8, 32, 6], strides = [1, 1, 1]} : vector<10x34x6xbf16> to vector<8x32x6xbf16>
    %15 = vector.extract_strided_slice %7 {offsets = [2, 1, 0], sizes = [8, 32, 6], strides = [1, 1, 1]} : vector<10x34x6xbf16> to vector<8x32x6xbf16>
    %16 = vector.extract_strided_slice %7 {offsets = [2, 2, 0], sizes = [8, 32, 6], strides = [1, 1, 1]} : vector<10x34x6xbf16> to vector<8x32x6xbf16>
    %17 = tpu.concatenate %8, %9, %10, %11, %12, %13, %14, %15, %16 in 2 : vector<8x32x6xbf16>, vector<8x32x6xbf16>, vector<8x32x6xbf16>, vector<8x32x6xbf16>, vector<8x32x6xbf16>, vector<8x32x6xbf16>, vector<8x32x6xbf16>, vector<8x32x6xbf16>, vector<8x32x6xbf16> -> vector<8x32x54xbf16>
    %18 = vector.shape_cast %17 : vector<8x32x54xbf16> to vector<256x54xbf16>
    %c0_10 = arith.constant 0 : index
    %c0_11 = arith.constant 0 : index
    %19 = vector.load %arg3[%c0_10, %c0_11] : memref<54x16xbf16, #tpu.memory_space<vmem>>, vector<54x16xbf16>
    %cst_12 = arith.constant dense<0.000000e+00> : vector<256x16xf32>
    %20 = tpu.matmul %18, %19, %cst_12 {dimension_numbers = #tpu.dot_dimension_numbers<[1], [0], [0], [1], [0, 0, 1, 1], [], []>} : vector<256x54xbf16>, vector<54x16xbf16>, vector<256x16xf32> -> vector<256x16xf32>
    %c0_13 = arith.constant 0 : index
    %c0_14 = arith.constant 0 : index
    %21 = vector.load %arg4[%c0_13, %c0_14] : memref<1x16xf32, #tpu.memory_space<vmem>>, vector<1x16xf32>
    %22 = vector.broadcast %21 : vector<1x16xf32> to vector<256x16xf32>
    %23 = arith.addf %20, %22 : vector<256x16xf32>
    %cst_15 = arith.constant 0.000000e+00 : f32
    %24 = vector.broadcast %cst_15 : f32 to vector<256x16xf32>
    %25 = arith.maximumf %23, %24 : vector<256x16xf32>
    %26 = vector.shape_cast %25 : vector<256x16xf32> to vector<1x8x32x16xf32>
    %27 = arith.truncf %26 : vector<1x8x32x16xf32> to vector<1x8x32x16xbf16>
    %c0_16 = arith.constant 0 : index
    %c0_17 = arith.constant 0 : index
    %c0_18 = arith.constant 0 : index
    %c0_19 = arith.constant 0 : index
    %28 = vector.load %arg5[%c0_16, %c0_17, %c0_18, %c0_19] : memref<1x32x32x16xbf16, #tpu.memory_space<vmem>>, vector<1x8x32x16xbf16>
    tpu.vector_store %arg5[%c0_16, %c0_17, %c0_18, %c0_19], %27 {strides = array<i32>} : memref<1x32x32x16xbf16, #tpu.memory_space<vmem>>, vector<1x8x32x16xbf16>,
    %c8 = arith.constant 8 : index
    %c0_20 = arith.constant 0 : index
    %c0_21 = arith.constant 0 : index
    %29 = vector.load %arg6[%c8, %c0_20, %c0_21] : memref<34x34x6xbf16, #tpu.memory_space<vmem>>, vector<10x34x6xbf16>
    %30 = vector.extract_strided_slice %29 {offsets = [0, 0, 0], sizes = [8, 32, 6], strides = [1, 1, 1]} : vector<10x34x6xbf16> to vector<8x32x6xbf16>
    %31 = vector.extract_strided_slice %29 {offsets = [0, 1, 0], sizes = [8, 32, 6], strides = [1, 1, 1]} : vector<10x34x6xbf16> to vector<8x32x6xbf16>
    %32 = vector.extract_strided_slice %29 {offsets = [0, 2, 0], sizes = [8, 32, 6], strides = [1, 1, 1]} : vector<10x34x6xbf16> to vector<8x32x6xbf16>
    %33 = vector.extract_strided_slice %29 {offsets = [1, 0, 0], sizes = [8, 32, 6], strides = [1, 1, 1]} : vector<10x34x6xbf16> to vector<8x32x6xbf16>
    %34 = vector.extract_strided_slice %29 {offsets = [1, 1, 0], sizes = [8, 32, 6], strides = [1, 1, 1]} : vector<10x34x6xbf16> to vector<8x32x6xbf16>
    %35 = vector.extract_strided_slice %29 {offsets = [1, 2, 0], sizes = [8, 32, 6], strides = [1, 1, 1]} : vector<10x34x6xbf16> to vector<8x32x6xbf16>
    %36 = vector.extract_strided_slice %29 {offsets = [2, 0, 0], sizes = [8, 32, 6], strides = [1, 1, 1]} : vector<10x34x6xbf16> to vector<8x32x6xbf16>
    %37 = vector.extract_strided_slice %29 {offsets = [2, 1, 0], sizes = [8, 32, 6], strides = [1, 1, 1]} : vector<10x34x6xbf16> to vector<8x32x6xbf16>
    %38 = vector.extract_strided_slice %29 {offsets = [2, 2, 0], sizes = [8, 32, 6], strides = [1, 1, 1]} : vector<10x34x6xbf16> to vector<8x32x6xbf16>
    %39 = tpu.concatenate %30, %31, %32, %33, %34, %35, %36, %37, %38 in 2 : vector<8x32x6xbf16>, vector<8x32x6xbf16>, vector<8x32x6xbf16>, vector<8x32x6xbf16>, vector<8x32x6xbf16>, vector<8x32x6xbf16>, vector<8x32x6xbf16>, vector<8x32x6xbf16>, vector<8x32x6xbf16> -> vector<8x32x54xbf16>
    %40 = vector.shape_cast %39 : vector<8x32x54xbf16> to vector<256x54xbf16>
    %c0_22 = arith.constant 0 : index
    %c0_23 = arith.constant 0 : index
    %41 = vector.load %arg3[%c0_22, %c0_23] : memref<54x16xbf16, #tpu.memory_space<vmem>>, vector<54x16xbf16>
    %cst_24 = arith.constant dense<0.000000e+00> : vector<256x16xf32>
    %42 = tpu.matmul %40, %41, %cst_24 {dimension_numbers = #tpu.dot_dimension_numbers<[1], [0], [0], [1], [0, 0, 1, 1], [], []>} : vector<256x54xbf16>, vector<54x16xbf16>, vector<256x16xf32> -> vector<256x16xf32>
    %c0_25 = arith.constant 0 : index
    %c0_26 = arith.constant 0 : index
    %43 = vector.load %arg4[%c0_25, %c0_26] : memref<1x16xf32, #tpu.memory_space<vmem>>, vector<1x16xf32>
    %44 = vector.broadcast %43 : vector<1x16xf32> to vector<256x16xf32>
    %45 = arith.addf %42, %44 : vector<256x16xf32>
    %cst_27 = arith.constant 0.000000e+00 : f32
    %46 = vector.broadcast %cst_27 : f32 to vector<256x16xf32>
    %47 = arith.maximumf %45, %46 : vector<256x16xf32>
    %48 = vector.shape_cast %47 : vector<256x16xf32> to vector<1x8x32x16xf32>
    %49 = arith.truncf %48 : vector<1x8x32x16xf32> to vector<1x8x32x16xbf16>
    %c0_28 = arith.constant 0 : index
    %c8_29 = arith.constant 8 : index
    %c0_30 = arith.constant 0 : index
    %c0_31 = arith.constant 0 : index
    %50 = vector.load %arg5[%c0_28, %c8_29, %c0_30, %c0_31] : memref<1x32x32x16xbf16, #tpu.memory_space<vmem>>, vector<1x8x32x16xbf16>
    tpu.vector_store %arg5[%c0_28, %c8_29, %c0_30, %c0_31], %49 {strides = array<i32>} : memref<1x32x32x16xbf16, #tpu.memory_space<vmem>>, vector<1x8x32x16xbf16>,
    %c16 = arith.constant 16 : index
    %c0_32 = arith.constant 0 : index
    %c0_33 = arith.constant 0 : index
    %51 = vector.load %arg6[%c16, %c0_32, %c0_33] : memref<34x34x6xbf16, #tpu.memory_space<vmem>>, vector<10x34x6xbf16>
    %52 = vector.extract_strided_slice %51 {offsets = [0, 0, 0], sizes = [8, 32, 6], strides = [1, 1, 1]} : vector<10x34x6xbf16> to vector<8x32x6xbf16>
    %53 = vector.extract_strided_slice %51 {offsets = [0, 1, 0], sizes = [8, 32, 6], strides = [1, 1, 1]} : vector<10x34x6xbf16> to vector<8x32x6xbf16>
    %54 = vector.extract_strided_slice %51 {offsets = [0, 2, 0], sizes = [8, 32, 6], strides = [1, 1, 1]} : vector<10x34x6xbf16> to vector<8x32x6xbf16>
    %55 = vector.extract_strided_slice %51 {offsets = [1, 0, 0], sizes = [8, 32, 6], strides = [1, 1, 1]} : vector<10x34x6xbf16> to vector<8x32x6xbf16>
    %56 = vector.extract_strided_slice %51 {offsets = [1, 1, 0], sizes = [8, 32, 6], strides = [1, 1, 1]} : vector<10x34x6xbf16> to vector<8x32x6xbf16>
    %57 = vector.extract_strided_slice %51 {offsets = [1, 2, 0], sizes = [8, 32, 6], strides = [1, 1, 1]} : vector<10x34x6xbf16> to vector<8x32x6xbf16>
    %58 = vector.extract_strided_slice %51 {offsets = [2, 0, 0], sizes = [8, 32, 6], strides = [1, 1, 1]} : vector<10x34x6xbf16> to vector<8x32x6xbf16>
    %59 = vector.extract_strided_slice %51 {offsets = [2, 1, 0], sizes = [8, 32, 6], strides = [1, 1, 1]} : vector<10x34x6xbf16> to vector<8x32x6xbf16>
    %60 = vector.extract_strided_slice %51 {offsets = [2, 2, 0], sizes = [8, 32, 6], strides = [1, 1, 1]} : vector<10x34x6xbf16> to vector<8x32x6xbf16>
    %61 = tpu.concatenate %52, %53, %54, %55, %56, %57, %58, %59, %60 in 2 : vector<8x32x6xbf16>, vector<8x32x6xbf16>, vector<8x32x6xbf16>, vector<8x32x6xbf16>, vector<8x32x6xbf16>, vector<8x32x6xbf16>, vector<8x32x6xbf16>, vector<8x32x6xbf16>, vector<8x32x6xbf16> -> vector<8x32x54xbf16>
    %62 = vector.shape_cast %61 : vector<8x32x54xbf16> to vector<256x54xbf16>
    %c0_34 = arith.constant 0 : index
    %c0_35 = arith.constant 0 : index
    %63 = vector.load %arg3[%c0_34, %c0_35] : memref<54x16xbf16, #tpu.memory_space<vmem>>, vector<54x16xbf16>
    %cst_36 = arith.constant dense<0.000000e+00> : vector<256x16xf32>
    %64 = tpu.matmul %62, %63, %cst_36 {dimension_numbers = #tpu.dot_dimension_numbers<[1], [0], [0], [1], [0, 0, 1, 1], [], []>} : vector<256x54xbf16>, vector<54x16xbf16>, vector<256x16xf32> -> vector<256x16xf32>
    %c0_37 = arith.constant 0 : index
    %c0_38 = arith.constant 0 : index
    %65 = vector.load %arg4[%c0_37, %c0_38] : memref<1x16xf32, #tpu.memory_space<vmem>>, vector<1x16xf32>
    %66 = vector.broadcast %65 : vector<1x16xf32> to vector<256x16xf32>
    %67 = arith.addf %64, %66 : vector<256x16xf32>
    %cst_39 = arith.constant 0.000000e+00 : f32
    %68 = vector.broadcast %cst_39 : f32 to vector<256x16xf32>
    %69 = arith.maximumf %67, %68 : vector<256x16xf32>
    %70 = vector.shape_cast %69 : vector<256x16xf32> to vector<1x8x32x16xf32>
    %71 = arith.truncf %70 : vector<1x8x32x16xf32> to vector<1x8x32x16xbf16>
    %c0_40 = arith.constant 0 : index
    %c16_41 = arith.constant 16 : index
    %c0_42 = arith.constant 0 : index
    %c0_43 = arith.constant 0 : index
    %72 = vector.load %arg5[%c0_40, %c16_41, %c0_42, %c0_43] : memref<1x32x32x16xbf16, #tpu.memory_space<vmem>>, vector<1x8x32x16xbf16>
    tpu.vector_store %arg5[%c0_40, %c16_41, %c0_42, %c0_43], %71 {strides = array<i32>} : memref<1x32x32x16xbf16, #tpu.memory_space<vmem>>, vector<1x8x32x16xbf16>,
    %c24 = arith.constant 24 : index
    %c0_44 = arith.constant 0 : index
    %c0_45 = arith.constant 0 : index
    %73 = vector.load %arg6[%c24, %c0_44, %c0_45] : memref<34x34x6xbf16, #tpu.memory_space<vmem>>, vector<10x34x6xbf16>
    %74 = vector.extract_strided_slice %73 {offsets = [0, 0, 0], sizes = [8, 32, 6], strides = [1, 1, 1]} : vector<10x34x6xbf16> to vector<8x32x6xbf16>
    %75 = vector.extract_strided_slice %73 {offsets = [0, 1, 0], sizes = [8, 32, 6], strides = [1, 1, 1]} : vector<10x34x6xbf16> to vector<8x32x6xbf16>
    %76 = vector.extract_strided_slice %73 {offsets = [0, 2, 0], sizes = [8, 32, 6], strides = [1, 1, 1]} : vector<10x34x6xbf16> to vector<8x32x6xbf16>
    %77 = vector.extract_strided_slice %73 {offsets = [1, 0, 0], sizes = [8, 32, 6], strides = [1, 1, 1]} : vector<10x34x6xbf16> to vector<8x32x6xbf16>
    %78 = vector.extract_strided_slice %73 {offsets = [1, 1, 0], sizes = [8, 32, 6], strides = [1, 1, 1]} : vector<10x34x6xbf16> to vector<8x32x6xbf16>
    %79 = vector.extract_strided_slice %73 {offsets = [1, 2, 0], sizes = [8, 32, 6], strides = [1, 1, 1]} : vector<10x34x6xbf16> to vector<8x32x6xbf16>
    %80 = vector.extract_strided_slice %73 {offsets = [2, 0, 0], sizes = [8, 32, 6], strides = [1, 1, 1]} : vector<10x34x6xbf16> to vector<8x32x6xbf16>
    %81 = vector.extract_strided_slice %73 {offsets = [2, 1, 0], sizes = [8, 32, 6], strides = [1, 1, 1]} : vector<10x34x6xbf16> to vector<8x32x6xbf16>
    %82 = vector.extract_strided_slice %73 {offsets = [2, 2, 0], sizes = [8, 32, 6], strides = [1, 1, 1]} : vector<10x34x6xbf16> to vector<8x32x6xbf16>
    %83 = tpu.concatenate %74, %75, %76, %77, %78, %79, %80, %81, %82 in 2 : vector<8x32x6xbf16>, vector<8x32x6xbf16>, vector<8x32x6xbf16>, vector<8x32x6xbf16>, vector<8x32x6xbf16>, vector<8x32x6xbf16>, vector<8x32x6xbf16>, vector<8x32x6xbf16>, vector<8x32x6xbf16> -> vector<8x32x54xbf16>
    %84 = vector.shape_cast %83 : vector<8x32x54xbf16> to vector<256x54xbf16>
    %c0_46 = arith.constant 0 : index
    %c0_47 = arith.constant 0 : index
    %85 = vector.load %arg3[%c0_46, %c0_47] : memref<54x16xbf16, #tpu.memory_space<vmem>>, vector<54x16xbf16>
    %cst_48 = arith.constant dense<0.000000e+00> : vector<256x16xf32>
    %86 = tpu.matmul %84, %85, %cst_48 {dimension_numbers = #tpu.dot_dimension_numbers<[1], [0], [0], [1], [0, 0, 1, 1], [], []>} : vector<256x54xbf16>, vector<54x16xbf16>, vector<256x16xf32> -> vector<256x16xf32>
    %c0_49 = arith.constant 0 : index
    %c0_50 = arith.constant 0 : index
    %87 = vector.load %arg4[%c0_49, %c0_50] : memref<1x16xf32, #tpu.memory_space<vmem>>, vector<1x16xf32>
    %88 = vector.broadcast %87 : vector<1x16xf32> to vector<256x16xf32>
    %89 = arith.addf %86, %88 : vector<256x16xf32>
    %cst_51 = arith.constant 0.000000e+00 : f32
    %90 = vector.broadcast %cst_51 : f32 to vector<256x16xf32>
    %91 = arith.maximumf %89, %90 : vector<256x16xf32>
    %92 = vector.shape_cast %91 : vector<256x16xf32> to vector<1x8x32x16xf32>
    %93 = arith.truncf %92 : vector<1x8x32x16xf32> to vector<1x8x32x16xbf16>
    %c0_52 = arith.constant 0 : index
    %c24_53 = arith.constant 24 : index
    %c0_54 = arith.constant 0 : index
    %c0_55 = arith.constant 0 : index
    %94 = vector.load %arg5[%c0_52, %c24_53, %c0_54, %c0_55] : memref<1x32x32x16xbf16, #tpu.memory_space<vmem>>, vector<1x8x32x16xbf16>
    tpu.vector_store %arg5[%c0_52, %c24_53, %c0_54, %c0_55], %93 {strides = array<i32>} : memref<1x32x32x16xbf16, #tpu.memory_space<vmem>>, vector<1x8x32x16xbf16>,
    return
  }
  func.func @transform_0(%arg0: i32, %arg1: i32) -> (i32, i32, i32, i32) {
    %c0_i32 = arith.constant 0 : i32
    %c0_i32_0 = arith.constant 0 : i32
    %c0_i32_1 = arith.constant 0 : i32
    %c0_i32_2 = arith.constant 0 : i32
    return %arg0, %c0_i32, %c0_i32_0, %c0_i32_1 : i32, i32, i32, i32
  }
  func.func @transform_1(%arg0: i32, %arg1: i32) -> (i32, i32) {
    %c0_i32 = arith.constant 0 : i32
    %c0_i32_0 = arith.constant 0 : i32
    return %c0_i32, %arg1 : i32, i32
  }
  func.func @transform_2(%arg0: i32, %arg1: i32) -> (i32, i32) {
    %c0_i32 = arith.constant 0 : i32
    %c0_i32_0 = arith.constant 0 : i32
    return %c0_i32, %arg1 : i32, i32
  }
  func.func @transform_3(%arg0: i32, %arg1: i32) -> (i32, i32, i32, i32) {
    %c0_i32 = arith.constant 0 : i32
    %c0_i32_0 = arith.constant 0 : i32
    %c0_i32_1 = arith.constant 0 : i32
    return %arg0, %c0_i32, %c0_i32_0, %arg1 : i32, i32, i32, i32
  }
}

</mosaic_0001>

<llo_original>
// kernel: tpu_custom_call.1
$region0: #{tpu_custom_call.1}
  #allocation0 [shape = 'u32[]', space=smem, size = 0x4, offset = 0x4, fixed_abs, tag = 'smem constant byte address 0x4 - core index']
  #allocation1 [shape = 'u32[72,128]{1,0:T(1,128)}', space=vmem, size = 0x9000, scoped, tag = 'internal scratch']
  #allocation2 [shape = 'bf16[34,34,6]{2,1,0:T(8,128)(2,1)}', space=vmem, size = 0x55000, scoped, tag = 'scratch operand']
  %s0 = inlined_call_operand.vmem [shape: bf16[4,32,32,6], index: 0, kind: input, shape index: {}]
  %s1 = inlined_call_operand.vmem [shape: bf16[54,16], index: 1, kind: input, shape index: {}]
  %s2 = inlined_call_operand.vmem [shape: f32[1,16], index: 2, kind: input, shape index: {}]
  %s3 = inlined_call_operand.vmem [shape: bf16[4,32,32,16], index: 3, kind: output, shape index: {}]
  %s4 = sld [smem:[#allocation0]]
  $region45: #{tpu_custom_call.1} parent=0
    _
  %s6 = ssub.s32 1, %s4
  %s7 = scalar_select 0, %s6, %s4
  loop: start=0, step=1, limit=6
  $region2: #{tpu_custom_call.1} parent=0 // loop_pre_header
    _
  $region3: #{tpu_custom_call.1} parent=0 // loop_header
    %s9 = sphi 0, %s13
    %p10 = scmp.ge.s32.totalorder %s9, 6
    %s16 = sphi 0, %s28
    %s17 = sphi 0, %s24
    %s18 = sphi 0, %s16
    %s19 = sphi 0, %s17
    %s20 = sphi 0, %s18
    %s21 = sphi 0, %s19
    %s31 = sphi 0, %s33
    %s34 = sphi 0, %s31
    %s35 = sphi 0, %s34
    %s51 = sphi 0, %s35
    %s57 = sphi 0, %s59
    %s60 = sphi 0, %s57
    %s61 = sphi 0, %s60
    %s77 = sphi 0, %s61
    %s83 = sphi 0, %s85
    %s86 = sphi 0, %s83
    %s87 = sphi 0, %s86
    %s103 = sphi 0, %s87
    %s111 = sphi 0, %s113
    %s114 = sphi 0, %s111
    %s115 = sphi 0, %s114
    %s131 = sphi 0, %s115
  $region4: #{tpu_custom_call.1} parent=0 // loop_header_branch
    %12 = sbr.rel (%p10) target = $region8
  $region5: #{tpu_custom_call.1} parent=0 // loop_body
    %s14 = ssub.s32 %s9, 1
    %s15 = ssub.s32 %s9, 2
    %s22 = sadd.s32 1, %s17
    %p23 = scmp.ge.s32.totalorder %s22, 1
    %s24 = scalar_select %p23, 0, %s22
    %s25 = sadd.s32 1, %s16
    %s26 = scalar_select %p23, %s25, %s16
    %p27 = scmp.ge.s32.totalorder %s26, 4
    %s28 = scalar_select %p27, 0, %s26
    %s29 = ssub.s32 %s16, %s28
    %p30 = scmp.eq.s32.totalorder %s29, 0
    %s32 = sadd.s32 %s31, 1
    %s33 = scalar_select %p30, %s31, %s32
    %p36 = pneg %p30
    %p37 = scmp.eq.s32.totalorder %s9, 3
    %p38 = por %p36, %p37
    %p39 = scmp.ne.s32.totalorder %s31, %s34
    %p40 = scmp.eq.s32.totalorder %s9, 0
    %p41 = por %p39, %p40
    %p42 = scmp.ne.s32.totalorder %s31, %s34
    %p43 = scmp.eq.s32.totalorder %s14, 3
    %p44 = por %p42, %p43
    %p45 = scmp.ne.s32.totalorder %s34, %s35
    %p46 = scmp.eq.s32.totalorder %s14, 0
    %p47 = por %p45, %p46
    %p48 = scmp.ne.s32.totalorder %s34, %s35
    %p49 = scmp.eq.s32.totalorder %s15, 3
    %p50 = por %p48, %p49
    %p52 = scmp.ne.s32.totalorder %s35, %s51
    %p53 = scmp.eq.s32.totalorder %s15, 0
    %p54 = por %p52, %p53
    %s55 = ssub.s32 %s17, %s24
    %p56 = scmp.eq.s32.totalorder %s55, 0
    %s58 = sadd.s32 %s57, 1
    %s59 = scalar_select %p56, %s57, %s58
    %p62 = pneg %p56
    %p63 = scmp.eq.s32.totalorder %s9, 3
    %p64 = por %p62, %p63
    %p65 = scmp.ne.s32.totalorder %s57, %s60
    %p66 = scmp.eq.s32.totalorder %s9, 0
    %p67 = por %p65, %p66
    %p68 = scmp.ne.s32.totalorder %s57, %s60
    %p69 = scmp.eq.s32.totalorder %s14, 3
    %p70 = por %p68, %p69
    %p71 = scmp.ne.s32.totalorder %s60, %s61
    %p72 = scmp.eq.s32.totalorder %s14, 0
    %p73 = por %p71, %p72
    %p74 = scmp.ne.s32.totalorder %s60, %s61
    %p75 = scmp.eq.s32.totalorder %s15, 3
    %p76 = por %p74, %p75
    %p78 = scmp.ne.s32.totalorder %s61, %s77
    %p79 = scmp.eq.s32.totalorder %s15, 0
    %p80 = por %p78, %p79
    %s81 = ssub.s32 %s17, %s24
    %p82 = scmp.eq.s32.totalorder %s81, 0
    %s84 = sadd.s32 %s83, 1
    %s85 = scalar_select %p82, %s83, %s84
    %p88 = pneg %p82
    %p89 = scmp.eq.s32.totalorder %s9, 3
    %p90 = por %p88, %p89
    %p91 = scmp.ne.s32.totalorder %s83, %s86
    %p92 = scmp.eq.s32.totalorder %s9, 0
    %p93 = por %p91, %p92
    %p94 = scmp.ne.s32.totalorder %s83, %s86
    %p95 = scmp.eq.s32.totalorder %s14, 3
    %p96 = por %p94, %p95
    %p97 = scmp.ne.s32.totalorder %s86, %s87
    %p98 = scmp.eq.s32.totalorder %s14, 0
    %p99 = por %p97, %p98
    %p100 = scmp.ne.s32.totalorder %s86, %s87
    %p101 = scmp.eq.s32.totalorder %s15, 3
    %p102 = por %p100, %p101
    %p104 = scmp.ne.s32.totalorder %s87, %s103
    %p105 = scmp.eq.s32.totalorder %s15, 0
    %p106 = por %p104, %p105
    %s107 = ssub.s32 %s16, %s28
    %s108 = ssub.s32 %s17, %s24
    %s109 = sor.u32 %s107, %s108
    %p110 = scmp.eq.s32.totalorder %s109, 0
    %s112 = sadd.s32 %s111, 1
    %s113 = scalar_select %p110, %s111, %s112
    %p116 = pneg %p110
    %p117 = scmp.eq.s32.totalorder %s9, 3
    %p118 = por %p116, %p117
    %p119 = scmp.ne.s32.totalorder %s111, %s114
    %p120 = scmp.eq.s32.totalorder %s9, 0
    %p121 = por %p119, %p120
    %p122 = scmp.ne.s32.totalorder %s111, %s114
    %p123 = scmp.eq.s32.totalorder %s14, 3
    %p124 = por %p122, %p123
    %p125 = scmp.ne.s32.totalorder %s114, %s115
    %p126 = scmp.eq.s32.totalorder %s14, 0
    %p127 = por %p125, %p126
    %p128 = scmp.ne.s32.totalorder %s114, %s115
    %p129 = scmp.eq.s32.totalorder %s15, 3
    %p130 = por %p128, %p129
    %p132 = scmp.ne.s32.totalorder %s115, %s131
    %p133 = scmp.eq.s32.totalorder %s15, 0
    %p134 = por %p132, %p133
    %p135 = scmp.le.s32.totalorder 1, %s9
    %p136 = scmp.lt.s32.totalorder %s9, 5
    %p137 = pnand %p135, %p136
    %p138 = pneg %p137
    // Predicated region
    $region9: #{tpu_custom_call.1} parent=5 // pred_check
      _
    $region10: #{tpu_custom_call.1} parent=5 // pred_check_branch
      %140 = sbr.rel (%p137) target = $region12
    $region11: #{tpu_custom_call.1} parent=5 // pred_region
      %s141 = ssub.s32 %s9, 1
      // Predicated region
      $region13: #{tpu_custom_call.1} parent=11 // pred_check
        %p142 = pneg %p73
      $region14: #{tpu_custom_call.1} parent=11 // pred_check_branch
        %144 = sbr.rel (%p142) target = $region16
      $region15: #{tpu_custom_call.1} parent=11 // pred_region
        %p145 = scmp.lt.s32.totalorder %s19, 0
        %s146 = scalar_select %p145, %s19, 0
        %s147 = smul.addr %s146, 4
        %s148 = scalar_lea.vmem %s1, %s147
      $region16: #{tpu_custom_call.1} parent=11 // pred_fallthru
        _
      // Predicated region
      $region17: #{tpu_custom_call.1} parent=11 // pred_check
        %p149 = pneg %p99
      $region18: #{tpu_custom_call.1} parent=11 // pred_check_branch
        %151 = sbr.rel (%p149) target = $region20
      $region19: #{tpu_custom_call.1} parent=11 // pred_region
        %p152 = scmp.lt.s32.totalorder %s19, 0
        %s153 = scalar_select %p152, %s19, 0
        %s154 = scalar_lea.vmem %s2, %s153
      $region20: #{tpu_custom_call.1} parent=11 // pred_fallthru
        _
    $region12: #{tpu_custom_call.1} parent=5 // pred_fallthru
      _
    %p155 = scmp.lt.s32.totalorder %s9, 4
    // Predicated region
    $region21: #{tpu_custom_call.1} parent=5 // pred_check
      %p156 = pneg %p155
    $region22: #{tpu_custom_call.1} parent=5 // pred_check_branch
      %158 = sbr.rel (%p156) target = $region24
    $region23: #{tpu_custom_call.1} parent=5 // pred_region
      // Predicated region
      $region25: #{tpu_custom_call.1} parent=23 // pred_check
        %p159 = pneg %p41
      $region26: #{tpu_custom_call.1} parent=23 // pred_check_branch
        %161 = sbr.rel (%p159) target = $region28
      $region27: #{tpu_custom_call.1} parent=23 // pred_region
        %p162 = scmp.lt.s32.totalorder %s16, 3
        %s163 = scalar_select %p162, %s16, 3
        %s164 = smul.addr %s163, 128
        %s165 = smul.addr %s164, 4
        %s166 = scalar_lea.vmem %s0, %s165
      $region28: #{tpu_custom_call.1} parent=23 // pred_fallthru
        _
    $region24: #{tpu_custom_call.1} parent=5 // pred_fallthru
      _
    %p167 = scmp.le.s32.totalorder 1, %s9
    %p168 = scmp.lt.s32.totalorder %s9, 5
    %p169 = pnand %p167, %p168
    %p170 = pneg %p169
    // Predicated region
    $region29: #{tpu_custom_call.1} parent=5 // pred_check
      _
    $region30: #{tpu_custom_call.1} parent=5 // pred_check_branch
      %172 = sbr.rel (%p169) target = $region32
    $region31: #{tpu_custom_call.1} parent=5 // pred_region
      %s173 = ssub.s32 %s9, 1
      %p174 = scmp.lt.s32.totalorder %s18, 3
      %s175 = scalar_select %p174, %s18, 3
      %s176 = smul.addr %s175, 128
      %s177 = smul.addr %s176, 4
      %s178 = scalar_lea.vmem %s0, %s177
      %p179 = pneg %p47
      %p180 = pneg %p44
      %p181 = scmp.lt.s32.totalorder %s19, 0
      %s182 = scalar_select %p181, %s19, 0
      %s183 = smul.addr %s182, 4
      %s184 = scalar_lea.vmem %s1, %s183
      %p185 = pneg %p73
      %p186 = pneg %p70
      %p187 = scmp.lt.s32.totalorder %s19, 0
      %s188 = scalar_select %p187, %s19, 0
      %s189 = scalar_lea.vmem %s2, %s188
      %p190 = pneg %p99
      %p191 = pneg %p96
      %p192 = pneg %p127
      %p193 = pneg %p124
      %p194 = scmp.lt.s32.totalorder %s18, 3
      %s195 = scalar_select %p194, %s18, 3
      %p196 = scmp.lt.s32.totalorder %s19, 0
      %s197 = scalar_select %p196, %s19, 0
      %s198 = smul.addr %s195, 128
      %s199 = sadd.s32 %s197, %s198
      %s200 = smul.addr %s199, 4
      %s201 = scalar_lea.vmem %s3, %s200
      %p202 = scmp.lt.s32.totalorder %s18, 3
      %s203 = scalar_select %p202, %s18, 3
      %s204 = smul.addr %s203, 128
      %s205 = smul.addr %s204, 4
      %s206 = scalar_lea.vmem %s0, %s205
      %p207 = scmp.lt.s32.totalorder %s19, 0
      %s208 = scalar_select %p207, %s19, 0
      %s209 = smul.addr %s208, 4
      %s210 = scalar_lea.vmem %s1, %s209
      %p211 = scmp.lt.s32.totalorder %s19, 0
      %s212 = scalar_select %p211, %s19, 0
      %s213 = scalar_lea.vmem %s2, %s212
      %p214 = scmp.lt.s32.totalorder %s18, 3
      %s215 = scalar_select %p214, %s18, 3
      %p216 = scmp.lt.s32.totalorder %s19, 0
      %s217 = scalar_select %p216, %s19, 0
      %s218 = smul.addr %s215, 128
      %s219 = sadd.s32 %s217, %s218
      %s220 = smul.addr %s219, 4
      %s221 = scalar_lea.vmem %s3, %s220
      %v223 = vld [vmem:[%s206] sm:$0xf]
      %v224 = vld [vmem:[%s206 + $0x4] sm:$0xf]
      %v225 = vld [vmem:[%s206 + $0x8] sm:$0xf]
      %v226 = vld [vmem:[%s206 + $0xc] sm:$0xf]
      %v227 = vld [vmem:[%s206 + $0x10] sm:$0xf]
      %v228 = vld [vmem:[%s206 + $0x14] sm:$0xf]
      %v229 = vld [vmem:[%s206 + $0x18] sm:$0xf]
      %v230 = vld [vmem:[%s206 + $0x1c] sm:$0xf]
      %v231 = vld [vmem:[%s206 + $0x20] sm:$0xf]
      %v232 = vld [vmem:[%s206 + $0x24] sm:$0xf]
      %v233 = vld [vmem:[%s206 + $0x28] sm:$0xf]
      %v234 = vld [vmem:[%s206 + $0x2c] sm:$0xf]
      %v235 = vld [vmem:[%s206 + $0x30] sm:$0xf]
      %v236 = vld [vmem:[%s206 + $0x34] sm:$0xf]
      %v237 = vld [vmem:[%s206 + $0x38] sm:$0xf]
      %v238 = vld [vmem:[%s206 + $0x3c] sm:$0xf]
      %v239 = vld [vmem:[%s206 + $0x40] sm:$0xf]
      %v240 = vld [vmem:[%s206 + $0x44] sm:$0xf]
      %v241 = vld [vmem:[%s206 + $0x48] sm:$0xf]
      %v242 = vld [vmem:[%s206 + $0x4c] sm:$0xf]
      %v243 = vld [vmem:[%s206 + $0x50] sm:$0xf]
      %v244 = vld [vmem:[%s206 + $0x54] sm:$0xf]
      %v245 = vld [vmem:[%s206 + $0x58] sm:$0xf]
      %v246 = vld [vmem:[%s206 + $0x5c] sm:$0xf]
      %v247 = vld [vmem:[%s206 + $0x60] sm:$0xf]
      %v248 = vld [vmem:[%s206 + $0x64] sm:$0xf]
      %v249 = vld [vmem:[%s206 + $0x68] sm:$0xf]
      %v250 = vld [vmem:[%s206 + $0x6c] sm:$0xf]
      %v251 = vld [vmem:[%s206 + $0x70] sm:$0xf]
      %v252 = vld [vmem:[%s206 + $0x74] sm:$0xf]
      %v253 = vld [vmem:[%s206 + $0x78] sm:$0xf]
      %v254 = vld [vmem:[%s206 + $0x7c] sm:$0xf]
      %v255 = vld [vmem:[%s206 + $0x80] sm:$0xf]
      %v256 = vld [vmem:[%s206 + $0x84] sm:$0xf]
      %v257 = vld [vmem:[%s206 + $0x88] sm:$0xf]
      %v258 = vld [vmem:[%s206 + $0x8c] sm:$0xf]
      %v259 = vld [vmem:[%s206 + $0x90] sm:$0xf]
      %v260 = vld [vmem:[%s206 + $0x94] sm:$0xf]
      %v261 = vld [vmem:[%s206 + $0x98] sm:$0xf]
      %v262 = vld [vmem:[%s206 + $0x9c] sm:$0xf]
      %v263 = vld [vmem:[%s206 + $0xa0] sm:$0xf]
      %v264 = vld [vmem:[%s206 + $0xa4] sm:$0xf]
      %v265 = vld [vmem:[%s206 + $0xa8] sm:$0xf]
      %v266 = vld [vmem:[%s206 + $0xac] sm:$0xf]
      %v267 = vld [vmem:[%s206 + $0xb0] sm:$0xf]
      %v268 = vld [vmem:[%s206 + $0xb4] sm:$0xf]
      %v269 = vld [vmem:[%s206 + $0xb8] sm:$0xf]
      %v270 = vld [vmem:[%s206 + $0xbc] sm:$0xf]
      %v271 = vld [vmem:[%s206 + $0xc0] sm:$0xf]
      %v272 = vld [vmem:[%s206 + $0xc4] sm:$0xf]
      %v273 = vld [vmem:[%s206 + $0xc8] sm:$0xf]
      %v274 = vld [vmem:[%s206 + $0xcc] sm:$0xf]
      %v275 = vld [vmem:[%s206 + $0xd0] sm:$0xf]
      %v276 = vld [vmem:[%s206 + $0xd4] sm:$0xf]
      %v277 = vld [vmem:[%s206 + $0xd8] sm:$0xf]
      %v278 = vld [vmem:[%s206 + $0xdc] sm:$0xf]
      %v279 = vld [vmem:[%s206 + $0xe0] sm:$0xf]
      %v280 = vld [vmem:[%s206 + $0xe4] sm:$0xf]
      %v281 = vld [vmem:[%s206 + $0xe8] sm:$0xf]
      %v282 = vld [vmem:[%s206 + $0xec] sm:$0xf]
      %v283 = vld [vmem:[%s206 + $0xf0] sm:$0xf]
      %v284 = vld [vmem:[%s206 + $0xf4] sm:$0xf]
      %v285 = vld [vmem:[%s206 + $0xf8] sm:$0xf]
      %v286 = vld [vmem:[%s206 + $0xfc] sm:$0xf]
      %v287 = vld [vmem:[%s206 + $0x100] sm:$0xf]
      %v288 = vld [vmem:[%s206 + $0x104] sm:$0xf]
      %v289 = vld [vmem:[%s206 + $0x108] sm:$0xf]
      %v290 = vld [vmem:[%s206 + $0x10c] sm:$0xf]
      %v291 = vld [vmem:[%s206 + $0x110] sm:$0xf]
      %v292 = vld [vmem:[%s206 + $0x114] sm:$0xf]
      %v293 = vld [vmem:[%s206 + $0x118] sm:$0xf]
      %v294 = vld [vmem:[%s206 + $0x11c] sm:$0xf]
      %v295 = vld [vmem:[%s206 + $0x120] sm:$0xf]
      %v296 = vld [vmem:[%s206 + $0x124] sm:$0xf]
      %v297 = vld [vmem:[%s206 + $0x128] sm:$0xf]
      %v298 = vld [vmem:[%s206 + $0x12c] sm:$0xf]
      %v299 = vld [vmem:[%s206 + $0x130] sm:$0xf]
      %v300 = vld [vmem:[%s206 + $0x134] sm:$0xf]
      %v301 = vld [vmem:[%s206 + $0x138] sm:$0xf]
      %v302 = vld [vmem:[%s206 + $0x13c] sm:$0xf]
      %v303 = vld [vmem:[%s206 + $0x140] sm:$0xf]
      %v304 = vld [vmem:[%s206 + $0x144] sm:$0xf]
      %v305 = vld [vmem:[%s206 + $0x148] sm:$0xf]
      %v306 = vld [vmem:[%s206 + $0x14c] sm:$0xf]
      %v307 = vld [vmem:[%s206 + $0x150] sm:$0xf]
      %v308 = vld [vmem:[%s206 + $0x154] sm:$0xf]
      %v309 = vld [vmem:[%s206 + $0x158] sm:$0xf]
      %v310 = vld [vmem:[%s206 + $0x15c] sm:$0xf]
      %v311 = vld [vmem:[%s206 + $0x160] sm:$0xf]
      %v312 = vld [vmem:[%s206 + $0x164] sm:$0xf]
      %v313 = vld [vmem:[%s206 + $0x168] sm:$0xf]
      %v314 = vld [vmem:[%s206 + $0x16c] sm:$0xf]
      %v315 = vld [vmem:[%s206 + $0x170] sm:$0xf]
      %v316 = vld [vmem:[%s206 + $0x174] sm:$0xf]
      %v317 = vld [vmem:[%s206 + $0x178] sm:$0xf]
      %v318 = vld [vmem:[%s206 + $0x17c] sm:$0xf]
      %v319 = vld [vmem:[%s206 + $0x180] sm:$0xf]
      %v320 = vld [vmem:[%s206 + $0x184] sm:$0xf]
      %v321 = vld [vmem:[%s206 + $0x188] sm:$0xf]
      %v322 = vld [vmem:[%s206 + $0x18c] sm:$0xf]
      %v323 = vld [vmem:[%s206 + $0x190] sm:$0xf]
      %v324 = vld [vmem:[%s206 + $0x194] sm:$0xf]
      %v325 = vld [vmem:[%s206 + $0x198] sm:$0xf]
      %v326 = vld [vmem:[%s206 + $0x19c] sm:$0xf]
      %v327 = vld [vmem:[%s206 + $0x1a0] sm:$0xf]
      %v328 = vld [vmem:[%s206 + $0x1a4] sm:$0xf]
      %v329 = vld [vmem:[%s206 + $0x1a8] sm:$0xf]
      %v330 = vld [vmem:[%s206 + $0x1ac] sm:$0xf]
      %v331 = vld [vmem:[%s206 + $0x1b0] sm:$0xf]
      %v332 = vld [vmem:[%s206 + $0x1b4] sm:$0xf]
      %v333 = vld [vmem:[%s206 + $0x1b8] sm:$0xf]
      %v334 = vld [vmem:[%s206 + $0x1bc] sm:$0xf]
      %v335 = vld [vmem:[%s206 + $0x1c0] sm:$0xf]
      %v336 = vld [vmem:[%s206 + $0x1c4] sm:$0xf]
      %v337 = vld [vmem:[%s206 + $0x1c8] sm:$0xf]
      %v338 = vld [vmem:[%s206 + $0x1cc] sm:$0xf]
      %v339 = vld [vmem:[%s206 + $0x1d0] sm:$0xf]
      %v340 = vld [vmem:[%s206 + $0x1d4] sm:$0xf]
      %v341 = vld [vmem:[%s206 + $0x1d8] sm:$0xf]
      %v342 = vld [vmem:[%s206 + $0x1dc] sm:$0xf]
      %v343 = vld [vmem:[%s206 + $0x1e0] sm:$0xf]
      %v344 = vld [vmem:[%s206 + $0x1e4] sm:$0xf]
      %v345 = vld [vmem:[%s206 + $0x1e8] sm:$0xf]
      %v346 = vld [vmem:[%s206 + $0x1ec] sm:$0xf]
      %v347 = vld [vmem:[%s206 + $0x1f0] sm:$0xf]
      %v348 = vld [vmem:[%s206 + $0x1f4] sm:$0xf]
      %v349 = vld [vmem:[%s206 + $0x1f8] sm:$0xf]
      %v350 = vld [vmem:[%s206 + $0x1fc] sm:$0xf]
      %v479 = vunpack.c.l.b16 %v223
      %v480 = vunpack.c.l.b16 %v224
      %v481 = vunpack.c.l.b16 %v225
      %v482 = vunpack.c.l.b16 %v226
      %v483 = vunpack.c.l.b16 %v227
      %v484 = vunpack.c.l.b16 %v228
      %v485 = vunpack.c.l.b16 %v229
      %v486 = vunpack.c.l.b16 %v230
      %v487 = vunpack.c.l.b16 %v231
      %v488 = vunpack.c.l.b16 %v232
      %v489 = vunpack.c.l.b16 %v233
      %v490 = vunpack.c.l.b16 %v234
      %v491 = vunpack.c.l.b16 %v235
      %v492 = vunpack.c.l.b16 %v236
      %v493 = vunpack.c.l.b16 %v237
      %v494 = vunpack.c.l.b16 %v238
      %v495 = vunpack.c.l.b16 %v239
      %v496 = vunpack.c.l.b16 %v240
      %v497 = vunpack.c.l.b16 %v241
      %v498 = vunpack.c.l.b16 %v242
      %v499 = vunpack.c.l.b16 %v243
      %v500 = vunpack.c.l.b16 %v244
      %v501 = vunpack.c.l.b16 %v245
      %v502 = vunpack.c.l.b16 %v246
      %v503 = vunpack.c.l.b16 %v247
      %v504 = vunpack.c.l.b16 %v248
      %v505 = vunpack.c.l.b16 %v249
      %v506 = vunpack.c.l.b16 %v250
      %v507 = vunpack.c.l.b16 %v251
      %v508 = vunpack.c.l.b16 %v252
      %v509 = vunpack.c.l.b16 %v253
      %v510 = vunpack.c.l.b16 %v254
      %v511 = vunpack.c.l.b16 %v255
      %v512 = vunpack.c.l.b16 %v256
      %v513 = vunpack.c.l.b16 %v257
      %v514 = vunpack.c.l.b16 %v258
      %v515 = vunpack.c.l.b16 %v259
      %v516 = vunpack.c.l.b16 %v260
      %v517 = vunpack.c.l.b16 %v261
      %v518 = vunpack.c.l.b16 %v262
      %v519 = vunpack.c.l.b16 %v263
      %v520 = vunpack.c.l.b16 %v264
      %v521 = vunpack.c.l.b16 %v265
      %v522 = vunpack.c.l.b16 %v266
      %v523 = vunpack.c.l.b16 %v267
      %v524 = vunpack.c.l.b16 %v268
      %v525 = vunpack.c.l.b16 %v269
      %v526 = vunpack.c.l.b16 %v270
      %v527 = vunpack.c.l.b16 %v271
      %v528 = vunpack.c.l.b16 %v272
      %v529 = vunpack.c.l.b16 %v273
      %v530 = vunpack.c.l.b16 %v274
      %v531 = vunpack.c.l.b16 %v275
      %v532 = vunpack.c.l.b16 %v276
      %v533 = vunpack.c.l.b16 %v277
      %v534 = vunpack.c.l.b16 %v278
      %v535 = vunpack.c.l.b16 %v279
      %v536 = vunpack.c.l.b16 %v280
      %v537 = vunpack.c.l.b16 %v281
      %v538 = vunpack.c.l.b16 %v282
      %v539 = vunpack.c.l.b16 %v283
      %v540 = vunpack.c.l.b16 %v284
      %v541 = vunpack.c.l.b16 %v285
      %v542 = vunpack.c.l.b16 %v286
      %v543 = vunpack.c.l.b16 %v287
      %v544 = vunpack.c.l.b16 %v288
      %v545 = vunpack.c.l.b16 %v289
      %v546 = vunpack.c.l.b16 %v290
      %v547 = vunpack.c.l.b16 %v291
      %v548 = vunpack.c.l.b16 %v292
      %v549 = vunpack.c.l.b16 %v293
      %v550 = vunpack.c.l.b16 %v294
      %v551 = vunpack.c.l.b16 %v295
      %v552 = vunpack.c.l.b16 %v296
      %v553 = vunpack.c.l.b16 %v297
      %v554 = vunpack.c.l.b16 %v298
      %v555 = vunpack.c.l.b16 %v299
      %v556 = vunpack.c.l.b16 %v300
      %v557 = vunpack.c.l.b16 %v301
      %v558 = vunpack.c.l.b16 %v302
      %v559 = vunpack.c.l.b16 %v303
      %v560 = vunpack.c.l.b16 %v304
      %v561 = vunpack.c.l.b16 %v305
      %v562 = vunpack.c.l.b16 %v306
      %v563 = vunpack.c.l.b16 %v307
      %v564 = vunpack.c.l.b16 %v308
      %v565 = vunpack.c.l.b16 %v309
      %v566 = vunpack.c.l.b16 %v310
      %v567 = vunpack.c.l.b16 %v311
      %v568 = vunpack.c.l.b16 %v312
      %v569 = vunpack.c.l.b16 %v313
      %v570 = vunpack.c.l.b16 %v314
      %v571 = vunpack.c.l.b16 %v315
      %v572 = vunpack.c.l.b16 %v316
      %v573 = vunpack.c.l.b16 %v317
      %v574 = vunpack.c.l.b16 %v318
      %v575 = vunpack.c.l.b16 %v319
      %v576 = vunpack.c.l.b16 %v320
      %v577 = vunpack.c.l.b16 %v321
      %v578 = vunpack.c.l.b16 %v322
      %v579 = vunpack.c.l.b16 %v323
      %v580 = vunpack.c.l.b16 %v324
      %v581 = vunpack.c.l.b16 %v325
      %v582 = vunpack.c.l.b16 %v326
      %v583 = vunpack.c.l.b16 %v327
      %v584 = vunpack.c.l.b16 %v328
      %v585 = vunpack.c.l.b16 %v329
      %v586 = vunpack.c.l.b16 %v330
      %v587 = vunpack.c.l.b16 %v331
      %v588 = vunpack.c.l.b16 %v332
      %v589 = vunpack.c.l.b16 %v333
      %v590 = vunpack.c.l.b16 %v334
      %v591 = vunpack.c.l.b16 %v335
      %v592 = vunpack.c.l.b16 %v336
      %v593 = vunpack.c.l.b16 %v337
      %v594 = vunpack.c.l.b16 %v338
      %v595 = vunpack.c.l.b16 %v339
      %v596 = vunpack.c.l.b16 %v340
      %v597 = vunpack.c.l.b16 %v341
      %v598 = vunpack.c.l.b16 %v342
      %v599 = vunpack.c.l.b16 %v343
      %v600 = vunpack.c.l.b16 %v344
      %v601 = vunpack.c.l.b16 %v345
      %v602 = vunpack.c.l.b16 %v346
      %v603 = vunpack.c.l.b16 %v347
      %v604 = vunpack.c.l.b16 %v348
      %v605 = vunpack.c.l.b16 %v349
      %v606 = vunpack.c.l.b16 %v350
      %v607 = vpack.c.b16 %v480, %v479
      %v608 = vpack.c.b16 %v482, %v481
      %v609 = vpack.c.b16 %v484, %v483
      %v610 = vpack.c.b16 %v486, %v485
      %v611 = vpack.c.b16 %v488, %v487
      %v612 = vpack.c.b16 %v490, %v489
      %v613 = vpack.c.b16 %v492, %v491
      %v614 = vpack.c.b16 %v494, %v493
      %v615 = vpack.c.b16 %v496, %v495
      %v616 = vpack.c.b16 %v498, %v497
      %v617 = vpack.c.b16 %v500, %v499
      %v618 = vpack.c.b16 %v502, %v501
      %v619 = vpack.c.b16 %v504, %v503
      %v620 = vpack.c.b16 %v506, %v505
      %v621 = vpack.c.b16 %v508, %v507
      %v622 = vpack.c.b16 %v510, %v509
      %v623 = vpack.c.b16 %v512, %v511
      %v624 = vpack.c.b16 %v514, %v513
      %v625 = vpack.c.b16 %v516, %v515
      %v626 = vpack.c.b16 %v518, %v517
      %v627 = vpack.c.b16 %v520, %v519
      %v628 = vpack.c.b16 %v522, %v521
      %v629 = vpack.c.b16 %v524, %v523
      %v630 = vpack.c.b16 %v526, %v525
      %v631 = vpack.c.b16 %v528, %v527
      %v632 = vpack.c.b16 %v530, %v529
      %v633 = vpack.c.b16 %v532, %v531
      %v634 = vpack.c.b16 %v534, %v533
      %v635 = vpack.c.b16 %v536, %v535
      %v636 = vpack.c.b16 %v538, %v537
      %v637 = vpack.c.b16 %v540, %v539
      %v638 = vpack.c.b16 %v542, %v541
      %v639 = vpack.c.b16 %v544, %v543
      %v640 = vpack.c.b16 %v546, %v545
      %v641 = vpack.c.b16 %v548, %v547
      %v642 = vpack.c.b16 %v550, %v549
      %v643 = vpack.c.b16 %v552, %v551
      %v644 = vpack.c.b16 %v554, %v553
      %v645 = vpack.c.b16 %v556, %v555
      %v646 = vpack.c.b16 %v558, %v557
      %v647 = vpack.c.b16 %v560, %v559
      %v648 = vpack.c.b16 %v562, %v561
      %v649 = vpack.c.b16 %v564, %v563
      %v650 = vpack.c.b16 %v566, %v565
      %v651 = vpack.c.b16 %v568, %v567
      %v652 = vpack.c.b16 %v570, %v569
      %v653 = vpack.c.b16 %v572, %v571
      %v654 = vpack.c.b16 %v574, %v573
      %v655 = vpack.c.b16 %v576, %v575
      %v656 = vpack.c.b16 %v578, %v577
      %v657 = vpack.c.b16 %v580, %v579
      %v658 = vpack.c.b16 %v582, %v581
      %v659 = vpack.c.b16 %v584, %v583
      %v660 = vpack.c.b16 %v586, %v585
      %v661 = vpack.c.b16 %v588, %v587
      %v662 = vpack.c.b16 %v590, %v589
      %v663 = vpack.c.b16 %v592, %v591
      %v664 = vpack.c.b16 %v594, %v593
      %v665 = vpack.c.b16 %v596, %v595
      %v666 = vpack.c.b16 %v598, %v597
      %v667 = vpack.c.b16 %v600, %v599
      %v668 = vpack.c.b16 %v602, %v601
      %v669 = vpack.c.b16 %v604, %v603
      %v670 = vpack.c.b16 %v606, %v605
      %vm671 = vsmask.f32 256
      %v673 = vshrl.u32 0, 16
      %v675 = vrot.slane %v673, 7
      %v676 = vshll.u32 0, 16
      %v678 = vor.u32 %v675, %v676
      %v679 = vsel %vm671, %v675, %v678
      %v681 = vshrl.u32 %v607, 16
      %v683 = vrot.slane %v681, 7
      %v684 = vshll.u32 %v607, 16
      %v686 = vor.u32 %v683, %v684
      %v688 = vshrl.u32 %v608, 16
      %v690 = vrot.slane %v688, 7
      %v691 = vshll.u32 %v608, 16
      %v693 = vor.u32 %v690, %v691
      %v694 = vsel %vm671, %v683, %v693
      %v696 = vshrl.u32 %v609, 16
      %v698 = vrot.slane %v696, 7
      %v699 = vshll.u32 %v609, 16
      %v701 = vor.u32 %v698, %v699
      %v703 = vshrl.u32 %v610, 16
      %v705 = vrot.slane %v703, 7
      %v706 = vshll.u32 %v610, 16
      %v708 = vor.u32 %v705, %v706
      %v709 = vsel %vm671, %v698, %v708
      %v711 = vshrl.u32 %v611, 16
      %v713 = vrot.slane %v711, 7
      %v714 = vshll.u32 %v611, 16
      %v716 = vor.u32 %v713, %v714
      %v718 = vshrl.u32 %v612, 16
      %v720 = vrot.slane %v718, 7
      %v721 = vshll.u32 %v612, 16
      %v723 = vor.u32 %v720, %v721
      %v724 = vsel %vm671, %v713, %v723
      %v726 = vshrl.u32 %v613, 16
      %v728 = vrot.slane %v726, 7
      %v729 = vshll.u32 %v613, 16
      %v731 = vor.u32 %v728, %v729
      %v733 = vshrl.u32 %v614, 16
      %v735 = vrot.slane %v733, 7
      %v736 = vshll.u32 %v614, 16
      %v738 = vor.u32 %v735, %v736
      %v739 = vsel %vm671, %v728, %v738
      %v741 = vshrl.u32 %v615, 16
      %v743 = vrot.slane %v741, 7
      %v744 = vshll.u32 %v615, 16
      %v746 = vor.u32 %v743, %v744
      %v748 = vshrl.u32 %v616, 16
      %v750 = vrot.slane %v748, 7
      %v751 = vshll.u32 %v616, 16
      %v753 = vor.u32 %v750, %v751
      %v754 = vsel %vm671, %v743, %v753
      %v756 = vshrl.u32 %v617, 16
      %v758 = vrot.slane %v756, 7
      %v759 = vshll.u32 %v617, 16
      %v761 = vor.u32 %v758, %v759
      %v763 = vshrl.u32 %v618, 16
      %v765 = vrot.slane %v763, 7
      %v766 = vshll.u32 %v618, 16
      %v768 = vor.u32 %v765, %v766
      %v769 = vsel %vm671, %v758, %v768
      %v771 = vshrl.u32 %v619, 16
      %v773 = vrot.slane %v771, 7
      %v774 = vshll.u32 %v619, 16
      %v776 = vor.u32 %v773, %v774
      %v778 = vshrl.u32 %v620, 16
      %v780 = vrot.slane %v778, 7
      %v781 = vshll.u32 %v620, 16
      %v783 = vor.u32 %v780, %v781
      %v784 = vsel %vm671, %v773, %v783
      %v786 = vshrl.u32 %v621, 16
      %v788 = vrot.slane %v786, 7
      %v789 = vshll.u32 %v621, 16
      %v791 = vor.u32 %v788, %v789
      %v793 = vshrl.u32 %v622, 16
      %v795 = vrot.slane %v793, 7
      %v796 = vshll.u32 %v622, 16
      %v798 = vor.u32 %v795, %v796
      %v799 = vsel %vm671, %v788, %v798
      %v801 = vshrl.u32 %v623, 16
      %v803 = vrot.slane %v801, 7
      %v804 = vshll.u32 %v623, 16
      %v806 = vor.u32 %v803, %v804
      %v808 = vshrl.u32 %v624, 16
      %v810 = vrot.slane %v808, 7
      %v811 = vshll.u32 %v624, 16
      %v813 = vor.u32 %v810, %v811
      %v814 = vsel %vm671, %v803, %v813
      %v816 = vshrl.u32 %v625, 16
      %v818 = vrot.slane %v816, 7
      %v819 = vshll.u32 %v625, 16
      %v821 = vor.u32 %v818, %v819
      %v823 = vshrl.u32 %v626, 16
      %v825 = vrot.slane %v823, 7
      %v826 = vshll.u32 %v626, 16
      %v828 = vor.u32 %v825, %v826
      %v829 = vsel %vm671, %v818, %v828
      %v831 = vshrl.u32 %v627, 16
      %v833 = vrot.slane %v831, 7
      %v834 = vshll.u32 %v627, 16
      %v836 = vor.u32 %v833, %v834
      %v838 = vshrl.u32 %v628, 16
      %v840 = vrot.slane %v838, 7
      %v841 = vshll.u32 %v628, 16
      %v843 = vor.u32 %v840, %v841
      %v844 = vsel %vm671, %v833, %v843
      %v846 = vshrl.u32 %v629, 16
      %v848 = vrot.slane %v846, 7
      %v849 = vshll.u32 %v629, 16
      %v851 = vor.u32 %v848, %v849
      %v853 = vshrl.u32 %v630, 16
      %v855 = vrot.slane %v853, 7
      %v856 = vshll.u32 %v630, 16
      %v858 = vor.u32 %v855, %v856
      %v859 = vsel %vm671, %v848, %v858
      %v861 = vshrl.u32 %v631, 16
      %v863 = vrot.slane %v861, 7
      %v864 = vshll.u32 %v631, 16
      %v866 = vor.u32 %v863, %v864
      %v868 = vshrl.u32 %v632, 16
      %v870 = vrot.slane %v868, 7
      %v871 = vshll.u32 %v632, 16
      %v873 = vor.u32 %v870, %v871
      %v874 = vsel %vm671, %v863, %v873
      %v876 = vshrl.u32 %v633, 16
      %v878 = vrot.slane %v876, 7
      %v879 = vshll.u32 %v633, 16
      %v881 = vor.u32 %v878, %v879
      %v883 = vshrl.u32 %v634, 16
      %v885 = vrot.slane %v883, 7
      %v886 = vshll.u32 %v634, 16
      %v888 = vor.u32 %v885, %v886
      %v889 = vsel %vm671, %v878, %v888
      %v891 = vshrl.u32 %v635, 16
      %v893 = vrot.slane %v891, 7
      %v894 = vshll.u32 %v635, 16
      %v896 = vor.u32 %v893, %v894
      %v898 = vshrl.u32 %v636, 16
      %v900 = vrot.slane %v898, 7
      %v901 = vshll.u32 %v636, 16
      %v903 = vor.u32 %v900, %v901
      %v904 = vsel %vm671, %v893, %v903
      %v906 = vshrl.u32 %v637, 16
      %v908 = vrot.slane %v906, 7
      %v909 = vshll.u32 %v637, 16
      %v911 = vor.u32 %v908, %v909
      %v913 = vshrl.u32 %v638, 16
      %v915 = vrot.slane %v913, 7
      %v916 = vshll.u32 %v638, 16
      %v918 = vor.u32 %v915, %v916
      %v919 = vsel %vm671, %v908, %v918
      %v921 = vshrl.u32 %v639, 16
      %v923 = vrot.slane %v921, 7
      %v924 = vshll.u32 %v639, 16
      %v926 = vor.u32 %v923, %v924
      %v928 = vshrl.u32 %v640, 16
      %v930 = vrot.slane %v928, 7
      %v931 = vshll.u32 %v640, 16
      %v933 = vor.u32 %v930, %v931
      %v934 = vsel %vm671, %v923, %v933
      %v936 = vshrl.u32 %v641, 16
      %v938 = vrot.slane %v936, 7
      %v939 = vshll.u32 %v641, 16
      %v941 = vor.u32 %v938, %v939
      %v943 = vshrl.u32 %v642, 16
      %v945 = vrot.slane %v943, 7
      %v946 = vshll.u32 %v642, 16
      %v948 = vor.u32 %v945, %v946
      %v949 = vsel %vm671, %v938, %v948
      %v951 = vshrl.u32 %v643, 16
      %v953 = vrot.slane %v951, 7
      %v954 = vshll.u32 %v643, 16
      %v956 = vor.u32 %v953, %v954
      %v958 = vshrl.u32 %v644, 16
      %v960 = vrot.slane %v958, 7
      %v961 = vshll.u32 %v644, 16
      %v963 = vor.u32 %v960, %v961
      %v964 = vsel %vm671, %v953, %v963
      %v966 = vshrl.u32 %v645, 16
      %v968 = vrot.slane %v966, 7
      %v969 = vshll.u32 %v645, 16
      %v971 = vor.u32 %v968, %v969
      %v973 = vshrl.u32 %v646, 16
      %v975 = vrot.slane %v973, 7
      %v976 = vshll.u32 %v646, 16
      %v978 = vor.u32 %v975, %v976
      %v979 = vsel %vm671, %v968, %v978
      %v981 = vshrl.u32 %v647, 16
      %v983 = vrot.slane %v981, 7
      %v984 = vshll.u32 %v647, 16
      %v986 = vor.u32 %v983, %v984
      %v988 = vshrl.u32 %v648, 16
      %v990 = vrot.slane %v988, 7
      %v991 = vshll.u32 %v648, 16
      %v993 = vor.u32 %v990, %v991
      %v994 = vsel %vm671, %v983, %v993
      %v996 = vshrl.u32 %v649, 16
      %v998 = vrot.slane %v996, 7
      %v999 = vshll.u32 %v649, 16
      %v1001 = vor.u32 %v998, %v999
      %v1003 = vshrl.u32 %v650, 16
      %v1005 = vrot.slane %v1003, 7
      %v1006 = vshll.u32 %v650, 16
      %v1008 = vor.u32 %v1005, %v1006
      %v1009 = vsel %vm671, %v998, %v1008
      %v1011 = vshrl.u32 %v651, 16
      %v1013 = vrot.slane %v1011, 7
      %v1014 = vshll.u32 %v651, 16
      %v1016 = vor.u32 %v1013, %v1014
      %v1018 = vshrl.u32 %v652, 16
      %v1020 = vrot.slane %v1018, 7
      %v1021 = vshll.u32 %v652, 16
      %v1023 = vor.u32 %v1020, %v1021
      %v1024 = vsel %vm671, %v1013, %v1023
      %v1026 = vshrl.u32 %v653, 16
      %v1028 = vrot.slane %v1026, 7
      %v1029 = vshll.u32 %v653, 16
      %v1031 = vor.u32 %v1028, %v1029
      %v1033 = vshrl.u32 %v654, 16
      %v1035 = vrot.slane %v1033, 7
      %v1036 = vshll.u32 %v654, 16
      %v1038 = vor.u32 %v1035, %v1036
      %v1039 = vsel %vm671, %v1028, %v1038
      %v1041 = vshrl.u32 %v655, 16
      %v1043 = vrot.slane %v1041, 7
      %v1044 = vshll.u32 %v655, 16
      %v1046 = vor.u32 %v1043, %v1044
      %v1048 = vshrl.u32 %v656, 16
      %v1050 = vrot.slane %v1048, 7
      %v1051 = vshll.u32 %v656, 16
      %v1053 = vor.u32 %v1050, %v1051
      %v1054 = vsel %vm671, %v1043, %v1053
      %v1056 = vshrl.u32 %v657, 16
      %v1058 = vrot.slane %v1056, 7
      %v1059 = vshll.u32 %v657, 16
      %v1061 = vor.u32 %v1058, %v1059
      %v1063 = vshrl.u32 %v658, 16
      %v1065 = vrot.slane %v1063, 7
      %v1066 = vshll.u32 %v658, 16
      %v1068 = vor.u32 %v1065, %v1066
      %v1069 = vsel %vm671, %v1058, %v1068
      %v1071 = vshrl.u32 %v659, 16
      %v1073 = vrot.slane %v1071, 7
      %v1074 = vshll.u32 %v659, 16
      %v1076 = vor.u32 %v1073, %v1074
      %v1078 = vshrl.u32 %v660, 16
      %v1080 = vrot.slane %v1078, 7
      %v1081 = vshll.u32 %v660, 16
      %v1083 = vor.u32 %v1080, %v1081
      %v1084 = vsel %vm671, %v1073, %v1083
      %v1086 = vshrl.u32 %v661, 16
      %v1088 = vrot.slane %v1086, 7
      %v1089 = vshll.u32 %v661, 16
      %v1091 = vor.u32 %v1088, %v1089
      %v1093 = vshrl.u32 %v662, 16
      %v1095 = vrot.slane %v1093, 7
      %v1096 = vshll.u32 %v662, 16
      %v1098 = vor.u32 %v1095, %v1096
      %v1099 = vsel %vm671, %v1088, %v1098
      %v1101 = vshrl.u32 %v663, 16
      %v1103 = vrot.slane %v1101, 7
      %v1104 = vshll.u32 %v663, 16
      %v1106 = vor.u32 %v1103, %v1104
      %v1108 = vshrl.u32 %v664, 16
      %v1110 = vrot.slane %v1108, 7
      %v1111 = vshll.u32 %v664, 16
      %v1113 = vor.u32 %v1110, %v1111
      %v1114 = vsel %vm671, %v1103, %v1113
      %v1116 = vshrl.u32 %v665, 16
      %v1118 = vrot.slane %v1116, 7
      %v1119 = vshll.u32 %v665, 16
      %v1121 = vor.u32 %v1118, %v1119
      %v1123 = vshrl.u32 %v666, 16
      %v1125 = vrot.slane %v1123, 7
      %v1126 = vshll.u32 %v666, 16
      %v1128 = vor.u32 %v1125, %v1126
      %v1129 = vsel %vm671, %v1118, %v1128
      %v1131 = vshrl.u32 %v667, 16
      %v1133 = vrot.slane %v1131, 7
      %v1134 = vshll.u32 %v667, 16
      %v1136 = vor.u32 %v1133, %v1134
      %v1138 = vshrl.u32 %v668, 16
      %v1140 = vrot.slane %v1138, 7
      %v1141 = vshll.u32 %v668, 16
      %v1143 = vor.u32 %v1140, %v1141
      %v1144 = vsel %vm671, %v1133, %v1143
      %v1146 = vshrl.u32 %v669, 16
      %v1148 = vrot.slane %v1146, 7
      %v1149 = vshll.u32 %v669, 16
      %v1151 = vor.u32 %v1148, %v1149
      %v1153 = vshrl.u32 %v670, 16
      %v1155 = vrot.slane %v1153, 7
      %v1156 = vshll.u32 %v670, 16
      %v1158 = vor.u32 %v1155, %v1156
      %v1159 = vsel %vm671, %v1148, %v1158
      %vm1226 = vcmask 1040384
      %vm1227 = vmand %vm1226, %vm671
      %v1228 = vsel %vm1227, 0, %v678
      %v1229 = vsel %vm1227, 0, %v686
      %v1230 = vsel %vm1227, 0, %v701
      %v1231 = vsel %vm1227, 0, %v716
      %v1232 = vsel %vm1227, 0, %v731
      %v1233 = vsel %vm1227, 0, %v746
      %v1234 = vsel %vm1227, 0, %v761
      %v1235 = vsel %vm1227, 0, %v776
      %v1236 = vsel %vm1227, 0, %v791
      %v1237 = vsel %vm1227, 0, %v806
      %v1238 = vsel %vm1227, 0, %v821
      %v1239 = vsel %vm1227, 0, %v836
      %v1240 = vsel %vm1227, 0, %v851
      %v1241 = vsel %vm1227, 0, %v866
      %v1242 = vsel %vm1227, 0, %v881
      %v1243 = vsel %vm1227, 0, %v896
      %v1244 = vsel %vm1227, 0, %v911
      %v1245 = vsel %vm1227, 0, %v926
      %v1246 = vsel %vm1227, 0, %v941
      %v1247 = vsel %vm1227, 0, %v956
      %v1248 = vsel %vm1227, 0, %v971
      %v1249 = vsel %vm1227, 0, %v986
      %v1250 = vsel %vm1227, 0, %v1001
      %v1251 = vsel %vm1227, 0, %v1016
      %v1252 = vsel %vm1227, 0, %v1031
      %v1253 = vsel %vm1227, 0, %v1046
      %v1254 = vsel %vm1227, 0, %v1061
      %v1255 = vsel %vm1227, 0, %v1076
      %v1256 = vsel %vm1227, 0, %v1091
      %v1257 = vsel %vm1227, 0, %v1106
      %v1258 = vsel %vm1227, 0, %v1121
      %v1259 = vsel %vm1227, 0, %v1136
      %v1260 = vsel %vm1227, 0, %v1151
      %v1261 = vsel %vm1227, %v675, 0
      %v1262 = vsel %vm1227, %v690, 0
      %v1263 = vsel %vm1227, %v705, 0
      %v1264 = vsel %vm1227, %v720, 0
      %v1265 = vsel %vm1227, %v735, 0
      %v1266 = vsel %vm1227, %v750, 0
      %v1267 = vsel %vm1227, %v765, 0
      %v1268 = vsel %vm1227, %v780, 0
      %v1269 = vsel %vm1227, %v795, 0
      %v1270 = vsel %vm1227, %v810, 0
      %v1271 = vsel %vm1227, %v825, 0
      %v1272 = vsel %vm1227, %v840, 0
      %v1273 = vsel %vm1227, %v855, 0
      %v1274 = vsel %vm1227, %v870, 0
      %v1275 = vsel %vm1227, %v885, 0
      %v1276 = vsel %vm1227, %v900, 0
      %v1277 = vsel %vm1227, %v915, 0
      %v1278 = vsel %vm1227, %v930, 0
      %v1279 = vsel %vm1227, %v945, 0
      %v1280 = vsel %vm1227, %v960, 0
      %v1281 = vsel %vm1227, %v975, 0
      %v1282 = vsel %vm1227, %v990, 0
      %v1283 = vsel %vm1227, %v1005, 0
      %v1284 = vsel %vm1227, %v1020, 0
      %v1285 = vsel %vm1227, %v1035, 0
      %v1286 = vsel %vm1227, %v1050, 0
      %v1287 = vsel %vm1227, %v1065, 0
      %v1288 = vsel %vm1227, %v1080, 0
      %v1289 = vsel %vm1227, %v1095, 0
      %v1290 = vsel %vm1227, %v1110, 0
      %v1291 = vsel %vm1227, %v1125, 0
      %v1292 = vsel %vm1227, %v1140, 0
      %v1293 = vsel %vm1227, %v1155, 0
      %v1360 = vunpack.c.l.b16 %v1228
      %v1361 = vunpack.c.h.b16 %v1228
      %v1362 = vunpack.c.l.b16 %v679
      %v1363 = vunpack.c.h.b16 %v679
      %v1364 = vunpack.c.l.b16 %v1261
      %v1365 = vunpack.c.l.b16 %v1229
      %v1366 = vunpack.c.h.b16 %v1229
      %v1367 = vunpack.c.l.b16 %v694
      %v1368 = vunpack.c.h.b16 %v694
      %v1369 = vunpack.c.l.b16 %v1262
      %v1370 = vunpack.c.l.b16 %v1230
      %v1371 = vunpack.c.h.b16 %v1230
      %v1372 = vunpack.c.l.b16 %v709
      %v1373 = vunpack.c.h.b16 %v709
      %v1374 = vunpack.c.l.b16 %v1263
      %v1375 = vunpack.c.l.b16 %v1231
      %v1376 = vunpack.c.h.b16 %v1231
      %v1377 = vunpack.c.l.b16 %v724
      %v1378 = vunpack.c.h.b16 %v724
      %v1379 = vunpack.c.l.b16 %v1264
      %v1380 = vunpack.c.l.b16 %v1232
      %v1381 = vunpack.c.h.b16 %v1232
      %v1382 = vunpack.c.l.b16 %v739
      %v1383 = vunpack.c.h.b16 %v739
      %v1384 = vunpack.c.l.b16 %v1265
      %v1385 = vunpack.c.l.b16 %v1233
      %v1386 = vunpack.c.h.b16 %v1233
      %v1387 = vunpack.c.l.b16 %v754
      %v1388 = vunpack.c.h.b16 %v754
      %v1389 = vunpack.c.l.b16 %v1266
      %v1390 = vunpack.c.l.b16 %v1234
      %v1391 = vunpack.c.h.b16 %v1234
      %v1392 = vunpack.c.l.b16 %v769
      %v1393 = vunpack.c.h.b16 %v769
      %v1394 = vunpack.c.l.b16 %v1267
      %v1395 = vunpack.c.l.b16 %v1235
      %v1396 = vunpack.c.h.b16 %v1235
      %v1397 = vunpack.c.l.b16 %v784
      %v1398 = vunpack.c.h.b16 %v784
      %v1399 = vunpack.c.l.b16 %v1268
      %v1400 = vunpack.c.l.b16 %v1236
      %v1401 = vunpack.c.h.b16 %v1236
      %v1402 = vunpack.c.l.b16 %v799
      %v1403 = vunpack.c.h.b16 %v799
      %v1404 = vunpack.c.l.b16 %v1269
      %v1405 = vunpack.c.l.b16 %v1237
      %v1406 = vunpack.c.h.b16 %v1237
      %v1407 = vunpack.c.l.b16 %v814
      %v1408 = vunpack.c.h.b16 %v814
      %v1409 = vunpack.c.l.b16 %v1270
      %v1410 = vunpack.c.l.b16 %v1238
      %v1411 = vunpack.c.h.b16 %v1238
      %v1412 = vunpack.c.l.b16 %v829
      %v1413 = vunpack.c.h.b16 %v829
      %v1414 = vunpack.c.l.b16 %v1271
      %v1415 = vunpack.c.l.b16 %v1239
      %v1416 = vunpack.c.h.b16 %v1239
      %v1417 = vunpack.c.l.b16 %v844
      %v1418 = vunpack.c.h.b16 %v844
      %v1419 = vunpack.c.l.b16 %v1272
      %v1420 = vunpack.c.l.b16 %v1240
      %v1421 = vunpack.c.h.b16 %v1240
      %v1422 = vunpack.c.l.b16 %v859
      %v1423 = vunpack.c.h.b16 %v859
      %v1424 = vunpack.c.l.b16 %v1273
      %v1425 = vunpack.c.l.b16 %v1241
      %v1426 = vunpack.c.h.b16 %v1241
      %v1427 = vunpack.c.l.b16 %v874
      %v1428 = vunpack.c.h.b16 %v874
      %v1429 = vunpack.c.l.b16 %v1274
      %v1430 = vunpack.c.l.b16 %v1242
      %v1431 = vunpack.c.h.b16 %v1242
      %v1432 = vunpack.c.l.b16 %v889
      %v1433 = vunpack.c.h.b16 %v889
      %v1434 = vunpack.c.l.b16 %v1275
      %v1435 = vunpack.c.l.b16 %v1243
      %v1436 = vunpack.c.h.b16 %v1243
      %v1437 = vunpack.c.l.b16 %v904
      %v1438 = vunpack.c.h.b16 %v904
      %v1439 = vunpack.c.l.b16 %v1276
      %v1440 = vunpack.c.l.b16 %v1244
      %v1441 = vunpack.c.h.b16 %v1244
      %v1442 = vunpack.c.l.b16 %v919
      %v1443 = vunpack.c.h.b16 %v919
      %v1444 = vunpack.c.l.b16 %v1277
      %v1445 = vunpack.c.l.b16 %v1245
      %v1446 = vunpack.c.h.b16 %v1245
      %v1447 = vunpack.c.l.b16 %v934
      %v1448 = vunpack.c.h.b16 %v934
      %v1449 = vunpack.c.l.b16 %v1278
      %v1450 = vunpack.c.l.b16 %v1246
      %v1451 = vunpack.c.h.b16 %v1246
      %v1452 = vunpack.c.l.b16 %v949
      %v1453 = vunpack.c.h.b16 %v949
      %v1454 = vunpack.c.l.b16 %v1279
      %v1455 = vunpack.c.l.b16 %v1247
      %v1456 = vunpack.c.h.b16 %v1247
      %v1457 = vunpack.c.l.b16 %v964
      %v1458 = vunpack.c.h.b16 %v964
      %v1459 = vunpack.c.l.b16 %v1280
      %v1460 = vunpack.c.l.b16 %v1248
      %v1461 = vunpack.c.h.b16 %v1248
      %v1462 = vunpack.c.l.b16 %v979
      %v1463 = vunpack.c.h.b16 %v979
      %v1464 = vunpack.c.l.b16 %v1281
      %v1465 = vunpack.c.l.b16 %v1249
      %v1466 = vunpack.c.h.b16 %v1249
      %v1467 = vunpack.c.l.b16 %v994
      %v1468 = vunpack.c.h.b16 %v994
      %v1469 = vunpack.c.l.b16 %v1282
      %v1470 = vunpack.c.l.b16 %v1250
      %v1471 = vunpack.c.h.b16 %v1250
      %v1472 = vunpack.c.l.b16 %v1009
      %v1473 = vunpack.c.h.b16 %v1009
      %v1474 = vunpack.c.l.b16 %v1283
      %v1475 = vunpack.c.l.b16 %v1251
      %v1476 = vunpack.c.h.b16 %v1251
      %v1477 = vunpack.c.l.b16 %v1024
      %v1478 = vunpack.c.h.b16 %v1024
      %v1479 = vunpack.c.l.b16 %v1284
      %v1480 = vunpack.c.l.b16 %v1252
      %v1481 = vunpack.c.h.b16 %v1252
      %v1482 = vunpack.c.l.b16 %v1039
      %v1483 = vunpack.c.h.b16 %v1039
      %v1484 = vunpack.c.l.b16 %v1285
      %v1485 = vunpack.c.l.b16 %v1253
      %v1486 = vunpack.c.h.b16 %v1253
      %v1487 = vunpack.c.l.b16 %v1054
      %v1488 = vunpack.c.h.b16 %v1054
      %v1489 = vunpack.c.l.b16 %v1286
      %v1490 = vunpack.c.l.b16 %v1254
      %v1491 = vunpack.c.h.b16 %v1254
      %v1492 = vunpack.c.l.b16 %v1069
      %v1493 = vunpack.c.h.b16 %v1069
      %v1494 = vunpack.c.l.b16 %v1287
      %v1495 = vunpack.c.l.b16 %v1255
      %v1496 = vunpack.c.h.b16 %v1255
      %v1497 = vunpack.c.l.b16 %v1084
      %v1498 = vunpack.c.h.b16 %v1084
      %v1499 = vunpack.c.l.b16 %v1288
      %v1500 = vunpack.c.l.b16 %v1256
      %v1501 = vunpack.c.h.b16 %v1256
      %v1502 = vunpack.c.l.b16 %v1099
      %v1503 = vunpack.c.h.b16 %v1099
      %v1504 = vunpack.c.l.b16 %v1289
      %v1505 = vunpack.c.l.b16 %v1257
      %v1506 = vunpack.c.h.b16 %v1257
      %v1507 = vunpack.c.l.b16 %v1114
      %v1508 = vunpack.c.h.b16 %v1114
      %v1509 = vunpack.c.l.b16 %v1290
      %v1510 = vunpack.c.l.b16 %v1258
      %v1511 = vunpack.c.h.b16 %v1258
      %v1512 = vunpack.c.l.b16 %v1129
      %v1513 = vunpack.c.h.b16 %v1129
      %v1514 = vunpack.c.l.b16 %v1291
      %v1515 = vunpack.c.l.b16 %v1259
      %v1516 = vunpack.c.h.b16 %v1259
      %v1517 = vunpack.c.l.b16 %v1144
      %v1518 = vunpack.c.h.b16 %v1144
      %v1519 = vunpack.c.l.b16 %v1292
      %v1520 = vunpack.c.l.b16 %v1260
      %v1521 = vunpack.c.h.b16 %v1260
      %v1522 = vunpack.c.l.b16 %v1159
      %v1523 = vunpack.c.h.b16 %v1159
      %v1524 = vunpack.c.l.b16 %v1293
      %v1525 = vpack.c.b16 %v1360, %v1360
      %v1526 = vpack.c.b16 %v1361, %v1361
      %v1527 = vpack.c.b16 %v1362, %v1362
      %v1528 = vpack.c.b16 %v1363, %v1363
      %v1529 = vpack.c.b16 %v1364, %v1364
      %v1530 = vpack.c.b16 %v1365, %v1365
      %v1531 = vpack.c.b16 %v1366, %v1366
      %v1532 = vpack.c.b16 %v1367, %v1367
      %v1533 = vpack.c.b16 %v1368, %v1368
      %v1534 = vpack.c.b16 %v1369, %v1369
      %v1535 = vpack.c.b16 %v1370, %v1370
      %v1536 = vpack.c.b16 %v1371, %v1371
      %v1537 = vpack.c.b16 %v1372, %v1372
      %v1538 = vpack.c.b16 %v1373, %v1373
      %v1539 = vpack.c.b16 %v1374, %v1374
      %v1540 = vpack.c.b16 %v1375, %v1375
      %v1541 = vpack.c.b16 %v1376, %v1376
      %v1542 = vpack.c.b16 %v1377, %v1377
      %v1543 = vpack.c.b16 %v1378, %v1378
      %v1544 = vpack.c.b16 %v1379, %v1379
      %v1545 = vpack.c.b16 %v1380, %v1380
      %v1546 = vpack.c.b16 %v1381, %v1381
      %v1547 = vpack.c.b16 %v1382, %v1382
      %v1548 = vpack.c.b16 %v1383, %v1383
      %v1549 = vpack.c.b16 %v1384, %v1384
      %v1550 = vpack.c.b16 %v1385, %v1385
      %v1551 = vpack.c.b16 %v1386, %v1386
      %v1552 = vpack.c.b16 %v1387, %v1387
      %v1553 = vpack.c.b16 %v1388, %v1388
      %v1554 = vpack.c.b16 %v1389, %v1389
      %v1555 = vpack.c.b16 %v1390, %v1390
      %v1556 = vpack.c.b16 %v1391, %v1391
      %v1557 = vpack.c.b16 %v1392, %v1392
      %v1558 = vpack.c.b16 %v1393, %v1393
      %v1559 = vpack.c.b16 %v1394, %v1394
      %v1560 = vpack.c.b16 %v1395, %v1395
      %v1561 = vpack.c.b16 %v1396, %v1396
      %v1562 = vpack.c.b16 %v1397, %v1397
      %v1563 = vpack.c.b16 %v1398, %v1398
      %v1564 = vpack.c.b16 %v1399, %v1399
      %v1565 = vpack.c.b16 %v1400, %v1400
      %v1566 = vpack.c.b16 %v1401, %v1401
      %v1567 = vpack.c.b16 %v1402, %v1402
      %v1568 = vpack.c.b16 %v1403, %v1403
      %v1569 = vpack.c.b16 %v1404, %v1404
      %v1570 = vpack.c.b16 %v1405, %v1405
      %v1571 = vpack.c.b16 %v1406, %v1406
      %v1572 = vpack.c.b16 %v1407, %v1407
      %v1573 = vpack.c.b16 %v1408, %v1408
      %v1574 = vpack.c.b16 %v1409, %v1409
      %v1575 = vpack.c.b16 %v1410, %v1410
      %v1576 = vpack.c.b16 %v1411, %v1411
      %v1577 = vpack.c.b16 %v1412, %v1412
      %v1578 = vpack.c.b16 %v1413, %v1413
      %v1579 = vpack.c.b16 %v1414, %v1414
      %v1580 = vpack.c.b16 %v1415, %v1415
      %v1581 = vpack.c.b16 %v1416, %v1416
      %v1582 = vpack.c.b16 %v1417, %v1417
      %v1583 = vpack.c.b16 %v1418, %v1418
      %v1584 = vpack.c.b16 %v1419, %v1419
      %v1585 = vpack.c.b16 %v1420, %v1420
      %v1586 = vpack.c.b16 %v1421, %v1421
      %v1587 = vpack.c.b16 %v1422, %v1422
      %v1588 = vpack.c.b16 %v1423, %v1423
      %v1589 = vpack.c.b16 %v1424, %v1424
      %v1590 = vpack.c.b16 %v1425, %v1425
      %v1591 = vpack.c.b16 %v1426, %v1426
      %v1592 = vpack.c.b16 %v1427, %v1427
      %v1593 = vpack.c.b16 %v1428, %v1428
      %v1594 = vpack.c.b16 %v1429, %v1429
      %v1595 = vpack.c.b16 %v1430, %v1430
      %v1596 = vpack.c.b16 %v1431, %v1431
      %v1597 = vpack.c.b16 %v1432, %v1432
      %v1598 = vpack.c.b16 %v1433, %v1433
      %v1599 = vpack.c.b16 %v1434, %v1434
      %v1600 = vpack.c.b16 %v1435, %v1435
      %v1601 = vpack.c.b16 %v1436, %v1436
      %v1602 = vpack.c.b16 %v1437, %v1437
      %v1603 = vpack.c.b16 %v1438, %v1438
      %v1604 = vpack.c.b16 %v1439, %v1439
      %v1605 = vpack.c.b16 %v1440, %v1440
      %v1606 = vpack.c.b16 %v1441, %v1441
      %v1607 = vpack.c.b16 %v1442, %v1442
      %v1608 = vpack.c.b16 %v1443, %v1443
      %v1609 = vpack.c.b16 %v1444, %v1444
      %v1610 = vpack.c.b16 %v1445, %v1445
      %v1611 = vpack.c.b16 %v1446, %v1446
      %v1612 = vpack.c.b16 %v1447, %v1447
      %v1613 = vpack.c.b16 %v1448, %v1448
      %v1614 = vpack.c.b16 %v1449, %v1449
      %v1615 = vpack.c.b16 %v1450, %v1450
      %v1616 = vpack.c.b16 %v1451, %v1451
      %v1617 = vpack.c.b16 %v1452, %v1452
      %v1618 = vpack.c.b16 %v1453, %v1453
      %v1619 = vpack.c.b16 %v1454, %v1454
      %v1620 = vpack.c.b16 %v1455, %v1455
      %v1621 = vpack.c.b16 %v1456, %v1456
      %v1622 = vpack.c.b16 %v1457, %v1457
      %v1623 = vpack.c.b16 %v1458, %v1458
      %v1624 = vpack.c.b16 %v1459, %v1459
      %v1625 = vpack.c.b16 %v1460, %v1460
      %v1626 = vpack.c.b16 %v1461, %v1461
      %v1627 = vpack.c.b16 %v1462, %v1462
      %v1628 = vpack.c.b16 %v1463, %v1463
      %v1629 = vpack.c.b16 %v1464, %v1464
      %v1630 = vpack.c.b16 %v1465, %v1465
      %v1631 = vpack.c.b16 %v1466, %v1466
      %v1632 = vpack.c.b16 %v1467, %v1467
      %v1633 = vpack.c.b16 %v1468, %v1468
      %v1634 = vpack.c.b16 %v1469, %v1469
      %v1635 = vpack.c.b16 %v1470, %v1470
      %v1636 = vpack.c.b16 %v1471, %v1471
      %v1637 = vpack.c.b16 %v1472, %v1472
      %v1638 = vpack.c.b16 %v1473, %v1473
      %v1639 = vpack.c.b16 %v1474, %v1474
      %v1640 = vpack.c.b16 %v1475, %v1475
      %v1641 = vpack.c.b16 %v1476, %v1476
      %v1642 = vpack.c.b16 %v1477, %v1477
      %v1643 = vpack.c.b16 %v1478, %v1478
      %v1644 = vpack.c.b16 %v1479, %v1479
      %v1645 = vpack.c.b16 %v1480, %v1480
      %v1646 = vpack.c.b16 %v1481, %v1481
      %v1647 = vpack.c.b16 %v1482, %v1482
      %v1648 = vpack.c.b16 %v1483, %v1483
      %v1649 = vpack.c.b16 %v1484, %v1484
      %v1650 = vpack.c.b16 %v1485, %v1485
      %v1651 = vpack.c.b16 %v1486, %v1486
      %v1652 = vpack.c.b16 %v1487, %v1487
      %v1653 = vpack.c.b16 %v1488, %v1488
      %v1654 = vpack.c.b16 %v1489, %v1489
      %v1655 = vpack.c.b16 %v1490, %v1490
      %v1656 = vpack.c.b16 %v1491, %v1491
      %v1657 = vpack.c.b16 %v1492, %v1492
      %v1658 = vpack.c.b16 %v1493, %v1493
      %v1659 = vpack.c.b16 %v1494, %v1494
      %v1660 = vpack.c.b16 %v1495, %v1495
      %v1661 = vpack.c.b16 %v1496, %v1496
      %v1662 = vpack.c.b16 %v1497, %v1497
      %v1663 = vpack.c.b16 %v1498, %v1498
      %v1664 = vpack.c.b16 %v1499, %v1499
      %v1665 = vpack.c.b16 %v1500, %v1500
      %v1666 = vpack.c.b16 %v1501, %v1501
      %v1667 = vpack.c.b16 %v1502, %v1502
      %v1668 = vpack.c.b16 %v1503, %v1503
      %v1669 = vpack.c.b16 %v1504, %v1504
      %v1670 = vpack.c.b16 %v1505, %v1505
      %v1671 = vpack.c.b16 %v1506, %v1506
      %v1672 = vpack.c.b16 %v1507, %v1507
      %v1673 = vpack.c.b16 %v1508, %v1508
      %v1674 = vpack.c.b16 %v1509, %v1509
      %v1675 = vpack.c.b16 %v1510, %v1510
      %v1676 = vpack.c.b16 %v1511, %v1511
      %v1677 = vpack.c.b16 %v1512, %v1512
      %v1678 = vpack.c.b16 %v1513, %v1513
      %v1679 = vpack.c.b16 %v1514, %v1514
      %v1680 = vpack.c.b16 %v1515, %v1515
      %v1681 = vpack.c.b16 %v1516, %v1516
      %v1682 = vpack.c.b16 %v1517, %v1517
      %v1683 = vpack.c.b16 %v1518, %v1518
      %v1684 = vpack.c.b16 %v1519, %v1519
      %v1685 = vpack.c.b16 %v1520, %v1520
      %v1686 = vpack.c.b16 %v1521, %v1521
      %v1687 = vpack.c.b16 %v1522, %v1522
      %v1688 = vpack.c.b16 %v1523, %v1523
      %v1689 = vpack.c.b16 %v1524, %v1524
      %vm1855 = vcmask 44032
      %1856 = vst.msk [vmem:[#allocation2] sm:$0xf] %vm1855, %v1525
      %1857 = vst.msk [vmem:[#allocation2 + $0x4] sm:$0xf] %vm1855, %v1526
      %1858 = vst.msk [vmem:[#allocation2 + $0x8] sm:$0xf] %vm1855, %v1527
      %1859 = vst.msk [vmem:[#allocation2 + $0xc] sm:$0xf] %vm1855, %v1528
      %vm1860 = vcmask 40960
      %1861 = vst.msk [vmem:[#allocation2 + $0x10] sm:$0x1] %vm1860, %v1529
      %1862 = vst.msk [vmem:[#allocation2 + $0x14] sm:$0xf] %vm1855, %v1530
      %1863 = vst.msk [vmem:[#allocation2 + $0x18] sm:$0xf] %vm1855, %v1531
      %1864 = vst.msk [vmem:[#allocation2 + $0x1c] sm:$0xf] %vm1855, %v1532
      %1865 = vst.msk [vmem:[#allocation2 + $0x20] sm:$0xf] %vm1855, %v1533
      %1866 = vst.msk [vmem:[#allocation2 + $0x24] sm:$0x1] %vm1860, %v1534
      %1867 = vst.msk [vmem:[#allocation2 + $0x28] sm:$0xf] %vm1855, %v1535
      %1868 = vst.msk [vmem:[#allocation2 + $0x2c] sm:$0xf] %vm1855, %v1536
      %1869 = vst.msk [vmem:[#allocation2 + $0x30] sm:$0xf] %vm1855, %v1537
      %1870 = vst.msk [vmem:[#allocation2 + $0x34] sm:$0xf] %vm1855, %v1538
      %1871 = vst.msk [vmem:[#allocation2 + $0x38] sm:$0x1] %vm1860, %v1539
      %1872 = vst.msk [vmem:[#allocation2 + $0x3c] sm:$0xf] %vm1855, %v1540
      %1873 = vst.msk [vmem:[#allocation2 + $0x40] sm:$0xf] %vm1855, %v1541
      %1874 = vst.msk [vmem:[#allocation2 + $0x44] sm:$0xf] %vm1855, %v1542
      %1875 = vst.msk [vmem:[#allocation2 + $0x48] sm:$0xf] %vm1855, %v1543
      %1876 = vst.msk [vmem:[#allocation2 + $0x4c] sm:$0x1] %vm1860, %v1544
      %1877 = vst.msk [vmem:[#allocation2 + $0x50] sm:$0xf] %vm1855, %v1545
      %1878 = vst.msk [vmem:[#allocation2 + $0x54] sm:$0xf] %vm1855, %v1546
      %1879 = vst.msk [vmem:[#allocation2 + $0x58] sm:$0xf] %vm1855, %v1547
      %1880 = vst.msk [vmem:[#allocation2 + $0x5c] sm:$0xf] %vm1855, %v1548
      %1881 = vst.msk [vmem:[#allocation2 + $0x60] sm:$0x1] %vm1860, %v1549
      %1882 = vst.msk [vmem:[#allocation2 + $0x64] sm:$0xf] %vm1855, %v1550
      %1883 = vst.msk [vmem:[#allocation2 + $0x68] sm:$0xf] %vm1855, %v1551
      %1884 = vst.msk [vmem:[#allocation2 + $0x6c] sm:$0xf] %vm1855, %v1552
      %1885 = vst.msk [vmem:[#allocation2 + $0x70] sm:$0xf] %vm1855, %v1553
      %1886 = vst.msk [vmem:[#allocation2 + $0x74] sm:$0x1] %vm1860, %v1554
      %1887 = vst.msk [vmem:[#allocation2 + $0x78] sm:$0xf] %vm1855, %v1555
      %1888 = vst.msk [vmem:[#allocation2 + $0x7c] sm:$0xf] %vm1855, %v1556
      %1889 = vst.msk [vmem:[#allocation2 + $0x80] sm:$0xf] %vm1855, %v1557
      %1890 = vst.msk [vmem:[#allocation2 + $0x84] sm:$0xf] %vm1855, %v1558
      %1891 = vst.msk [vmem:[#allocation2 + $0x88] sm:$0x1] %vm1860, %v1559
      %1892 = vst.msk [vmem:[#allocation2 + $0x8c] sm:$0xf] %vm1855, %v1560
      %1893 = vst.msk [vmem:[#allocation2 + $0x90] sm:$0xf] %vm1855, %v1561
      %1894 = vst.msk [vmem:[#allocation2 + $0x94] sm:$0xf] %vm1855, %v1562
      %1895 = vst.msk [vmem:[#allocation2 + $0x98] sm:$0xf] %vm1855, %v1563
      %1896 = vst.msk [vmem:[#allocation2 + $0x9c] sm:$0x1] %vm1860, %v1564
      %1897 = vst.msk [vmem:[#allocation2 + $0xa0] sm:$0xf] %vm1855, %v1565
      %1898 = vst.msk [vmem:[#allocation2 + $0xa4] sm:$0xf] %vm1855, %v1566
      %1899 = vst.msk [vmem:[#allocation2 + $0xa8] sm:$0xf] %vm1855, %v1567
      %1900 = vst.msk [vmem:[#allocation2 + $0xac] sm:$0xf] %vm1855, %v1568
      %1901 = vst.msk [vmem:[#allocation2 + $0xb0] sm:$0x1] %vm1860, %v1569
      %1902 = vst.msk [vmem:[#allocation2 + $0xb4] sm:$0xf] %vm1855, %v1570
      %1903 = vst.msk [vmem:[#allocation2 + $0xb8] sm:$0xf] %vm1855, %v1571
      %1904 = vst.msk [vmem:[#allocation2 + $0xbc] sm:$0xf] %vm1855, %v1572
      %1905 = vst.msk [vmem:[#allocation2 + $0xc0] sm:$0xf] %vm1855, %v1573
      %1906 = vst.msk [vmem:[#allocation2 + $0xc4] sm:$0x1] %vm1860, %v1574
      %1907 = vst.msk [vmem:[#allocation2 + $0xc8] sm:$0xf] %vm1855, %v1575
      %1908 = vst.msk [vmem:[#allocation2 + $0xcc] sm:$0xf] %vm1855, %v1576
      %1909 = vst.msk [vmem:[#allocation2 + $0xd0] sm:$0xf] %vm1855, %v1577
      %1910 = vst.msk [vmem:[#allocation2 + $0xd4] sm:$0xf] %vm1855, %v1578
      %1911 = vst.msk [vmem:[#allocation2 + $0xd8] sm:$0x1] %vm1860, %v1579
      %1912 = vst.msk [vmem:[#allocation2 + $0xdc] sm:$0xf] %vm1855, %v1580
      %1913 = vst.msk [vmem:[#allocation2 + $0xe0] sm:$0xf] %vm1855, %v1581
      %1914 = vst.msk [vmem:[#allocation2 + $0xe4] sm:$0xf] %vm1855, %v1582
      %1915 = vst.msk [vmem:[#allocation2 + $0xe8] sm:$0xf] %vm1855, %v1583
      %1916 = vst.msk [vmem:[#allocation2 + $0xec] sm:$0x1] %vm1860, %v1584
      %1917 = vst.msk [vmem:[#allocation2 + $0xf0] sm:$0xf] %vm1855, %v1585
      %1918 = vst.msk [vmem:[#allocation2 + $0xf4] sm:$0xf] %vm1855, %v1586
      %1919 = vst.msk [vmem:[#allocation2 + $0xf8] sm:$0xf] %vm1855, %v1587
      %1920 = vst.msk [vmem:[#allocation2 + $0xfc] sm:$0xf] %vm1855, %v1588
      %1921 = vst.msk [vmem:[#allocation2 + $0x100] sm:$0x1] %vm1860, %v1589
      %1922 = vst.msk [vmem:[#allocation2 + $0x104] sm:$0xf] %vm1855, %v1590
      %1923 = vst.msk [vmem:[#allocation2 + $0x108] sm:$0xf] %vm1855, %v1591
      %1924 = vst.msk [vmem:[#allocation2 + $0x10c] sm:$0xf] %vm1855, %v1592
      %1925 = vst.msk [vmem:[#allocation2 + $0x110] sm:$0xf] %vm1855, %v1593
      %1926 = vst.msk [vmem:[#allocation2 + $0x114] sm:$0x1] %vm1860, %v1594
      %1927 = vst.msk [vmem:[#allocation2 + $0x118] sm:$0xf] %vm1855, %v1595
      %1928 = vst.msk [vmem:[#allocation2 + $0x11c] sm:$0xf] %vm1855, %v1596
      %1929 = vst.msk [vmem:[#allocation2 + $0x120] sm:$0xf] %vm1855, %v1597
      %1930 = vst.msk [vmem:[#allocation2 + $0x124] sm:$0xf] %vm1855, %v1598
      %1931 = vst.msk [vmem:[#allocation2 + $0x128] sm:$0x1] %vm1860, %v1599
      %1932 = vst.msk [vmem:[#allocation2 + $0x12c] sm:$0xf] %vm1855, %v1600
      %1933 = vst.msk [vmem:[#allocation2 + $0x130] sm:$0xf] %vm1855, %v1601
      %1934 = vst.msk [vmem:[#allocation2 + $0x134] sm:$0xf] %vm1855, %v1602
      %1935 = vst.msk [vmem:[#allocation2 + $0x138] sm:$0xf] %vm1855, %v1603
      %1936 = vst.msk [vmem:[#allocation2 + $0x13c] sm:$0x1] %vm1860, %v1604
      %1937 = vst.msk [vmem:[#allocation2 + $0x140] sm:$0xf] %vm1855, %v1605
      %1938 = vst.msk [vmem:[#allocation2 + $0x144] sm:$0xf] %vm1855, %v1606
      %1939 = vst.msk [vmem:[#allocation2 + $0x148] sm:$0xf] %vm1855, %v1607
      %1940 = vst.msk [vmem:[#allocation2 + $0x14c] sm:$0xf] %vm1855, %v1608
      %1941 = vst.msk [vmem:[#allocation2 + $0x150] sm:$0x1] %vm1860, %v1609
      %1942 = vst.msk [vmem:[#allocation2 + $0x154] sm:$0xf] %vm1855, %v1610
      %1943 = vst.msk [vmem:[#allocation2 + $0x158] sm:$0xf] %vm1855, %v1611
      %1944 = vst.msk [vmem:[#allocation2 + $0x15c] sm:$0xf] %vm1855, %v1612
      %1945 = vst.msk [vmem:[#allocation2 + $0x160] sm:$0xf] %vm1855, %v1613
      %1946 = vst.msk [vmem:[#allocation2 + $0x164] sm:$0x1] %vm1860, %v1614
      %1947 = vst.msk [vmem:[#allocation2 + $0x168] sm:$0xf] %vm1855, %v1615
      %1948 = vst.msk [vmem:[#allocation2 + $0x16c] sm:$0xf] %vm1855, %v1616
      %1949 = vst.msk [vmem:[#allocation2 + $0x170] sm:$0xf] %vm1855, %v1617
      %1950 = vst.msk [vmem:[#allocation2 + $0x174] sm:$0xf] %vm1855, %v1618
      %1951 = vst.msk [vmem:[#allocation2 + $0x178] sm:$0x1] %vm1860, %v1619
      %1952 = vst.msk [vmem:[#allocation2 + $0x17c] sm:$0xf] %vm1855, %v1620
      %1953 = vst.msk [vmem:[#allocation2 + $0x180] sm:$0xf] %vm1855, %v1621
      %1954 = vst.msk [vmem:[#allocation2 + $0x184] sm:$0xf] %vm1855, %v1622
      %1955 = vst.msk [vmem:[#allocation2 + $0x188] sm:$0xf] %vm1855, %v1623
      %1956 = vst.msk [vmem:[#allocation2 + $0x18c] sm:$0x1] %vm1860, %v1624
      %1957 = vst.msk [vmem:[#allocation2 + $0x190] sm:$0xf] %vm1855, %v1625
      %1958 = vst.msk [vmem:[#allocation2 + $0x194] sm:$0xf] %vm1855, %v1626
      %1959 = vst.msk [vmem:[#allocation2 + $0x198] sm:$0xf] %vm1855, %v1627
      %1960 = vst.msk [vmem:[#allocation2 + $0x19c] sm:$0xf] %vm1855, %v1628
      %1961 = vst.msk [vmem:[#allocation2 + $0x1a0] sm:$0x1] %vm1860, %v1629
      %1962 = vst.msk [vmem:[#allocation2 + $0x1a4] sm:$0xf] %vm1855, %v1630
      %1963 = vst.msk [vmem:[#allocation2 + $0x1a8] sm:$0xf] %vm1855, %v1631
      %1964 = vst.msk [vmem:[#allocation2 + $0x1ac] sm:$0xf] %vm1855, %v1632
      %1965 = vst.msk [vmem:[#allocation2 + $0x1b0] sm:$0xf] %vm1855, %v1633
      %1966 = vst.msk [vmem:[#allocation2 + $0x1b4] sm:$0x1] %vm1860, %v1634
      %1967 = vst.msk [vmem:[#allocation2 + $0x1b8] sm:$0xf] %vm1855, %v1635
      %1968 = vst.msk [vmem:[#allocation2 + $0x1bc] sm:$0xf] %vm1855, %v1636
      %1969 = vst.msk [vmem:[#allocation2 + $0x1c0] sm:$0xf] %vm1855, %v1637
      %1970 = vst.msk [vmem:[#allocation2 + $0x1c4] sm:$0xf] %vm1855, %v1638
      %1971 = vst.msk [vmem:[#allocation2 + $0x1c8] sm:$0x1] %vm1860, %v1639
      %1972 = vst.msk [vmem:[#allocation2 + $0x1cc] sm:$0xf] %vm1855, %v1640
      %1973 = vst.msk [vmem:[#allocation2 + $0x1d0] sm:$0xf] %vm1855, %v1641
      %1974 = vst.msk [vmem:[#allocation2 + $0x1d4] sm:$0xf] %vm1855, %v1642
      %1975 = vst.msk [vmem:[#allocation2 + $0x1d8] sm:$0xf] %vm1855, %v1643
      %1976 = vst.msk [vmem:[#allocation2 + $0x1dc] sm:$0x1] %vm1860, %v1644
      %1977 = vst.msk [vmem:[#allocation2 + $0x1e0] sm:$0xf] %vm1855, %v1645
      %1978 = vst.msk [vmem:[#allocation2 + $0x1e4] sm:$0xf] %vm1855, %v1646
      %1979 = vst.msk [vmem:[#allocation2 + $0x1e8] sm:$0xf] %vm1855, %v1647
      %1980 = vst.msk [vmem:[#allocation2 + $0x1ec] sm:$0xf] %vm1855, %v1648
      %1981 = vst.msk [vmem:[#allocation2 + $0x1f0] sm:$0x1] %vm1860, %v1649
      %1982 = vst.msk [vmem:[#allocation2 + $0x1f4] sm:$0xf] %vm1855, %v1650
      %1983 = vst.msk [vmem:[#allocation2 + $0x1f8] sm:$0xf] %vm1855, %v1651
      %1984 = vst.msk [vmem:[#allocation2 + $0x1fc] sm:$0xf] %vm1855, %v1652
      %1985 = vst.msk [vmem:[#allocation2 + $0x200] sm:$0xf] %vm1855, %v1653
      %1986 = vst.msk [vmem:[#allocation2 + $0x204] sm:$0x1] %vm1860, %v1654
      %1987 = vst.msk [vmem:[#allocation2 + $0x208] sm:$0xf] %vm1855, %v1655
      %1988 = vst.msk [vmem:[#allocation2 + $0x20c] sm:$0xf] %vm1855, %v1656
      %1989 = vst.msk [vmem:[#allocation2 + $0x210] sm:$0xf] %vm1855, %v1657
      %1990 = vst.msk [vmem:[#allocation2 + $0x214] sm:$0xf] %vm1855, %v1658
      %1991 = vst.msk [vmem:[#allocation2 + $0x218] sm:$0x1] %vm1860, %v1659
      %1992 = vst.msk [vmem:[#allocation2 + $0x21c] sm:$0xf] %vm1855, %v1660
      %1993 = vst.msk [vmem:[#allocation2 + $0x220] sm:$0xf] %vm1855, %v1661
      %1994 = vst.msk [vmem:[#allocation2 + $0x224] sm:$0xf] %vm1855, %v1662
      %1995 = vst.msk [vmem:[#allocation2 + $0x228] sm:$0xf] %vm1855, %v1663
      %1996 = vst.msk [vmem:[#allocation2 + $0x22c] sm:$0x1] %vm1860, %v1664
      %1997 = vst.msk [vmem:[#allocation2 + $0x230] sm:$0xf] %vm1855, %v1665
      %1998 = vst.msk [vmem:[#allocation2 + $0x234] sm:$0xf] %vm1855, %v1666
      %1999 = vst.msk [vmem:[#allocation2 + $0x238] sm:$0xf] %vm1855, %v1667
      %2000 = vst.msk [vmem:[#allocation2 + $0x23c] sm:$0xf] %vm1855, %v1668
      %2001 = vst.msk [vmem:[#allocation2 + $0x240] sm:$0x1] %vm1860, %v1669
      %2002 = vst.msk [vmem:[#allocation2 + $0x244] sm:$0xf] %vm1855, %v1670
      %2003 = vst.msk [vmem:[#allocation2 + $0x248] sm:$0xf] %vm1855, %v1671
      %2004 = vst.msk [vmem:[#allocation2 + $0x24c] sm:$0xf] %vm1855, %v1672
      %2005 = vst.msk [vmem:[#allocation2 + $0x250] sm:$0xf] %vm1855, %v1673
      %2006 = vst.msk [vmem:[#allocation2 + $0x254] sm:$0x1] %vm1860, %v1674
      %2007 = vst.msk [vmem:[#allocation2 + $0x258] sm:$0xf] %vm1855, %v1675
      %2008 = vst.msk [vmem:[#allocation2 + $0x25c] sm:$0xf] %vm1855, %v1676
      %2009 = vst.msk [vmem:[#allocation2 + $0x260] sm:$0xf] %vm1855, %v1677
      %2010 = vst.msk [vmem:[#allocation2 + $0x264] sm:$0xf] %vm1855, %v1678
      %2011 = vst.msk [vmem:[#allocation2 + $0x268] sm:$0x1] %vm1860, %v1679
      %2012 = vst.msk [vmem:[#allocation2 + $0x26c] sm:$0xf] %vm1855, %v1680
      %2013 = vst.msk [vmem:[#allocation2 + $0x270] sm:$0xf] %vm1855, %v1681
      %2014 = vst.msk [vmem:[#allocation2 + $0x274] sm:$0xf] %vm1855, %v1682
      %2015 = vst.msk [vmem:[#allocation2 + $0x278] sm:$0xf] %vm1855, %v1683
      %2016 = vst.msk [vmem:[#allocation2 + $0x27c] sm:$0x1] %vm1860, %v1684
      %2017 = vst.msk [vmem:[#allocation2 + $0x280] sm:$0xf] %vm1855, %v1685
      %2018 = vst.msk [vmem:[#allocation2 + $0x284] sm:$0xf] %vm1855, %v1686
      %2019 = vst.msk [vmem:[#allocation2 + $0x288] sm:$0xf] %vm1855, %v1687
      %2020 = vst.msk [vmem:[#allocation2 + $0x28c] sm:$0xf] %vm1855, %v1688
      %2021 = vst.msk [vmem:[#allocation2 + $0x290] sm:$0x1] %vm1860, %v1689
      %2022 = vst.msk [vmem:[#allocation2 + $0x294] sm:$0xf] %vm1855, %v1525
      %2023 = vst.msk [vmem:[#allocation2 + $0x298] sm:$0xf] %vm1855, %v1526
      %2024 = vst.msk [vmem:[#allocation2 + $0x29c] sm:$0xf] %vm1855, %v1527
      %2025 = vst.msk [vmem:[#allocation2 + $0x2a0] sm:$0xf] %vm1855, %v1528
      %2026 = vst.msk [vmem:[#allocation2 + $0x2a4] sm:$0x1] %vm1860, %v1529
      %v2027 = vld [vmem:[#allocation2] sm:$0xf]
      %v2028 = vld [vmem:[#allocation2 + $0x4] sm:$0xf]
      %v2029 = vld [vmem:[#allocation2 + $0x8] sm:$0xf]
      %v2030 = vld [vmem:[#allocation2 + $0xc] sm:$0xf]
      %v2031 = vld [vmem:[#allocation2 + $0x10] sm:$0x1]
      %v2032 = vld [vmem:[#allocation2 + $0x14] sm:$0xf]
      %v2033 = vld [vmem:[#allocation2 + $0x18] sm:$0xf]
      %v2034 = vld [vmem:[#allocation2 + $0x1c] sm:$0xf]
      %v2035 = vld [vmem:[#allocation2 + $0x20] sm:$0xf]
      %v2036 = vld [vmem:[#allocation2 + $0x24] sm:$0x1]
      %v2037 = vld [vmem:[#allocation2 + $0x28] sm:$0xf]
      %v2038 = vld [vmem:[#allocation2 + $0x2c] sm:$0xf]
      %v2039 = vld [vmem:[#allocation2 + $0x30] sm:$0xf]
      %v2040 = vld [vmem:[#allocation2 + $0x34] sm:$0xf]
      %v2041 = vld [vmem:[#allocation2 + $0x38] sm:$0x1]
      %v2042 = vld [vmem:[#allocation2 + $0x3c] sm:$0xf]
      %v2043 = vld [vmem:[#allocation2 + $0x40] sm:$0xf]
      %v2044 = vld [vmem:[#allocation2 + $0x44] sm:$0xf]
      %v2045 = vld [vmem:[#allocation2 + $0x48] sm:$0xf]
      %v2046 = vld [vmem:[#allocation2 + $0x4c] sm:$0x1]
      %v2047 = vld [vmem:[#allocation2 + $0x50] sm:$0xf]
      %v2048 = vld [vmem:[#allocation2 + $0x54] sm:$0xf]
      %v2049 = vld [vmem:[#allocation2 + $0x58] sm:$0xf]
      %v2050 = vld [vmem:[#allocation2 + $0x5c] sm:$0xf]
      %v2051 = vld [vmem:[#allocation2 + $0x60] sm:$0x1]
      %v2052 = vld [vmem:[#allocation2 + $0x64] sm:$0xf]
      %v2053 = vld [vmem:[#allocation2 + $0x68] sm:$0xf]
      %v2054 = vld [vmem:[#allocation2 + $0x6c] sm:$0xf]
      %v2055 = vld [vmem:[#allocation2 + $0x70] sm:$0xf]
      %v2056 = vld [vmem:[#allocation2 + $0x74] sm:$0x1]
      %v2057 = vld [vmem:[#allocation2 + $0x78] sm:$0xf]
      %v2058 = vld [vmem:[#allocation2 + $0x7c] sm:$0xf]
      %v2059 = vld [vmem:[#allocation2 + $0x80] sm:$0xf]
      %v2060 = vld [vmem:[#allocation2 + $0x84] sm:$0xf]
      %v2061 = vld [vmem:[#allocation2 + $0x88] sm:$0x1]
      %v2062 = vld [vmem:[#allocation2 + $0x8c] sm:$0xf]
      %v2063 = vld [vmem:[#allocation2 + $0x90] sm:$0xf]
      %v2064 = vld [vmem:[#allocation2 + $0x94] sm:$0xf]
      %v2065 = vld [vmem:[#allocation2 + $0x98] sm:$0xf]
      %v2066 = vld [vmem:[#allocation2 + $0x9c] sm:$0x1]
      %v2067 = vld [vmem:[#allocation2 + $0xa0] sm:$0xf]
      %v2068 = vld [vmem:[#allocation2 + $0xa4] sm:$0xf]
      %v2069 = vld [vmem:[#allocation2 + $0xa8] sm:$0xf]
      %v2070 = vld [vmem:[#allocation2 + $0xac] sm:$0xf]
      %v2071 = vld [vmem:[#allocation2 + $0xb0] sm:$0x1]
      %v2072 = vld [vmem:[#allocation2 + $0xb4] sm:$0xf]
      %v2073 = vld [vmem:[#allocation2 + $0xb8] sm:$0xf]
      %v2074 = vld [vmem:[#allocation2 + $0xbc] sm:$0xf]
      %v2075 = vld [vmem:[#allocation2 + $0xc0] sm:$0xf]
      %v2076 = vld [vmem:[#allocation2 + $0xc4] sm:$0x1]
      %v2109 = vunpack.c.l.b16 %v2027
      %v2110 = vunpack.c.l.b16 %v2028
      %v2111 = vunpack.c.l.b16 %v2029
      %v2112 = vunpack.c.l.b16 %v2030
      %v2113 = vunpack.c.l.b16 %v2032
      %v2114 = vunpack.c.l.b16 %v2033
      %v2115 = vunpack.c.l.b16 %v2034
      %v2116 = vunpack.c.l.b16 %v2035
      %v2117 = vunpack.c.l.b16 %v2037
      %v2118 = vunpack.c.l.b16 %v2038
      %v2119 = vunpack.c.l.b16 %v2039
      %v2120 = vunpack.c.l.b16 %v2040
      %v2121 = vunpack.c.l.b16 %v2042
      %v2122 = vunpack.c.l.b16 %v2043
      %v2123 = vunpack.c.l.b16 %v2044
      %v2124 = vunpack.c.l.b16 %v2045
      %v2125 = vunpack.c.l.b16 %v2047
      %v2126 = vunpack.c.l.b16 %v2048
      %v2127 = vunpack.c.l.b16 %v2049
      %v2128 = vunpack.c.l.b16 %v2050
      %v2129 = vunpack.c.l.b16 %v2052
      %v2130 = vunpack.c.l.b16 %v2053
      %v2131 = vunpack.c.l.b16 %v2054
      %v2132 = vunpack.c.l.b16 %v2055
      %v2133 = vunpack.c.l.b16 %v2057
      %v2134 = vunpack.c.l.b16 %v2058
      %v2135 = vunpack.c.l.b16 %v2059
      %v2136 = vunpack.c.l.b16 %v2060
      %v2137 = vunpack.c.l.b16 %v2062
      %v2138 = vunpack.c.l.b16 %v2063
      %v2139 = vunpack.c.l.b16 %v2064
      %v2140 = vunpack.c.l.b16 %v2065
      %v2141 = vpack.c.b16 %v2110, %v2109
      %v2142 = vpack.c.b16 %v2112, %v2111
      %v2143 = vpack.c.b16 %v2114, %v2113
      %v2144 = vpack.c.b16 %v2116, %v2115
      %v2145 = vpack.c.b16 %v2118, %v2117
      %v2146 = vpack.c.b16 %v2120, %v2119
      %v2147 = vpack.c.b16 %v2122, %v2121
      %v2148 = vpack.c.b16 %v2124, %v2123
      %v2149 = vpack.c.b16 %v2126, %v2125
      %v2150 = vpack.c.b16 %v2128, %v2127
      %v2151 = vpack.c.b16 %v2130, %v2129
      %v2152 = vpack.c.b16 %v2132, %v2131
      %v2153 = vpack.c.b16 %v2134, %v2133
      %v2154 = vpack.c.b16 %v2136, %v2135
      %v2155 = vpack.c.b16 %v2138, %v2137
      %v2156 = vpack.c.b16 %v2140, %v2139
      %v2165 = vunpack.c.l.b16 %v2031
      %v2166 = vunpack.c.l.b16 %v2036
      %v2167 = vunpack.c.l.b16 %v2041
      %v2168 = vunpack.c.l.b16 %v2046
      %v2169 = vunpack.c.l.b16 %v2051
      %v2170 = vunpack.c.l.b16 %v2056
      %v2171 = vunpack.c.l.b16 %v2061
      %v2172 = vunpack.c.l.b16 %v2066
      %v2173 = vpack.c.b16 %v2165, %v2165
      %v2174 = vpack.c.b16 %v2166, %v2166
      %v2175 = vpack.c.b16 %v2167, %v2167
      %v2176 = vpack.c.b16 %v2168, %v2168
      %v2177 = vpack.c.b16 %v2169, %v2169
      %v2178 = vpack.c.b16 %v2170, %v2170
      %v2179 = vpack.c.b16 %v2171, %v2171
      %v2180 = vpack.c.b16 %v2172, %v2172
      %vm2181 = vsmask.f32 7424
      %v2183 = vshrl.u32 %v2141, 16
      %v2185 = vshll.u32 %v2141, 16
      %v2187 = vrot.slane %v2185, 1
      %v2188 = vor.u32 %v2183, %v2187
      %v2190 = vshll.u32 %v2142, 16
      %v2192 = vrot.slane %v2190, 1
      %v2193 = vsel %vm2181, %v2188, %v2192
      %v2194 = vshrl.u32 %v2142, 16
      %v2196 = vor.u32 %v2194, %v2192
      %v2198 = vshll.u32 %v2173, 16
      %v2200 = vrot.slane %v2198, 1
      %v2201 = vsel %vm2181, %v2196, %v2200
      %v2203 = vshrl.u32 %v2143, 16
      %v2205 = vshll.u32 %v2143, 16
      %v2207 = vrot.slane %v2205, 1
      %v2208 = vor.u32 %v2203, %v2207
      %v2210 = vshll.u32 %v2144, 16
      %v2212 = vrot.slane %v2210, 1
      %v2213 = vsel %vm2181, %v2208, %v2212
      %v2214 = vshrl.u32 %v2144, 16
      %v2216 = vor.u32 %v2214, %v2212
      %v2218 = vshll.u32 %v2174, 16
      %v2220 = vrot.slane %v2218, 1
      %v2221 = vsel %vm2181, %v2216, %v2220
      %v2223 = vshrl.u32 %v2145, 16
      %v2225 = vshll.u32 %v2145, 16
      %v2227 = vrot.slane %v2225, 1
      %v2228 = vor.u32 %v2223, %v2227
      %v2230 = vshll.u32 %v2146, 16
      %v2232 = vrot.slane %v2230, 1
      %v2233 = vsel %vm2181, %v2228, %v2232
      %v2234 = vshrl.u32 %v2146, 16
      %v2236 = vor.u32 %v2234, %v2232
      %v2238 = vshll.u32 %v2175, 16
      %v2240 = vrot.slane %v2238, 1
      %v2241 = vsel %vm2181, %v2236, %v2240
      %v2243 = vshrl.u32 %v2147, 16
      %v2245 = vshll.u32 %v2147, 16
      %v2247 = vrot.slane %v2245, 1
      %v2248 = vor.u32 %v2243, %v2247
      %v2250 = vshll.u32 %v2148, 16
      %v2252 = vrot.slane %v2250, 1
      %v2253 = vsel %vm2181, %v2248, %v2252
      %v2254 = vshrl.u32 %v2148, 16
      %v2256 = vor.u32 %v2254, %v2252
      %v2258 = vshll.u32 %v2176, 16
      %v2260 = vrot.slane %v2258, 1
      %v2261 = vsel %vm2181, %v2256, %v2260
      %v2263 = vshrl.u32 %v2149, 16
      %v2265 = vshll.u32 %v2149, 16
      %v2267 = vrot.slane %v2265, 1
      %v2268 = vor.u32 %v2263, %v2267
      %v2270 = vshll.u32 %v2150, 16
      %v2272 = vrot.slane %v2270, 1
      %v2273 = vsel %vm2181, %v2268, %v2272
      %v2274 = vshrl.u32 %v2150, 16
      %v2276 = vor.u32 %v2274, %v2272
      %v2278 = vshll.u32 %v2177, 16
      %v2280 = vrot.slane %v2278, 1
      %v2281 = vsel %vm2181, %v2276, %v2280
      %v2283 = vshrl.u32 %v2151, 16
      %v2285 = vshll.u32 %v2151, 16
      %v2287 = vrot.slane %v2285, 1
      %v2288 = vor.u32 %v2283, %v2287
      %v2290 = vshll.u32 %v2152, 16
      %v2292 = vrot.slane %v2290, 1
      %v2293 = vsel %vm2181, %v2288, %v2292
      %v2294 = vshrl.u32 %v2152, 16
      %v2296 = vor.u32 %v2294, %v2292
      %v2298 = vshll.u32 %v2178, 16
      %v2300 = vrot.slane %v2298, 1
      %v2301 = vsel %vm2181, %v2296, %v2300
      %v2303 = vshrl.u32 %v2153, 16
      %v2305 = vshll.u32 %v2153, 16
      %v2307 = vrot.slane %v2305, 1
      %v2308 = vor.u32 %v2303, %v2307
      %v2310 = vshll.u32 %v2154, 16
      %v2312 = vrot.slane %v2310, 1
      %v2313 = vsel %vm2181, %v2308, %v2312
      %v2314 = vshrl.u32 %v2154, 16
      %v2316 = vor.u32 %v2314, %v2312
      %v2318 = vshll.u32 %v2179, 16
      %v2320 = vrot.slane %v2318, 1
      %v2321 = vsel %vm2181, %v2316, %v2320
      %v2323 = vshrl.u32 %v2155, 16
      %v2325 = vshll.u32 %v2155, 16
      %v2327 = vrot.slane %v2325, 1
      %v2328 = vor.u32 %v2323, %v2327
      %v2330 = vshll.u32 %v2156, 16
      %v2332 = vrot.slane %v2330, 1
      %v2333 = vsel %vm2181, %v2328, %v2332
      %v2334 = vshrl.u32 %v2156, 16
      %v2336 = vor.u32 %v2334, %v2332
      %v2338 = vshll.u32 %v2180, 16
      %v2340 = vrot.slane %v2338, 1
      %v2341 = vsel %vm2181, %v2336, %v2340
      %2342 = vrot.lane.b32.xlu0 %v2193, 6
      %v2343 = vpop.permute.xlu0 %2342
      %2344 = vrot.lane.b32.xlu0 %v2201, 6
      %v2345 = vpop.permute.xlu0 %2344
      %2346 = vrot.lane.b32.xlu0 %v2213, 6
      %v2347 = vpop.permute.xlu0 %2346
      %2348 = vrot.lane.b32.xlu0 %v2221, 6
      %v2349 = vpop.permute.xlu0 %2348
      %2350 = vrot.lane.b32.xlu0 %v2233, 6
      %v2351 = vpop.permute.xlu0 %2350
      %2352 = vrot.lane.b32.xlu0 %v2241, 6
      %v2353 = vpop.permute.xlu0 %2352
      %2354 = vrot.lane.b32.xlu0 %v2253, 6
      %v2355 = vpop.permute.xlu0 %2354
      %2356 = vrot.lane.b32.xlu0 %v2261, 6
      %v2357 = vpop.permute.xlu0 %2356
      %2358 = vrot.lane.b32.xlu0 %v2273, 6
      %v2359 = vpop.permute.xlu0 %2358
      %2360 = vrot.lane.b32.xlu0 %v2281, 6
      %v2361 = vpop.permute.xlu0 %2360
      %2362 = vrot.lane.b32.xlu0 %v2293, 6
      %v2363 = vpop.permute.xlu0 %2362
      %2364 = vrot.lane.b32.xlu0 %v2301, 6
      %v2365 = vpop.permute.xlu0 %2364
      %2366 = vrot.lane.b32.xlu0 %v2313, 6
      %v2367 = vpop.permute.xlu0 %2366
      %2368 = vrot.lane.b32.xlu0 %v2321, 6
      %v2369 = vpop.permute.xlu0 %2368
      %2370 = vrot.lane.b32.xlu0 %v2333, 6
      %v2371 = vpop.permute.xlu0 %2370
      %2372 = vrot.lane.b32.xlu0 %v2341, 6
      %v2373 = vpop.permute.xlu0 %2372
      %vm2374 = vcmask 1046528
      %v2375 = vrot.slane %v2141, 1
      %v2376 = vrot.slane %v2142, 1
      %v2377 = vsel %vm2374, %v2375, %v2376
      %v2378 = vrot.slane %v2173, 1
      %v2379 = vsel %vm2374, %v2376, %v2378
      %v2380 = vrot.slane %v2143, 1
      %v2381 = vrot.slane %v2144, 1
      %v2382 = vsel %vm2374, %v2380, %v2381
      %v2383 = vrot.slane %v2174, 1
      %v2384 = vsel %vm2374, %v2381, %v2383
      %v2385 = vrot.slane %v2145, 1
      %v2386 = vrot.slane %v2146, 1
      %v2387 = vsel %vm2374, %v2385, %v2386
      %v2388 = vrot.slane %v2175, 1
      %v2389 = vsel %vm2374, %v2386, %v2388
      %v2390 = vrot.slane %v2147, 1
      %v2391 = vrot.slane %v2148, 1
      %v2392 = vsel %vm2374, %v2390, %v2391
      %v2393 = vrot.slane %v2176, 1
      %v2394 = vsel %vm2374, %v2391, %v2393
      %v2395 = vrot.slane %v2149, 1
      %v2396 = vrot.slane %v2150, 1
      %v2397 = vsel %vm2374, %v2395, %v2396
      %v2398 = vrot.slane %v2177, 1
      %v2399 = vsel %vm2374, %v2396, %v2398
      %v2400 = vrot.slane %v2151, 1
      %v2401 = vrot.slane %v2152, 1
      %v2402 = vsel %vm2374, %v2400, %v2401
      %v2403 = vrot.slane %v2178, 1
      %v2404 = vsel %vm2374, %v2401, %v2403
      %v2405 = vrot.slane %v2153, 1
      %v2406 = vrot.slane %v2154, 1
      %v2407 = vsel %vm2374, %v2405, %v2406
      %v2408 = vrot.slane %v2179, 1
      %v2409 = vsel %vm2374, %v2406, %v2408
      %v2410 = vrot.slane %v2155, 1
      %v2411 = vrot.slane %v2156, 1
      %v2412 = vsel %vm2374, %v2410, %v2411
      %v2413 = vrot.slane %v2180, 1
      %v2414 = vsel %vm2374, %v2411, %v2413
      %2415 = vrot.lane.b32.xlu0 %v2377, 12
      %v2416 = vpop.permute.xlu0 %2415
      %2417 = vrot.lane.b32.xlu0 %v2379, 12
      %v2418 = vpop.permute.xlu0 %2417
      %2419 = vrot.lane.b32.xlu0 %v2382, 12
      %v2420 = vpop.permute.xlu0 %2419
      %2421 = vrot.lane.b32.xlu0 %v2384, 12
      %v2422 = vpop.permute.xlu0 %2421
      %2423 = vrot.lane.b32.xlu0 %v2387, 12
      %v2424 = vpop.permute.xlu0 %2423
      %2425 = vrot.lane.b32.xlu0 %v2389, 12
      %v2426 = vpop.permute.xlu0 %2425
      %2427 = vrot.lane.b32.xlu0 %v2392, 12
      %v2428 = vpop.permute.xlu0 %2427
      %2429 = vrot.lane.b32.xlu0 %v2394, 12
      %v2430 = vpop.permute.xlu0 %2429
      %2431 = vrot.lane.b32.xlu0 %v2397, 12
      %v2432 = vpop.permute.xlu0 %2431
      %2433 = vrot.lane.b32.xlu0 %v2399, 12
      %v2434 = vpop.permute.xlu0 %2433
      %2435 = vrot.lane.b32.xlu0 %v2402, 12
      %v2436 = vpop.permute.xlu0 %2435
      %2437 = vrot.lane.b32.xlu0 %v2404, 12
      %v2438 = vpop.permute.xlu0 %2437
      %2439 = vrot.lane.b32.xlu0 %v2407, 12
      %v2440 = vpop.permute.xlu0 %2439
      %2441 = vrot.lane.b32.xlu0 %v2409, 12
      %v2442 = vpop.permute.xlu0 %2441
      %2443 = vrot.lane.b32.xlu0 %v2412, 12
      %v2444 = vpop.permute.xlu0 %2443
      %2445 = vrot.lane.b32.xlu0 %v2414, 12
      %v2446 = vpop.permute.xlu0 %2445
      %v2451 = vunpack.c.l.b16 %v2067
      %v2452 = vunpack.c.l.b16 %v2068
      %v2453 = vunpack.c.l.b16 %v2069
      %v2454 = vunpack.c.l.b16 %v2070
      %v2455 = vpack.c.b16 %v2452, %v2451
      %v2456 = vpack.c.b16 %v2454, %v2453
      %2457 = vrot.lane.b32.xlu0 %v2143, 18
      %v2458 = vpop.permute.xlu0 %2457
      %2459 = vrot.lane.b32.xlu0 %v2144, 18
      %v2460 = vpop.permute.xlu0 %2459
      %2461 = vrot.lane.b32.xlu0 %v2145, 18
      %v2462 = vpop.permute.xlu0 %2461
      %2463 = vrot.lane.b32.xlu0 %v2146, 18
      %v2464 = vpop.permute.xlu0 %2463
      %2465 = vrot.lane.b32.xlu0 %v2147, 18
      %v2466 = vpop.permute.xlu0 %2465
      %2467 = vrot.lane.b32.xlu0 %v2148, 18
      %v2468 = vpop.permute.xlu0 %2467
      %2469 = vrot.lane.b32.xlu0 %v2149, 18
      %v2470 = vpop.permute.xlu0 %2469
      %2471 = vrot.lane.b32.xlu0 %v2150, 18
      %v2472 = vpop.permute.xlu0 %2471
      %2473 = vrot.lane.b32.xlu0 %v2151, 18
      %v2474 = vpop.permute.xlu0 %2473
      %2475 = vrot.lane.b32.xlu0 %v2152, 18
      %v2476 = vpop.permute.xlu0 %2475
      %2477 = vrot.lane.b32.xlu0 %v2153, 18
      %v2478 = vpop.permute.xlu0 %2477
      %2479 = vrot.lane.b32.xlu0 %v2154, 18
      %v2480 = vpop.permute.xlu0 %2479
      %2481 = vrot.lane.b32.xlu0 %v2155, 18
      %v2482 = vpop.permute.xlu0 %2481
      %2483 = vrot.lane.b32.xlu0 %v2156, 18
      %v2484 = vpop.permute.xlu0 %2483
      %2485 = vrot.lane.b32.xlu0 %v2455, 18
      %v2486 = vpop.permute.xlu0 %2485
      %2487 = vrot.lane.b32.xlu0 %v2456, 18
      %v2488 = vpop.permute.xlu0 %2487
      %v2490 = vunpack.c.l.b16 %v2071
      %v2491 = vpack.c.b16 %v2490, %v2490
      %v2493 = vshrl.u32 %v2455, 16
      %v2495 = vshll.u32 %v2455, 16
      %v2497 = vrot.slane %v2495, 1
      %v2498 = vor.u32 %v2493, %v2497
      %v2500 = vshll.u32 %v2456, 16
      %v2502 = vrot.slane %v2500, 1
      %v2503 = vsel %vm2181, %v2498, %v2502
      %v2504 = vshrl.u32 %v2456, 16
      %v2506 = vor.u32 %v2504, %v2502
      %v2508 = vshll.u32 %v2491, 16
      %v2510 = vrot.slane %v2508, 1
      %v2511 = vsel %vm2181, %v2506, %v2510
      %2512 = vrot.lane.b32.xlu0 %v2213, 24
      %v2513 = vpop.permute.xlu0 %2512
      %2514 = vrot.lane.b32.xlu0 %v2221, 24
      %v2515 = vpop.permute.xlu0 %2514
      %2516 = vrot.lane.b32.xlu0 %v2233, 24
      %v2517 = vpop.permute.xlu0 %2516
      %2518 = vrot.lane.b32.xlu0 %v2241, 24
      %v2519 = vpop.permute.xlu0 %2518
      %2520 = vrot.lane.b32.xlu0 %v2253, 24
      %v2521 = vpop.permute.xlu0 %2520
      %2522 = vrot.lane.b32.xlu0 %v2261, 24
      %v2523 = vpop.permute.xlu0 %2522
      %2524 = vrot.lane.b32.xlu0 %v2273, 24
      %v2525 = vpop.permute.xlu0 %2524
      %2526 = vrot.lane.b32.xlu0 %v2281, 24
      %v2527 = vpop.permute.xlu0 %2526
      %2528 = vrot.lane.b32.xlu0 %v2293, 24
      %v2529 = vpop.permute.xlu0 %2528
      %2530 = vrot.lane.b32.xlu0 %v2301, 24
      %v2531 = vpop.permute.xlu0 %2530
      %2532 = vrot.lane.b32.xlu0 %v2313, 24
      %v2533 = vpop.permute.xlu0 %2532
      %2534 = vrot.lane.b32.xlu0 %v2321, 24
      %v2535 = vpop.permute.xlu0 %2534
      %2536 = vrot.lane.b32.xlu0 %v2333, 24
      %v2537 = vpop.permute.xlu0 %2536
      %2538 = vrot.lane.b32.xlu0 %v2341, 24
      %v2539 = vpop.permute.xlu0 %2538
      %2540 = vrot.lane.b32.xlu0 %v2503, 24
      %v2541 = vpop.permute.xlu0 %2540
      %2542 = vrot.lane.b32.xlu0 %v2511, 24
      %v2543 = vpop.permute.xlu0 %2542
      %v2544 = vrot.slane %v2455, 1
      %v2545 = vrot.slane %v2456, 1
      %v2546 = vsel %vm2374, %v2544, %v2545
      %v2547 = vrot.slane %v2491, 1
      %v2548 = vsel %vm2374, %v2545, %v2547
      %2549 = vrot.lane.b32.xlu0 %v2382, 30
      %v2550 = vpop.permute.xlu0 %2549
      %2551 = vrot.lane.b32.xlu0 %v2384, 30
      %v2552 = vpop.permute.xlu0 %2551
      %2553 = vrot.lane.b32.xlu0 %v2387, 30
      %v2554 = vpop.permute.xlu0 %2553
      %2555 = vrot.lane.b32.xlu0 %v2389, 30
      %v2556 = vpop.permute.xlu0 %2555
      %2557 = vrot.lane.b32.xlu0 %v2392, 30
      %v2558 = vpop.permute.xlu0 %2557
      %2559 = vrot.lane.b32.xlu0 %v2394, 30
      %v2560 = vpop.permute.xlu0 %2559
      %2561 = vrot.lane.b32.xlu0 %v2397, 30
      %v2562 = vpop.permute.xlu0 %2561
      %2563 = vrot.lane.b32.xlu0 %v2399, 30
      %v2564 = vpop.permute.xlu0 %2563
      %2565 = vrot.lane.b32.xlu0 %v2402, 30
      %v2566 = vpop.permute.xlu0 %2565
      %2567 = vrot.lane.b32.xlu0 %v2404, 30
      %v2568 = vpop.permute.xlu0 %2567
      %2569 = vrot.lane.b32.xlu0 %v2407, 30
      %v2570 = vpop.permute.xlu0 %2569
      %2571 = vrot.lane.b32.xlu0 %v2409, 30
      %v2572 = vpop.permute.xlu0 %2571
      %2573 = vrot.lane.b32.xlu0 %v2412, 30
      %v2574 = vpop.permute.xlu0 %2573
      %2575 = vrot.lane.b32.xlu0 %v2414, 30
      %v2576 = vpop.permute.xlu0 %2575
      %2577 = vrot.lane.b32.xlu0 %v2546, 30
      %v2578 = vpop.permute.xlu0 %2577
      %2579 = vrot.lane.b32.xlu0 %v2548, 30
      %v2580 = vpop.permute.xlu0 %2579
      %v2585 = vunpack.c.l.b16 %v2072
      %v2586 = vunpack.c.l.b16 %v2073
      %v2587 = vunpack.c.l.b16 %v2074
      %v2588 = vunpack.c.l.b16 %v2075
      %v2589 = vpack.c.b16 %v2586, %v2585
      %v2590 = vpack.c.b16 %v2588, %v2587
      %2591 = vrot.lane.b32.xlu0 %v2145, 36
      %v2592 = vpop.permute.xlu0 %2591
      %2593 = vrot.lane.b32.xlu0 %v2146, 36
      %v2594 = vpop.permute.xlu0 %2593
      %2595 = vrot.lane.b32.xlu0 %v2147, 36
      %v2596 = vpop.permute.xlu0 %2595
      %2597 = vrot.lane.b32.xlu0 %v2148, 36
      %v2598 = vpop.permute.xlu0 %2597
      %2599 = vrot.lane.b32.xlu0 %v2149, 36
      %v2600 = vpop.permute.xlu0 %2599
      %2601 = vrot.lane.b32.xlu0 %v2150, 36
      %v2602 = vpop.permute.xlu0 %2601
      %2603 = vrot.lane.b32.xlu0 %v2151, 36
      %v2604 = vpop.permute.xlu0 %2603
      %2605 = vrot.lane.b32.xlu0 %v2152, 36
      %v2606 = vpop.permute.xlu0 %2605
      %2607 = vrot.lane.b32.xlu0 %v2153, 36
      %v2608 = vpop.permute.xlu0 %2607
      %2609 = vrot.lane.b32.xlu0 %v2154, 36
      %v2610 = vpop.permute.xlu0 %2609
      %2611 = vrot.lane.b32.xlu0 %v2155, 36
      %v2612 = vpop.permute.xlu0 %2611
      %2613 = vrot.lane.b32.xlu0 %v2156, 36
      %v2614 = vpop.permute.xlu0 %2613
      %2615 = vrot.lane.b32.xlu0 %v2455, 36
      %v2616 = vpop.permute.xlu0 %2615
      %2617 = vrot.lane.b32.xlu0 %v2456, 36
      %v2618 = vpop.permute.xlu0 %2617
      %2619 = vrot.lane.b32.xlu0 %v2589, 36
      %v2620 = vpop.permute.xlu0 %2619
      %2621 = vrot.lane.b32.xlu0 %v2590, 36
      %v2622 = vpop.permute.xlu0 %2621
      %v2624 = vunpack.c.l.b16 %v2076
      %v2625 = vpack.c.b16 %v2624, %v2624
      %v2627 = vshrl.u32 %v2589, 16
      %v2629 = vshll.u32 %v2589, 16
      %v2631 = vrot.slane %v2629, 1
      %v2632 = vor.u32 %v2627, %v2631
      %v2634 = vshll.u32 %v2590, 16
      %v2636 = vrot.slane %v2634, 1
      %v2637 = vsel %vm2181, %v2632, %v2636
      %v2638 = vshrl.u32 %v2590, 16
      %v2640 = vor.u32 %v2638, %v2636
      %v2642 = vshll.u32 %v2625, 16
      %v2644 = vrot.slane %v2642, 1
      %v2645 = vsel %vm2181, %v2640, %v2644
      %2646 = vrot.lane.b32.xlu0 %v2233, 42
      %v2647 = vpop.permute.xlu0 %2646
      %2648 = vrot.lane.b32.xlu0 %v2241, 42
      %v2649 = vpop.permute.xlu0 %2648
      %2650 = vrot.lane.b32.xlu0 %v2253, 42
      %v2651 = vpop.permute.xlu0 %2650
      %2652 = vrot.lane.b32.xlu0 %v2261, 42
      %v2653 = vpop.permute.xlu0 %2652
      %2654 = vrot.lane.b32.xlu0 %v2273, 42
      %v2655 = vpop.permute.xlu0 %2654
      %2656 = vrot.lane.b32.xlu0 %v2281, 42
      %v2657 = vpop.permute.xlu0 %2656
      %2658 = vrot.lane.b32.xlu0 %v2293, 42
      %v2659 = vpop.permute.xlu0 %2658
      %2660 = vrot.lane.b32.xlu0 %v2301, 42
      %v2661 = vpop.permute.xlu0 %2660
      %2662 = vrot.lane.b32.xlu0 %v2313, 42
      %v2663 = vpop.permute.xlu0 %2662
      %2664 = vrot.lane.b32.xlu0 %v2321, 42
      %v2665 = vpop.permute.xlu0 %2664
      %2666 = vrot.lane.b32.xlu0 %v2333, 42
      %v2667 = vpop.permute.xlu0 %2666
      %2668 = vrot.lane.b32.xlu0 %v2341, 42
      %v2669 = vpop.permute.xlu0 %2668
      %2670 = vrot.lane.b32.xlu0 %v2503, 42
      %v2671 = vpop.permute.xlu0 %2670
      %2672 = vrot.lane.b32.xlu0 %v2511, 42
      %v2673 = vpop.permute.xlu0 %2672
      %2674 = vrot.lane.b32.xlu0 %v2637, 42
      %v2675 = vpop.permute.xlu0 %2674
      %2676 = vrot.lane.b32.xlu0 %v2645, 42
      %v2677 = vpop.permute.xlu0 %2676
      %v2678 = vrot.slane %v2589, 1
      %v2679 = vrot.slane %v2590, 1
      %v2680 = vsel %vm2374, %v2678, %v2679
      %v2681 = vrot.slane %v2625, 1
      %v2682 = vsel %vm2374, %v2679, %v2681
      %2683 = vrot.lane.b32.xlu0 %v2387, 48
      %v2684 = vpop.permute.xlu0 %2683
      %2685 = vrot.lane.b32.xlu0 %v2389, 48
      %v2686 = vpop.permute.xlu0 %2685
      %2687 = vrot.lane.b32.xlu0 %v2392, 48
      %v2688 = vpop.permute.xlu0 %2687
      %2689 = vrot.lane.b32.xlu0 %v2394, 48
      %v2690 = vpop.permute.xlu0 %2689
      %2691 = vrot.lane.b32.xlu0 %v2397, 48
      %v2692 = vpop.permute.xlu0 %2691
      %2693 = vrot.lane.b32.xlu0 %v2399, 48
      %v2694 = vpop.permute.xlu0 %2693
      %2695 = vrot.lane.b32.xlu0 %v2402, 48
      %v2696 = vpop.permute.xlu0 %2695
      %2697 = vrot.lane.b32.xlu0 %v2404, 48
      %v2698 = vpop.permute.xlu0 %2697
      %2699 = vrot.lane.b32.xlu0 %v2407, 48
      %v2700 = vpop.permute.xlu0 %2699
      %2701 = vrot.lane.b32.xlu0 %v2409, 48
      %v2702 = vpop.permute.xlu0 %2701
      %2703 = vrot.lane.b32.xlu0 %v2412, 48
      %v2704 = vpop.permute.xlu0 %2703
      %2705 = vrot.lane.b32.xlu0 %v2414, 48
      %v2706 = vpop.permute.xlu0 %2705
      %2707 = vrot.lane.b32.xlu0 %v2546, 48
      %v2708 = vpop.permute.xlu0 %2707
      %2709 = vrot.lane.b32.xlu0 %v2548, 48
      %v2710 = vpop.permute.xlu0 %2709
      %2711 = vrot.lane.b32.xlu0 %v2680, 48
      %v2712 = vpop.permute.xlu0 %2711
      %2713 = vrot.lane.b32.xlu0 %v2682, 48
      %v2714 = vpop.permute.xlu0 %2713
      %vm2715 = vcmask 48128
      %v2717 = vsel %vm2715, %v2141, %v2343
      %v2719 = vsel %vm2715, %v2142, %v2345
      %v2721 = vsel %vm2715, %v2143, %v2347
      %v2723 = vsel %vm2715, %v2144, %v2349
      %v2725 = vsel %vm2715, %v2145, %v2351
      %v2727 = vsel %vm2715, %v2146, %v2353
      %v2729 = vsel %vm2715, %v2147, %v2355
      %v2731 = vsel %vm2715, %v2148, %v2357
      %v2733 = vsel %vm2715, %v2149, %v2359
      %v2735 = vsel %vm2715, %v2150, %v2361
      %v2737 = vsel %vm2715, %v2151, %v2363
      %v2739 = vsel %vm2715, %v2152, %v2365
      %v2741 = vsel %vm2715, %v2153, %v2367
      %v2743 = vsel %vm2715, %v2154, %v2369
      %v2745 = vsel %vm2715, %v2155, %v2371
      %v2747 = vsel %vm2715, %v2156, %v2373
      %vm2748 = vcmask 97280
      %v2750 = vsel %vm2748, %v2717, %v2416
      %v2752 = vsel %vm2748, %v2719, %v2418
      %v2754 = vsel %vm2748, %v2721, %v2420
      %v2756 = vsel %vm2748, %v2723, %v2422
      %v2758 = vsel %vm2748, %v2725, %v2424
      %v2760 = vsel %vm2748, %v2727, %v2426
      %v2762 = vsel %vm2748, %v2729, %v2428
      %v2764 = vsel %vm2748, %v2731, %v2430
      %v2766 = vsel %vm2748, %v2733, %v2432
      %v2768 = vsel %vm2748, %v2735, %v2434
      %v2770 = vsel %vm2748, %v2737, %v2436
      %v2772 = vsel %vm2748, %v2739, %v2438
      %v2774 = vsel %vm2748, %v2741, %v2440
      %v2776 = vsel %vm2748, %v2743, %v2442
      %v2778 = vsel %vm2748, %v2745, %v2444
      %v2780 = vsel %vm2748, %v2747, %v2446
      %vm2781 = vcmask 146432
      %v2783 = vsel %vm2781, %v2750, %v2458
      %v2785 = vsel %vm2781, %v2752, %v2460
      %v2787 = vsel %vm2781, %v2754, %v2462
      %v2789 = vsel %vm2781, %v2756, %v2464
      %v2791 = vsel %vm2781, %v2758, %v2466
      %v2793 = vsel %vm2781, %v2760, %v2468
      %v2795 = vsel %vm2781, %v2762, %v2470
      %v2797 = vsel %vm2781, %v2764, %v2472
      %v2799 = vsel %vm2781, %v2766, %v2474
      %v2801 = vsel %vm2781, %v2768, %v2476
      %v2803 = vsel %vm2781, %v2770, %v2478
      %v2805 = vsel %vm2781, %v2772, %v2480
      %v2807 = vsel %vm2781, %v2774, %v2482
      %v2809 = vsel %vm2781, %v2776, %v2484
      %v2811 = vsel %vm2781, %v2778, %v2486
      %v2813 = vsel %vm2781, %v2780, %v2488
      %vm2814 = vcmask 195584
      %v2816 = vsel %vm2814, %v2783, %v2513
      %v2818 = vsel %vm2814, %v2785, %v2515
      %v2820 = vsel %vm2814, %v2787, %v2517
      %v2822 = vsel %vm2814, %v2789, %v2519
      %v2824 = vsel %vm2814, %v2791, %v2521
      %v2826 = vsel %vm2814, %v2793, %v2523
      %v2828 = vsel %vm2814, %v2795, %v2525
      %v2830 = vsel %vm2814, %v2797, %v2527
      %v2832 = vsel %vm2814, %v2799, %v2529
      %v2834 = vsel %vm2814, %v2801, %v2531
      %v2836 = vsel %vm2814, %v2803, %v2533
      %v2838 = vsel %vm2814, %v2805, %v2535
      %v2840 = vsel %vm2814, %v2807, %v2537
      %v2842 = vsel %vm2814, %v2809, %v2539
      %v2844 = vsel %vm2814, %v2811, %v2541
      %v2846 = vsel %vm2814, %v2813, %v2543
      %vm2847 = vcmask 244736
      %v2849 = vsel %vm2847, %v2816, %v2550
      %v2851 = vsel %vm2847, %v2818, %v2552
      %v2853 = vsel %vm2847, %v2820, %v2554
      %v2855 = vsel %vm2847, %v2822, %v2556
      %v2857 = vsel %vm2847, %v2824, %v2558
      %v2859 = vsel %vm2847, %v2826, %v2560
      %v2861 = vsel %vm2847, %v2828, %v2562
      %v2863 = vsel %vm2847, %v2830, %v2564
      %v2865 = vsel %vm2847, %v2832, %v2566
      %v2867 = vsel %vm2847, %v2834, %v2568
      %v2869 = vsel %vm2847, %v2836, %v2570
      %v2871 = vsel %vm2847, %v2838, %v2572
      %v2873 = vsel %vm2847, %v2840, %v2574
      %v2875 = vsel %vm2847, %v2842, %v2576
      %v2877 = vsel %vm2847, %v2844, %v2578
      %v2879 = vsel %vm2847, %v2846, %v2580
      %vm2880 = vcmask 293888
      %v2882 = vsel %vm2880, %v2849, %v2592
      %v2884 = vsel %vm2880, %v2851, %v2594
      %v2886 = vsel %vm2880, %v2853, %v2596
      %v2888 = vsel %vm2880, %v2855, %v2598
      %v2890 = vsel %vm2880, %v2857, %v2600
      %v2892 = vsel %vm2880, %v2859, %v2602
      %v2894 = vsel %vm2880, %v2861, %v2604
      %v2896 = vsel %vm2880, %v2863, %v2606
      %v2898 = vsel %vm2880, %v2865, %v2608
      %v2900 = vsel %vm2880, %v2867, %v2610
      %v2902 = vsel %vm2880, %v2869, %v2612
      %v2904 = vsel %vm2880, %v2871, %v2614
      %v2906 = vsel %vm2880, %v2873, %v2616
      %v2908 = vsel %vm2880, %v2875, %v2618
      %v2910 = vsel %vm2880, %v2877, %v2620
      %v2912 = vsel %vm2880, %v2879, %v2622
      %vm2913 = vcmask 343040
      %v2915 = vsel %vm2913, %v2882, %v2647
      %v2917 = vsel %vm2913, %v2884, %v2649
      %v2919 = vsel %vm2913, %v2886, %v2651
      %v2921 = vsel %vm2913, %v2888, %v2653
      %v2923 = vsel %vm2913, %v2890, %v2655
      %v2925 = vsel %vm2913, %v2892, %v2657
      %v2927 = vsel %vm2913, %v2894, %v2659
      %v2929 = vsel %vm2913, %v2896, %v2661
      %v2931 = vsel %vm2913, %v2898, %v2663
      %v2933 = vsel %vm2913, %v2900, %v2665
      %v2935 = vsel %vm2913, %v2902, %v2667
      %v2937 = vsel %vm2913, %v2904, %v2669
      %v2939 = vsel %vm2913, %v2906, %v2671
      %v2941 = vsel %vm2913, %v2908, %v2673
      %v2943 = vsel %vm2913, %v2910, %v2675
      %v2945 = vsel %vm2913, %v2912, %v2677
      %vm2946 = vcmask 392192
      %v2948 = vsel %vm2946, %v2915, %v2684
      %v2950 = vsel %vm2946, %v2917, %v2686
      %v2952 = vsel %vm2946, %v2919, %v2688
      %v2954 = vsel %vm2946, %v2921, %v2690
      %v2956 = vsel %vm2946, %v2923, %v2692
      %v2958 = vsel %vm2946, %v2925, %v2694
      %v2960 = vsel %vm2946, %v2927, %v2696
      %v2962 = vsel %vm2946, %v2929, %v2698
      %v2964 = vsel %vm2946, %v2931, %v2700
      %v2966 = vsel %vm2946, %v2933, %v2702
      %v2968 = vsel %vm2946, %v2935, %v2704
      %v2970 = vsel %vm2946, %v2937, %v2706
      %v2972 = vsel %vm2946, %v2939, %v2708
      %v2974 = vsel %vm2946, %v2941, %v2710
      %v2976 = vsel %vm2946, %v2943, %v2712
      %v2978 = vsel %vm2946, %v2945, %v2714
      %v2979 = vld [vmem:[%s210] sm:$0xf]
      %v2980 = vld [vmem:[%s210 + $0x4] sm:$0xf]
      %v2981 = vld [vmem:[%s210 + $0x8] sm:$0xf]
      %v2982 = vld [vmem:[%s210 + $0xc] sm:$0xf]
      %v2983 = vld [vmem:[%s210 + $0x10] sm:$0xf]
      %v2984 = vld [vmem:[%s210 + $0x14] sm:$0xf]
      %v2985 = vld [vmem:[%s210 + $0x18] sm:$0x7]
      %v2986 = vld [vmem:[%s213] sm:$0x1]
      %v2988 = vperm.slane %v2986, 0
      %v2997 = vunpack.c.l.b16 %v2979
      %v2998 = vunpack.c.l.b16 %v2980
      %v2999 = vunpack.c.l.b16 %v2981
      %v3000 = vunpack.c.l.b16 %v2982
      %v3001 = vunpack.c.l.b16 %v2983
      %v3002 = vunpack.c.l.b16 %v2984
      %v3003 = vunpack.c.l.b16 %v2985
      %v3004 = vpack.c.b16 %v2998, %v2997
      %v3005 = vpack.c.b16 %v3000, %v2999
      %v3006 = vpack.c.b16 %v3002, %v3001
      %v3007 = vpack.c.b16 %v3003, %v3003
      %vm3011 = vcmask 441344
      %v3012 = vsel %vm3011, %v2948, 0
      %v3014 = vsel %vm3011, %v2950, 0
      %v3016 = vsel %vm3011, %v2952, 0
      %v3018 = vsel %vm3011, %v2954, 0
      %v3020 = vsel %vm3011, %v2956, 0
      %v3022 = vsel %vm3011, %v2958, 0
      %v3024 = vsel %vm3011, %v2960, 0
      %v3026 = vsel %vm3011, %v2962, 0
      %v3028 = vsel %vm3011, %v2964, 0
      %v3030 = vsel %vm3011, %v2966, 0
      %v3032 = vsel %vm3011, %v2968, 0
      %v3034 = vsel %vm3011, %v2970, 0
      %v3036 = vsel %vm3011, %v2972, 0
      %v3038 = vsel %vm3011, %v2974, 0
      %v3040 = vsel %vm3011, %v2976, 0
      %v3042 = vsel %vm3011, %v2978, 0
      %vm3044 = vcmask 1042432
      %v3046 = vsel %vm3044, %v3007, 0
      %3048 = vmatpush.bf16.msra.mxu0 0
      %3049 = vmatpush.bf16.msra.mxu0 0
      %3050 = vmatpush.bf16.msra.mxu0 0
      %3051 = vmatpush.bf16.msra.mxu0 0
      %3052 = vmatpush.bf16.msra.mxu0 %v3046
      %3053 = vmatpush.bf16.msra.mxu0 %v3006
      %3054 = vmatpush.bf16.msra.mxu0 %v3005
      %3055 = vmatpush.bf16.msra.mxu0 %v3004
      %3056 = vmatmul.bf16.gmra.mxu0 %v3012
      %v3057 = vpop.f32.mrf.mxu0
      %v3058 = vadd.f32 %v2988, %v3057
      %v3059 = vpop.f32.mrf.mxu0
      %v3060 = vadd.f32 %v2988, %v3059
      %3061 = vmatmul.bf16.gmra.mxu0 %v3014
      %v3062 = vpop.f32.mrf.mxu0
      %v3063 = vadd.f32 %v2988, %v3062
      %v3064 = vpop.f32.mrf.mxu0
      %v3065 = vadd.f32 %v2988, %v3064
      %3066 = vmatmul.bf16.gmra.mxu0 %v3016
      %v3067 = vpop.f32.mrf.mxu0
      %v3068 = vadd.f32 %v2988, %v3067
      %v3069 = vpop.f32.mrf.mxu0
      %v3070 = vadd.f32 %v2988, %v3069
      %3071 = vmatmul.bf16.gmra.mxu0 %v3018
      %v3072 = vpop.f32.mrf.mxu0
      %v3073 = vadd.f32 %v2988, %v3072
      %v3074 = vpop.f32.mrf.mxu0
      %v3075 = vadd.f32 %v2988, %v3074
      %3076 = vmatmul.bf16.gmra.mxu0 %v3020
      %v3077 = vpop.f32.mrf.mxu0
      %v3078 = vadd.f32 %v2988, %v3077
      %v3079 = vpop.f32.mrf.mxu0
      %v3080 = vadd.f32 %v2988, %v3079
      %3081 = vmatmul.bf16.gmra.mxu0 %v3022
      %v3082 = vpop.f32.mrf.mxu0
      %v3083 = vadd.f32 %v2988, %v3082
      %v3084 = vpop.f32.mrf.mxu0
      %v3085 = vadd.f32 %v2988, %v3084
      %3086 = vmatmul.bf16.gmra.mxu0 %v3024
      %v3087 = vpop.f32.mrf.mxu0
      %v3088 = vadd.f32 %v2988, %v3087
      %v3089 = vpop.f32.mrf.mxu0
      %v3090 = vadd.f32 %v2988, %v3089
      %3091 = vmatmul.bf16.gmra.mxu0 %v3026
      %v3092 = vpop.f32.mrf.mxu0
      %v3093 = vadd.f32 %v2988, %v3092
      %v3094 = vpop.f32.mrf.mxu0
      %v3095 = vadd.f32 %v2988, %v3094
      %3096 = vmatmul.bf16.gmra.mxu0 %v3028
      %v3097 = vpop.f32.mrf.mxu0
      %v3098 = vadd.f32 %v2988, %v3097
      %v3099 = vpop.f32.mrf.mxu0
      %v3100 = vadd.f32 %v2988, %v3099
      %3101 = vmatmul.bf16.gmra.mxu0 %v3030
      %v3102 = vpop.f32.mrf.mxu0
      %v3103 = vadd.f32 %v2988, %v3102
      %v3104 = vpop.f32.mrf.mxu0
      %v3105 = vadd.f32 %v2988, %v3104
      %3106 = vmatmul.bf16.gmra.mxu0 %v3032
      %v3107 = vpop.f32.mrf.mxu0
      %v3108 = vadd.f32 %v2988, %v3107
      %v3109 = vpop.f32.mrf.mxu0
      %v3110 = vadd.f32 %v2988, %v3109
      %3111 = vmatmul.bf16.gmra.mxu0 %v3034
      %v3112 = vpop.f32.mrf.mxu0
      %v3113 = vadd.f32 %v2988, %v3112
      %v3114 = vpop.f32.mrf.mxu0
      %v3115 = vadd.f32 %v2988, %v3114
      %3116 = vmatmul.bf16.gmra.mxu0 %v3036
      %v3117 = vpop.f32.mrf.mxu0
      %v3118 = vadd.f32 %v2988, %v3117
      %v3119 = vpop.f32.mrf.mxu0
      %v3120 = vadd.f32 %v2988, %v3119
      %3121 = vmatmul.bf16.gmra.mxu0 %v3038
      %v3122 = vpop.f32.mrf.mxu0
      %v3123 = vadd.f32 %v2988, %v3122
      %v3124 = vpop.f32.mrf.mxu0
      %v3125 = vadd.f32 %v2988, %v3124
      %3126 = vmatmul.bf16.gmra.mxu0 %v3040
      %v3127 = vpop.f32.mrf.mxu0
      %v3128 = vadd.f32 %v2988, %v3127
      %v3129 = vpop.f32.mrf.mxu0
      %v3130 = vadd.f32 %v2988, %v3129
      %3131 = vmatmul.bf16.gmra.mxu0 %v3042
      %v3132 = vpop.f32.mrf.mxu0
      %v3133 = vadd.f32 %v2988, %v3132
      %v3134 = vpop.f32.mrf.mxu0
      %v3135 = vadd.f32 %v2988, %v3134
      %3136 = vdwg.mxu0
      %v3137 = vmax.f32 %v3058, 0.0
      %v3138 = vmax.f32 %v3060, 0.0
      %v3139 = vmax.f32 %v3063, 0.0
      %v3140 = vmax.f32 %v3065, 0.0
      %v3141 = vmax.f32 %v3068, 0.0
      %v3142 = vmax.f32 %v3070, 0.0
      %v3143 = vmax.f32 %v3073, 0.0
      %v3144 = vmax.f32 %v3075, 0.0
      %v3145 = vmax.f32 %v3078, 0.0
      %v3146 = vmax.f32 %v3080, 0.0
      %v3147 = vmax.f32 %v3083, 0.0
      %v3148 = vmax.f32 %v3085, 0.0
      %v3149 = vmax.f32 %v3088, 0.0
      %v3150 = vmax.f32 %v3090, 0.0
      %v3151 = vmax.f32 %v3093, 0.0
      %v3152 = vmax.f32 %v3095, 0.0
      %v3153 = vmax.f32 %v3098, 0.0
      %v3154 = vmax.f32 %v3100, 0.0
      %v3155 = vmax.f32 %v3103, 0.0
      %v3156 = vmax.f32 %v3105, 0.0
      %v3157 = vmax.f32 %v3108, 0.0
      %v3158 = vmax.f32 %v3110, 0.0
      %v3159 = vmax.f32 %v3113, 0.0
      %v3160 = vmax.f32 %v3115, 0.0
      %v3161 = vmax.f32 %v3118, 0.0
      %v3162 = vmax.f32 %v3120, 0.0
      %v3163 = vmax.f32 %v3123, 0.0
      %v3164 = vmax.f32 %v3125, 0.0
      %v3165 = vmax.f32 %v3128, 0.0
      %v3166 = vmax.f32 %v3130, 0.0
      %v3167 = vmax.f32 %v3133, 0.0
      %v3168 = vmax.f32 %v3135, 0.0
      %v3169 = vpack.c.bf16 %v3137, %v3137
      %v3170 = vpack.c.bf16 %v3138, %v3138
      %v3171 = vpack.c.bf16 %v3139, %v3139
      %v3172 = vpack.c.bf16 %v3140, %v3140
      %v3173 = vpack.c.bf16 %v3141, %v3141
      %v3174 = vpack.c.bf16 %v3142, %v3142
      %v3175 = vpack.c.bf16 %v3143, %v3143
      %v3176 = vpack.c.bf16 %v3144, %v3144
      %v3177 = vpack.c.bf16 %v3145, %v3145
      %v3178 = vpack.c.bf16 %v3146, %v3146
      %v3179 = vpack.c.bf16 %v3147, %v3147
      %v3180 = vpack.c.bf16 %v3148, %v3148
      %v3181 = vpack.c.bf16 %v3149, %v3149
      %v3182 = vpack.c.bf16 %v3150, %v3150
      %v3183 = vpack.c.bf16 %v3151, %v3151
      %v3184 = vpack.c.bf16 %v3152, %v3152
      %v3185 = vpack.c.bf16 %v3153, %v3153
      %v3186 = vpack.c.bf16 %v3154, %v3154
      %v3187 = vpack.c.bf16 %v3155, %v3155
      %v3188 = vpack.c.bf16 %v3156, %v3156
      %v3189 = vpack.c.bf16 %v3157, %v3157
      %v3190 = vpack.c.bf16 %v3158, %v3158
      %v3191 = vpack.c.bf16 %v3159, %v3159
      %v3192 = vpack.c.bf16 %v3160, %v3160
      %v3193 = vpack.c.bf16 %v3161, %v3161
      %v3194 = vpack.c.bf16 %v3162, %v3162
      %v3195 = vpack.c.bf16 %v3163, %v3163
      %v3196 = vpack.c.bf16 %v3164, %v3164
      %v3197 = vpack.c.bf16 %v3165, %v3165
      %v3198 = vpack.c.bf16 %v3166, %v3166
      %v3199 = vpack.c.bf16 %v3167, %v3167
      %v3200 = vpack.c.bf16 %v3168, %v3168
      %vm3201 = vcmask 125952
      %3202 = vst.msk [vmem:[%s221] sm:$0xf] %vm3201, %v3169
      %3203 = vst.msk [vmem:[%s221 + $0x4] sm:$0xf] %vm3201, %v3170
      %3204 = vst.msk [vmem:[%s221 + $0x8] sm:$0xf] %vm3201, %v3171
      %3205 = vst.msk [vmem:[%s221 + $0xc] sm:$0xf] %vm3201, %v3172
      %3206 = vst.msk [vmem:[%s221 + $0x10] sm:$0xf] %vm3201, %v3173
      %3207 = vst.msk [vmem:[%s221 + $0x14] sm:$0xf] %vm3201, %v3174
      %3208 = vst.msk [vmem:[%s221 + $0x18] sm:$0xf] %vm3201, %v3175
      %3209 = vst.msk [vmem:[%s221 + $0x1c] sm:$0xf] %vm3201, %v3176
      %3210 = vst.msk [vmem:[%s221 + $0x20] sm:$0xf] %vm3201, %v3177
      %3211 = vst.msk [vmem:[%s221 + $0x24] sm:$0xf] %vm3201, %v3178
      %3212 = vst.msk [vmem:[%s221 + $0x28] sm:$0xf] %vm3201, %v3179
      %3213 = vst.msk [vmem:[%s221 + $0x2c] sm:$0xf] %vm3201, %v3180
      %3214 = vst.msk [vmem:[%s221 + $0x30] sm:$0xf] %vm3201, %v3181
      %3215 = vst.msk [vmem:[%s221 + $0x34] sm:$0xf] %vm3201, %v3182
      %3216 = vst.msk [vmem:[%s221 + $0x38] sm:$0xf] %vm3201, %v3183
      %3217 = vst.msk [vmem:[%s221 + $0x3c] sm:$0xf] %vm3201, %v3184
      %3218 = vst.msk [vmem:[%s221 + $0x40] sm:$0xf] %vm3201, %v3185
      %3219 = vst.msk [vmem:[%s221 + $0x44] sm:$0xf] %vm3201, %v3186
      %3220 = vst.msk [vmem:[%s221 + $0x48] sm:$0xf] %vm3201, %v3187
      %3221 = vst.msk [vmem:[%s221 + $0x4c] sm:$0xf] %vm3201, %v3188
      %3222 = vst.msk [vmem:[%s221 + $0x50] sm:$0xf] %vm3201, %v3189
      %3223 = vst.msk [vmem:[%s221 + $0x54] sm:$0xf] %vm3201, %v3190
      %3224 = vst.msk [vmem:[%s221 + $0x58] sm:$0xf] %vm3201, %v3191
      %3225 = vst.msk [vmem:[%s221 + $0x5c] sm:$0xf] %vm3201, %v3192
      %3226 = vst.msk [vmem:[%s221 + $0x60] sm:$0xf] %vm3201, %v3193
      %3227 = vst.msk [vmem:[%s221 + $0x64] sm:$0xf] %vm3201, %v3194
      %3228 = vst.msk [vmem:[%s221 + $0x68] sm:$0xf] %vm3201, %v3195
      %3229 = vst.msk [vmem:[%s221 + $0x6c] sm:$0xf] %vm3201, %v3196
      %3230 = vst.msk [vmem:[%s221 + $0x70] sm:$0xf] %vm3201, %v3197
      %3231 = vst.msk [vmem:[%s221 + $0x74] sm:$0xf] %vm3201, %v3198
      %3232 = vst.msk [vmem:[%s221 + $0x78] sm:$0xf] %vm3201, %v3199
      %3233 = vst.msk [vmem:[%s221 + $0x7c] sm:$0xf] %vm3201, %v3200
      %s3234 = scalar_lea.vmem [#allocation2], 160
      %v3235 = vld [vmem:[%s3234] sm:$0xf]
      %v3236 = vld [vmem:[%s3234 + $0x4] sm:$0xf]
      %v3237 = vld [vmem:[%s3234 + $0x8] sm:$0xf]
      %v3238 = vld [vmem:[%s3234 + $0xc] sm:$0xf]
      %v3239 = vld [vmem:[%s3234 + $0x10] sm:$0x1]
      %v3240 = vld [vmem:[%s3234 + $0x14] sm:$0xf]
      %v3241 = vld [vmem:[%s3234 + $0x18] sm:$0xf]
      %v3242 = vld [vmem:[%s3234 + $0x1c] sm:$0xf]
      %v3243 = vld [vmem:[%s3234 + $0x20] sm:$0xf]
      %v3244 = vld [vmem:[%s3234 + $0x24] sm:$0x1]
      %v3245 = vld [vmem:[%s3234 + $0x28] sm:$0xf]
      %v3246 = vld [vmem:[%s3234 + $0x2c] sm:$0xf]
      %v3247 = vld [vmem:[%s3234 + $0x30] sm:$0xf]
      %v3248 = vld [vmem:[%s3234 + $0x34] sm:$0xf]
      %v3249 = vld [vmem:[%s3234 + $0x38] sm:$0x1]
      %v3250 = vld [vmem:[%s3234 + $0x3c] sm:$0xf]
      %v3251 = vld [vmem:[%s3234 + $0x40] sm:$0xf]
      %v3252 = vld [vmem:[%s3234 + $0x44] sm:$0xf]
      %v3253 = vld [vmem:[%s3234 + $0x48] sm:$0xf]
      %v3254 = vld [vmem:[%s3234 + $0x4c] sm:$0x1]
      %v3255 = vld [vmem:[%s3234 + $0x50] sm:$0xf]
      %v3256 = vld [vmem:[%s3234 + $0x54] sm:$0xf]
      %v3257 = vld [vmem:[%s3234 + $0x58] sm:$0xf]
      %v3258 = vld [vmem:[%s3234 + $0x5c] sm:$0xf]
      %v3259 = vld [vmem:[%s3234 + $0x60] sm:$0x1]
      %v3260 = vld [vmem:[%s3234 + $0x64] sm:$0xf]
      %v3261 = vld [vmem:[%s3234 + $0x68] sm:$0xf]
      %v3262 = vld [vmem:[%s3234 + $0x6c] sm:$0xf]
      %v3263 = vld [vmem:[%s3234 + $0x70] sm:$0xf]
      %v3264 = vld [vmem:[%s3234 + $0x74] sm:$0x1]
      %v3265 = vld [vmem:[%s3234 + $0x78] sm:$0xf]
      %v3266 = vld [vmem:[%s3234 + $0x7c] sm:$0xf]
      %v3267 = vld [vmem:[%s3234 + $0x80] sm:$0xf]
      %v3268 = vld [vmem:[%s3234 + $0x84] sm:$0xf]
      %v3269 = vld [vmem:[%s3234 + $0x88] sm:$0x1]
      %v3270 = vld [vmem:[%s3234 + $0x8c] sm:$0xf]
      %v3271 = vld [vmem:[%s3234 + $0x90] sm:$0xf]
      %v3272 = vld [vmem:[%s3234 + $0x94] sm:$0xf]
      %v3273 = vld [vmem:[%s3234 + $0x98] sm:$0xf]
      %v3274 = vld [vmem:[%s3234 + $0x9c] sm:$0x1]
      %v3275 = vld [vmem:[%s3234 + $0xa0] sm:$0xf]
      %v3276 = vld [vmem:[%s3234 + $0xa4] sm:$0xf]
      %v3277 = vld [vmem:[%s3234 + $0xa8] sm:$0xf]
      %v3278 = vld [vmem:[%s3234 + $0xac] sm:$0xf]
      %v3279 = vld [vmem:[%s3234 + $0xb0] sm:$0x1]
      %v3280 = vld [vmem:[%s3234 + $0xb4] sm:$0xf]
      %v3281 = vld [vmem:[%s3234 + $0xb8] sm:$0xf]
      %v3282 = vld [vmem:[%s3234 + $0xbc] sm:$0xf]
      %v3283 = vld [vmem:[%s3234 + $0xc0] sm:$0xf]
      %v3284 = vld [vmem:[%s3234 + $0xc4] sm:$0x1]
      %v3317 = vunpack.c.l.b16 %v3235
      %v3318 = vunpack.c.l.b16 %v3236
      %v3319 = vunpack.c.l.b16 %v3237
      %v3320 = vunpack.c.l.b16 %v3238
      %v3321 = vunpack.c.l.b16 %v3240
      %v3322 = vunpack.c.l.b16 %v3241
      %v3323 = vunpack.c.l.b16 %v3242
      %v3324 = vunpack.c.l.b16 %v3243
      %v3325 = vunpack.c.l.b16 %v3245
      %v3326 = vunpack.c.l.b16 %v3246
      %v3327 = vunpack.c.l.b16 %v3247
      %v3328 = vunpack.c.l.b16 %v3248
      %v3329 = vunpack.c.l.b16 %v3250
      %v3330 = vunpack.c.l.b16 %v3251
      %v3331 = vunpack.c.l.b16 %v3252
      %v3332 = vunpack.c.l.b16 %v3253
      %v3333 = vunpack.c.l.b16 %v3255
      %v3334 = vunpack.c.l.b16 %v3256
      %v3335 = vunpack.c.l.b16 %v3257
      %v3336 = vunpack.c.l.b16 %v3258
      %v3337 = vunpack.c.l.b16 %v3260
      %v3338 = vunpack.c.l.b16 %v3261
      %v3339 = vunpack.c.l.b16 %v3262
      %v3340 = vunpack.c.l.b16 %v3263
      %v3341 = vunpack.c.l.b16 %v3265
      %v3342 = vunpack.c.l.b16 %v3266
      %v3343 = vunpack.c.l.b16 %v3267
      %v3344 = vunpack.c.l.b16 %v3268
      %v3345 = vunpack.c.l.b16 %v3270
      %v3346 = vunpack.c.l.b16 %v3271
      %v3347 = vunpack.c.l.b16 %v3272
      %v3348 = vunpack.c.l.b16 %v3273
      %v3349 = vpack.c.b16 %v3318, %v3317
      %v3350 = vpack.c.b16 %v3320, %v3319
      %v3351 = vpack.c.b16 %v3322, %v3321
      %v3352 = vpack.c.b16 %v3324, %v3323
      %v3353 = vpack.c.b16 %v3326, %v3325
      %v3354 = vpack.c.b16 %v3328, %v3327
      %v3355 = vpack.c.b16 %v3330, %v3329
      %v3356 = vpack.c.b16 %v3332, %v3331
      %v3357 = vpack.c.b16 %v3334, %v3333
      %v3358 = vpack.c.b16 %v3336, %v3335
      %v3359 = vpack.c.b16 %v3338, %v3337
      %v3360 = vpack.c.b16 %v3340, %v3339
      %v3361 = vpack.c.b16 %v3342, %v3341
      %v3362 = vpack.c.b16 %v3344, %v3343
      %v3363 = vpack.c.b16 %v3346, %v3345
      %v3364 = vpack.c.b16 %v3348, %v3347
      %v3373 = vunpack.c.l.b16 %v3239
      %v3374 = vunpack.c.l.b16 %v3244
      %v3375 = vunpack.c.l.b16 %v3249
      %v3376 = vunpack.c.l.b16 %v3254
      %v3377 = vunpack.c.l.b16 %v3259
      %v3378 = vunpack.c.l.b16 %v3264
      %v3379 = vunpack.c.l.b16 %v3269
      %v3380 = vunpack.c.l.b16 %v3274
      %v3381 = vpack.c.b16 %v3373, %v3373
      %v3382 = vpack.c.b16 %v3374, %v3374
      %v3383 = vpack.c.b16 %v3375, %v3375
      %v3384 = vpack.c.b16 %v3376, %v3376
      %v3385 = vpack.c.b16 %v3377, %v3377
      %v3386 = vpack.c.b16 %v3378, %v3378
      %v3387 = vpack.c.b16 %v3379, %v3379
      %v3388 = vpack.c.b16 %v3380, %v3380
      %v3390 = vshrl.u32 %v3349, 16
      %v3392 = vshll.u32 %v3349, 16
      %v3394 = vrot.slane %v3392, 1
      %v3395 = vor.u32 %v3390, %v3394
      %v3397 = vshll.u32 %v3350, 16
      %v3399 = vrot.slane %v3397, 1
      %v3400 = vsel %vm2181, %v3395, %v3399
      %v3401 = vshrl.u32 %v3350, 16
      %v3403 = vor.u32 %v3401, %v3399
      %v3405 = vshll.u32 %v3381, 16
      %v3407 = vrot.slane %v3405, 1
      %v3408 = vsel %vm2181, %v3403, %v3407
      %v3410 = vshrl.u32 %v3351, 16
      %v3412 = vshll.u32 %v3351, 16
      %v3414 = vrot.slane %v3412, 1
      %v3415 = vor.u32 %v3410, %v3414
      %v3417 = vshll.u32 %v3352, 16
      %v3419 = vrot.slane %v3417, 1
      %v3420 = vsel %vm2181, %v3415, %v3419
      %v3421 = vshrl.u32 %v3352, 16
      %v3423 = vor.u32 %v3421, %v3419
      %v3425 = vshll.u32 %v3382, 16
      %v3427 = vrot.slane %v3425, 1
      %v3428 = vsel %vm2181, %v3423, %v3427
      %v3430 = vshrl.u32 %v3353, 16
      %v3432 = vshll.u32 %v3353, 16
      %v3434 = vrot.slane %v3432, 1
      %v3435 = vor.u32 %v3430, %v3434
      %v3437 = vshll.u32 %v3354, 16
      %v3439 = vrot.slane %v3437, 1
      %v3440 = vsel %vm2181, %v3435, %v3439
      %v3441 = vshrl.u32 %v3354, 16
      %v3443 = vor.u32 %v3441, %v3439
      %v3445 = vshll.u32 %v3383, 16
      %v3447 = vrot.slane %v3445, 1
      %v3448 = vsel %vm2181, %v3443, %v3447
      %v3450 = vshrl.u32 %v3355, 16
      %v3452 = vshll.u32 %v3355, 16
      %v3454 = vrot.slane %v3452, 1
      %v3455 = vor.u32 %v3450, %v3454
      %v3457 = vshll.u32 %v3356, 16
      %v3459 = vrot.slane %v3457, 1
      %v3460 = vsel %vm2181, %v3455, %v3459
      %v3461 = vshrl.u32 %v3356, 16
      %v3463 = vor.u32 %v3461, %v3459
      %v3465 = vshll.u32 %v3384, 16
      %v3467 = vrot.slane %v3465, 1
      %v3468 = vsel %vm2181, %v3463, %v3467
      %v3470 = vshrl.u32 %v3357, 16
      %v3472 = vshll.u32 %v3357, 16
      %v3474 = vrot.slane %v3472, 1
      %v3475 = vor.u32 %v3470, %v3474
      %v3477 = vshll.u32 %v3358, 16
      %v3479 = vrot.slane %v3477, 1
      %v3480 = vsel %vm2181, %v3475, %v3479
      %v3481 = vshrl.u32 %v3358, 16
      %v3483 = vor.u32 %v3481, %v3479
      %v3485 = vshll.u32 %v3385, 16
      %v3487 = vrot.slane %v3485, 1
      %v3488 = vsel %vm2181, %v3483, %v3487
      %v3490 = vshrl.u32 %v3359, 16
      %v3492 = vshll.u32 %v3359, 16
      %v3494 = vrot.slane %v3492, 1
      %v3495 = vor.u32 %v3490, %v3494
      %v3497 = vshll.u32 %v3360, 16
      %v3499 = vrot.slane %v3497, 1
      %v3500 = vsel %vm2181, %v3495, %v3499
      %v3501 = vshrl.u32 %v3360, 16
      %v3503 = vor.u32 %v3501, %v3499
      %v3505 = vshll.u32 %v3386, 16
      %v3507 = vrot.slane %v3505, 1
      %v3508 = vsel %vm2181, %v3503, %v3507
      %v3510 = vshrl.u32 %v3361, 16
      %v3512 = vshll.u32 %v3361, 16
      %v3514 = vrot.slane %v3512, 1
      %v3515 = vor.u32 %v3510, %v3514
      %v3517 = vshll.u32 %v3362, 16
      %v3519 = vrot.slane %v3517, 1
      %v3520 = vsel %vm2181, %v3515, %v3519
      %v3521 = vshrl.u32 %v3362, 16
      %v3523 = vor.u32 %v3521, %v3519
      %v3525 = vshll.u32 %v3387, 16
      %v3527 = vrot.slane %v3525, 1
      %v3528 = vsel %vm2181, %v3523, %v3527
      %v3530 = vshrl.u32 %v3363, 16
      %v3532 = vshll.u32 %v3363, 16
      %v3534 = vrot.slane %v3532, 1
      %v3535 = vor.u32 %v3530, %v3534
      %v3537 = vshll.u32 %v3364, 16
      %v3539 = vrot.slane %v3537, 1
      %v3540 = vsel %vm2181, %v3535, %v3539
      %v3541 = vshrl.u32 %v3364, 16
      %v3543 = vor.u32 %v3541, %v3539
      %v3545 = vshll.u32 %v3388, 16
      %v3547 = vrot.slane %v3545, 1
      %v3548 = vsel %vm2181, %v3543, %v3547
      %3549 = vrot.lane.b32.xlu0 %v3400, 6
      %v3550 = vpop.permute.xlu0 %3549
      %3551 = vrot.lane.b32.xlu0 %v3408, 6
      %v3552 = vpop.permute.xlu0 %3551
      %3553 = vrot.lane.b32.xlu0 %v3420, 6
      %v3554 = vpop.permute.xlu0 %3553
      %3555 = vrot.lane.b32.xlu0 %v3428, 6
      %v3556 = vpop.permute.xlu0 %3555
      %3557 = vrot.lane.b32.xlu0 %v3440, 6
      %v3558 = vpop.permute.xlu0 %3557
      %3559 = vrot.lane.b32.xlu0 %v3448, 6
      %v3560 = vpop.permute.xlu0 %3559
      %3561 = vrot.lane.b32.xlu0 %v3460, 6
      %v3562 = vpop.permute.xlu0 %3561
      %3563 = vrot.lane.b32.xlu0 %v3468, 6
      %v3564 = vpop.permute.xlu0 %3563
      %3565 = vrot.lane.b32.xlu0 %v3480, 6
      %v3566 = vpop.permute.xlu0 %3565
      %3567 = vrot.lane.b32.xlu0 %v3488, 6
      %v3568 = vpop.permute.xlu0 %3567
      %3569 = vrot.lane.b32.xlu0 %v3500, 6
      %v3570 = vpop.permute.xlu0 %3569
      %3571 = vrot.lane.b32.xlu0 %v3508, 6
      %v3572 = vpop.permute.xlu0 %3571
      %3573 = vrot.lane.b32.xlu0 %v3520, 6
      %v3574 = vpop.permute.xlu0 %3573
      %3575 = vrot.lane.b32.xlu0 %v3528, 6
      %v3576 = vpop.permute.xlu0 %3575
      %3577 = vrot.lane.b32.xlu0 %v3540, 6
      %v3578 = vpop.permute.xlu0 %3577
      %3579 = vrot.lane.b32.xlu0 %v3548, 6
      %v3580 = vpop.permute.xlu0 %3579
      %v3581 = vrot.slane %v3349, 1
      %v3582 = vrot.slane %v3350, 1
      %v3583 = vsel %vm2374, %v3581, %v3582
      %v3584 = vrot.slane %v3381, 1
      %v3585 = vsel %vm2374, %v3582, %v3584
      %v3586 = vrot.slane %v3351, 1
      %v3587 = vrot.slane %v3352, 1
      %v3588 = vsel %vm2374, %v3586, %v3587
      %v3589 = vrot.slane %v3382, 1
      %v3590 = vsel %vm2374, %v3587, %v3589
      %v3591 = vrot.slane %v3353, 1
      %v3592 = vrot.slane %v3354, 1
      %v3593 = vsel %vm2374, %v3591, %v3592
      %v3594 = vrot.slane %v3383, 1
      %v3595 = vsel %vm2374, %v3592, %v3594
      %v3596 = vrot.slane %v3355, 1
      %v3597 = vrot.slane %v3356, 1
      %v3598 = vsel %vm2374, %v3596, %v3597
      %v3599 = vrot.slane %v3384, 1
      %v3600 = vsel %vm2374, %v3597, %v3599
      %v3601 = vrot.slane %v3357, 1
      %v3602 = vrot.slane %v3358, 1
      %v3603 = vsel %vm2374, %v3601, %v3602
      %v3604 = vrot.slane %v3385, 1
      %v3605 = vsel %vm2374, %v3602, %v3604
      %v3606 = vrot.slane %v3359, 1
      %v3607 = vrot.slane %v3360, 1
      %v3608 = vsel %vm2374, %v3606, %v3607
      %v3609 = vrot.slane %v3386, 1
      %v3610 = vsel %vm2374, %v3607, %v3609
      %v3611 = vrot.slane %v3361, 1
      %v3612 = vrot.slane %v3362, 1
      %v3613 = vsel %vm2374, %v3611, %v3612
      %v3614 = vrot.slane %v3387, 1
      %v3615 = vsel %vm2374, %v3612, %v3614
      %v3616 = vrot.slane %v3363, 1
      %v3617 = vrot.slane %v3364, 1
      %v3618 = vsel %vm2374, %v3616, %v3617
      %v3619 = vrot.slane %v3388, 1
      %v3620 = vsel %vm2374, %v3617, %v3619
      %3621 = vrot.lane.b32.xlu0 %v3583, 12
      %v3622 = vpop.permute.xlu0 %3621
      %3623 = vrot.lane.b32.xlu0 %v3585, 12
      %v3624 = vpop.permute.xlu0 %3623
      %3625 = vrot.lane.b32.xlu0 %v3588, 12
      %v3626 = vpop.permute.xlu0 %3625
      %3627 = vrot.lane.b32.xlu0 %v3590, 12
      %v3628 = vpop.permute.xlu0 %3627
      %3629 = vrot.lane.b32.xlu0 %v3593, 12
      %v3630 = vpop.permute.xlu0 %3629
      %3631 = vrot.lane.b32.xlu0 %v3595, 12
      %v3632 = vpop.permute.xlu0 %3631
      %3633 = vrot.lane.b32.xlu0 %v3598, 12
      %v3634 = vpop.permute.xlu0 %3633
      %3635 = vrot.lane.b32.xlu0 %v3600, 12
      %v3636 = vpop.permute.xlu0 %3635
      %3637 = vrot.lane.b32.xlu0 %v3603, 12
      %v3638 = vpop.permute.xlu0 %3637
      %3639 = vrot.lane.b32.xlu0 %v3605, 12
      %v3640 = vpop.permute.xlu0 %3639
      %3641 = vrot.lane.b32.xlu0 %v3608, 12
      %v3642 = vpop.permute.xlu0 %3641
      %3643 = vrot.lane.b32.xlu0 %v3610, 12
      %v3644 = vpop.permute.xlu0 %3643
      %3645 = vrot.lane.b32.xlu0 %v3613, 12
      %v3646 = vpop.permute.xlu0 %3645
      %3647 = vrot.lane.b32.xlu0 %v3615, 12
      %v3648 = vpop.permute.xlu0 %3647
      %3649 = vrot.lane.b32.xlu0 %v3618, 12
      %v3650 = vpop.permute.xlu0 %3649
      %3651 = vrot.lane.b32.xlu0 %v3620, 12
      %v3652 = vpop.permute.xlu0 %3651
      %v3657 = vunpack.c.l.b16 %v3275
      %v3658 = vunpack.c.l.b16 %v3276
      %v3659 = vunpack.c.l.b16 %v3277
      %v3660 = vunpack.c.l.b16 %v3278
      %v3661 = vpack.c.b16 %v3658, %v3657
      %v3662 = vpack.c.b16 %v3660, %v3659
      %3663 = vrot.lane.b32.xlu0 %v3351, 18
      %v3664 = vpop.permute.xlu0 %3663
      %3665 = vrot.lane.b32.xlu0 %v3352, 18
      %v3666 = vpop.permute.xlu0 %3665
      %3667 = vrot.lane.b32.xlu0 %v3353, 18
      %v3668 = vpop.permute.xlu0 %3667
      %3669 = vrot.lane.b32.xlu0 %v3354, 18
      %v3670 = vpop.permute.xlu0 %3669
      %3671 = vrot.lane.b32.xlu0 %v3355, 18
      %v3672 = vpop.permute.xlu0 %3671
      %3673 = vrot.lane.b32.xlu0 %v3356, 18
      %v3674 = vpop.permute.xlu0 %3673
      %3675 = vrot.lane.b32.xlu0 %v3357, 18
      %v3676 = vpop.permute.xlu0 %3675
      %3677 = vrot.lane.b32.xlu0 %v3358, 18
      %v3678 = vpop.permute.xlu0 %3677
      %3679 = vrot.lane.b32.xlu0 %v3359, 18
      %v3680 = vpop.permute.xlu0 %3679
      %3681 = vrot.lane.b32.xlu0 %v3360, 18
      %v3682 = vpop.permute.xlu0 %3681
      %3683 = vrot.lane.b32.xlu0 %v3361, 18
      %v3684 = vpop.permute.xlu0 %3683
      %3685 = vrot.lane.b32.xlu0 %v3362, 18
      %v3686 = vpop.permute.xlu0 %3685
      %3687 = vrot.lane.b32.xlu0 %v3363, 18
      %v3688 = vpop.permute.xlu0 %3687
      %3689 = vrot.lane.b32.xlu0 %v3364, 18
      %v3690 = vpop.permute.xlu0 %3689
      %3691 = vrot.lane.b32.xlu0 %v3661, 18
      %v3692 = vpop.permute.xlu0 %3691
      %3693 = vrot.lane.b32.xlu0 %v3662, 18
      %v3694 = vpop.permute.xlu0 %3693
      %v3696 = vunpack.c.l.b16 %v3279
      %v3697 = vpack.c.b16 %v3696, %v3696
      %v3699 = vshrl.u32 %v3661, 16
      %v3701 = vshll.u32 %v3661, 16
      %v3703 = vrot.slane %v3701, 1
      %v3704 = vor.u32 %v3699, %v3703
      %v3706 = vshll.u32 %v3662, 16
      %v3708 = vrot.slane %v3706, 1
      %v3709 = vsel %vm2181, %v3704, %v3708
      %v3710 = vshrl.u32 %v3662, 16
      %v3712 = vor.u32 %v3710, %v3708
      %v3714 = vshll.u32 %v3697, 16
      %v3716 = vrot.slane %v3714, 1
      %v3717 = vsel %vm2181, %v3712, %v3716
      %3718 = vrot.lane.b32.xlu0 %v3420, 24
      %v3719 = vpop.permute.xlu0 %3718
      %3720 = vrot.lane.b32.xlu0 %v3428, 24
      %v3721 = vpop.permute.xlu0 %3720
      %3722 = vrot.lane.b32.xlu0 %v3440, 24
      %v3723 = vpop.permute.xlu0 %3722
      %3724 = vrot.lane.b32.xlu0 %v3448, 24
      %v3725 = vpop.permute.xlu0 %3724
      %3726 = vrot.lane.b32.xlu0 %v3460, 24
      %v3727 = vpop.permute.xlu0 %3726
      %3728 = vrot.lane.b32.xlu0 %v3468, 24
      %v3729 = vpop.permute.xlu0 %3728
      %3730 = vrot.lane.b32.xlu0 %v3480, 24
      %v3731 = vpop.permute.xlu0 %3730
      %3732 = vrot.lane.b32.xlu0 %v3488, 24
      %v3733 = vpop.permute.xlu0 %3732
      %3734 = vrot.lane.b32.xlu0 %v3500, 24
      %v3735 = vpop.permute.xlu0 %3734
      %3736 = vrot.lane.b32.xlu0 %v3508, 24
      %v3737 = vpop.permute.xlu0 %3736
      %3738 = vrot.lane.b32.xlu0 %v3520, 24
      %v3739 = vpop.permute.xlu0 %3738
      %3740 = vrot.lane.b32.xlu0 %v3528, 24
      %v3741 = vpop.permute.xlu0 %3740
      %3742 = vrot.lane.b32.xlu0 %v3540, 24
      %v3743 = vpop.permute.xlu0 %3742
      %3744 = vrot.lane.b32.xlu0 %v3548, 24
      %v3745 = vpop.permute.xlu0 %3744
      %3746 = vrot.lane.b32.xlu0 %v3709, 24
      %v3747 = vpop.permute.xlu0 %3746
      %3748 = vrot.lane.b32.xlu0 %v3717, 24
      %v3749 = vpop.permute.xlu0 %3748
      %v3750 = vrot.slane %v3661, 1
      %v3751 = vrot.slane %v3662, 1
      %v3752 = vsel %vm2374, %v3750, %v3751
      %v3753 = vrot.slane %v3697, 1
      %v3754 = vsel %vm2374, %v3751, %v3753
      %3755 = vrot.lane.b32.xlu0 %v3588, 30
      %v3756 = vpop.permute.xlu0 %3755
      %3757 = vrot.lane.b32.xlu0 %v3590, 30
      %v3758 = vpop.permute.xlu0 %3757
      %3759 = vrot.lane.b32.xlu0 %v3593, 30
      %v3760 = vpop.permute.xlu0 %3759
      %3761 = vrot.lane.b32.xlu0 %v3595, 30
      %v3762 = vpop.permute.xlu0 %3761
      %3763 = vrot.lane.b32.xlu0 %v3598, 30
      %v3764 = vpop.permute.xlu0 %3763
      %3765 = vrot.lane.b32.xlu0 %v3600, 30
      %v3766 = vpop.permute.xlu0 %3765
      %3767 = vrot.lane.b32.xlu0 %v3603, 30
      %v3768 = vpop.permute.xlu0 %3767
      %3769 = vrot.lane.b32.xlu0 %v3605, 30
      %v3770 = vpop.permute.xlu0 %3769
      %3771 = vrot.lane.b32.xlu0 %v3608, 30
      %v3772 = vpop.permute.xlu0 %3771
      %3773 = vrot.lane.b32.xlu0 %v3610, 30
      %v3774 = vpop.permute.xlu0 %3773
      %3775 = vrot.lane.b32.xlu0 %v3613, 30
      %v3776 = vpop.permute.xlu0 %3775
      %3777 = vrot.lane.b32.xlu0 %v3615, 30
      %v3778 = vpop.permute.xlu0 %3777
      %3779 = vrot.lane.b32.xlu0 %v3618, 30
      %v3780 = vpop.permute.xlu0 %3779
      %3781 = vrot.lane.b32.xlu0 %v3620, 30
      %v3782 = vpop.permute.xlu0 %3781
      %3783 = vrot.lane.b32.xlu0 %v3752, 30
      %v3784 = vpop.permute.xlu0 %3783
      %3785 = vrot.lane.b32.xlu0 %v3754, 30
      %v3786 = vpop.permute.xlu0 %3785
      %v3791 = vunpack.c.l.b16 %v3280
      %v3792 = vunpack.c.l.b16 %v3281
      %v3793 = vunpack.c.l.b16 %v3282
      %v3794 = vunpack.c.l.b16 %v3283
      %v3795 = vpack.c.b16 %v3792, %v3791
      %v3796 = vpack.c.b16 %v3794, %v3793
      %3797 = vrot.lane.b32.xlu0 %v3353, 36
      %v3798 = vpop.permute.xlu0 %3797
      %3799 = vrot.lane.b32.xlu0 %v3354, 36
      %v3800 = vpop.permute.xlu0 %3799
      %3801 = vrot.lane.b32.xlu0 %v3355, 36
      %v3802 = vpop.permute.xlu0 %3801
      %3803 = vrot.lane.b32.xlu0 %v3356, 36
      %v3804 = vpop.permute.xlu0 %3803
      %3805 = vrot.lane.b32.xlu0 %v3357, 36
      %v3806 = vpop.permute.xlu0 %3805
      %3807 = vrot.lane.b32.xlu0 %v3358, 36
      %v3808 = vpop.permute.xlu0 %3807
      %3809 = vrot.lane.b32.xlu0 %v3359, 36
      %v3810 = vpop.permute.xlu0 %3809
      %3811 = vrot.lane.b32.xlu0 %v3360, 36
      %v3812 = vpop.permute.xlu0 %3811
      %3813 = vrot.lane.b32.xlu0 %v3361, 36
      %v3814 = vpop.permute.xlu0 %3813
      %3815 = vrot.lane.b32.xlu0 %v3362, 36
      %v3816 = vpop.permute.xlu0 %3815
      %3817 = vrot.lane.b32.xlu0 %v3363, 36
      %v3818 = vpop.permute.xlu0 %3817
      %3819 = vrot.lane.b32.xlu0 %v3364, 36
      %v3820 = vpop.permute.xlu0 %3819
      %3821 = vrot.lane.b32.xlu0 %v3661, 36
      %v3822 = vpop.permute.xlu0 %3821
      %3823 = vrot.lane.b32.xlu0 %v3662, 36
      %v3824 = vpop.permute.xlu0 %3823
      %3825 = vrot.lane.b32.xlu0 %v3795, 36
      %v3826 = vpop.permute.xlu0 %3825
      %3827 = vrot.lane.b32.xlu0 %v3796, 36
      %v3828 = vpop.permute.xlu0 %3827
      %v3830 = vunpack.c.l.b16 %v3284
      %v3831 = vpack.c.b16 %v3830, %v3830
      %v3833 = vshrl.u32 %v3795, 16
      %v3835 = vshll.u32 %v3795, 16
      %v3837 = vrot.slane %v3835, 1
      %v3838 = vor.u32 %v3833, %v3837
      %v3840 = vshll.u32 %v3796, 16
      %v3842 = vrot.slane %v3840, 1
      %v3843 = vsel %vm2181, %v3838, %v3842
      %v3844 = vshrl.u32 %v3796, 16
      %v3846 = vor.u32 %v3844, %v3842
      %v3848 = vshll.u32 %v3831, 16
      %v3850 = vrot.slane %v3848, 1
      %v3851 = vsel %vm2181, %v3846, %v3850
      %3852 = vrot.lane.b32.xlu0 %v3440, 42
      %v3853 = vpop.permute.xlu0 %3852
      %3854 = vrot.lane.b32.xlu0 %v3448, 42
      %v3855 = vpop.permute.xlu0 %3854
      %3856 = vrot.lane.b32.xlu0 %v3460, 42
      %v3857 = vpop.permute.xlu0 %3856
      %3858 = vrot.lane.b32.xlu0 %v3468, 42
      %v3859 = vpop.permute.xlu0 %3858
      %3860 = vrot.lane.b32.xlu0 %v3480, 42
      %v3861 = vpop.permute.xlu0 %3860
      %3862 = vrot.lane.b32.xlu0 %v3488, 42
      %v3863 = vpop.permute.xlu0 %3862
      %3864 = vrot.lane.b32.xlu0 %v3500, 42
      %v3865 = vpop.permute.xlu0 %3864
      %3866 = vrot.lane.b32.xlu0 %v3508, 42
      %v3867 = vpop.permute.xlu0 %3866
      %3868 = vrot.lane.b32.xlu0 %v3520, 42
      %v3869 = vpop.permute.xlu0 %3868
      %3870 = vrot.lane.b32.xlu0 %v3528, 42
      %v3871 = vpop.permute.xlu0 %3870
      %3872 = vrot.lane.b32.xlu0 %v3540, 42
      %v3873 = vpop.permute.xlu0 %3872
      %3874 = vrot.lane.b32.xlu0 %v3548, 42
      %v3875 = vpop.permute.xlu0 %3874
      %3876 = vrot.lane.b32.xlu0 %v3709, 42
      %v3877 = vpop.permute.xlu0 %3876
      %3878 = vrot.lane.b32.xlu0 %v3717, 42
      %v3879 = vpop.permute.xlu0 %3878
      %3880 = vrot.lane.b32.xlu0 %v3843, 42
      %v3881 = vpop.permute.xlu0 %3880
      %3882 = vrot.lane.b32.xlu0 %v3851, 42
      %v3883 = vpop.permute.xlu0 %3882
      %v3884 = vrot.slane %v3795, 1
      %v3885 = vrot.slane %v3796, 1
      %v3886 = vsel %vm2374, %v3884, %v3885
      %v3887 = vrot.slane %v3831, 1
      %v3888 = vsel %vm2374, %v3885, %v3887
      %3889 = vrot.lane.b32.xlu0 %v3593, 48
      %v3890 = vpop.permute.xlu0 %3889
      %3891 = vrot.lane.b32.xlu0 %v3595, 48
      %v3892 = vpop.permute.xlu0 %3891
      %3893 = vrot.lane.b32.xlu0 %v3598, 48
      %v3894 = vpop.permute.xlu0 %3893
      %3895 = vrot.lane.b32.xlu0 %v3600, 48
      %v3896 = vpop.permute.xlu0 %3895
      %3897 = vrot.lane.b32.xlu0 %v3603, 48
      %v3898 = vpop.permute.xlu0 %3897
      %3899 = vrot.lane.b32.xlu0 %v3605, 48
      %v3900 = vpop.permute.xlu0 %3899
      %3901 = vrot.lane.b32.xlu0 %v3608, 48
      %v3902 = vpop.permute.xlu0 %3901
      %3903 = vrot.lane.b32.xlu0 %v3610, 48
      %v3904 = vpop.permute.xlu0 %3903
      %3905 = vrot.lane.b32.xlu0 %v3613, 48
      %v3906 = vpop.permute.xlu0 %3905
      %3907 = vrot.lane.b32.xlu0 %v3615, 48
      %v3908 = vpop.permute.xlu0 %3907
      %3909 = vrot.lane.b32.xlu0 %v3618, 48
      %v3910 = vpop.permute.xlu0 %3909
      %3911 = vrot.lane.b32.xlu0 %v3620, 48
      %v3912 = vpop.permute.xlu0 %3911
      %3913 = vrot.lane.b32.xlu0 %v3752, 48
      %v3914 = vpop.permute.xlu0 %3913
      %3915 = vrot.lane.b32.xlu0 %v3754, 48
      %v3916 = vpop.permute.xlu0 %3915
      %3917 = vrot.lane.b32.xlu0 %v3886, 48
      %v3918 = vpop.permute.xlu0 %3917
      %3919 = vrot.lane.b32.xlu0 %v3888, 48
      %v3920 = vpop.permute.xlu0 %3919
      %v3922 = vsel %vm2715, %v3349, %v3550
      %v3924 = vsel %vm2715, %v3350, %v3552
      %v3926 = vsel %vm2715, %v3351, %v3554
      %v3928 = vsel %vm2715, %v3352, %v3556
      %v3930 = vsel %vm2715, %v3353, %v3558
      %v3932 = vsel %vm2715, %v3354, %v3560
      %v3934 = vsel %vm2715, %v3355, %v3562
      %v3936 = vsel %vm2715, %v3356, %v3564
      %v3938 = vsel %vm2715, %v3357, %v3566
      %v3940 = vsel %vm2715, %v3358, %v3568
      %v3942 = vsel %vm2715, %v3359, %v3570
      %v3944 = vsel %vm2715, %v3360, %v3572
      %v3946 = vsel %vm2715, %v3361, %v3574
      %v3948 = vsel %vm2715, %v3362, %v3576
      %v3950 = vsel %vm2715, %v3363, %v3578
      %v3952 = vsel %vm2715, %v3364, %v3580
      %v3954 = vsel %vm2748, %v3922, %v3622
      %v3956 = vsel %vm2748, %v3924, %v3624
      %v3958 = vsel %vm2748, %v3926, %v3626
      %v3960 = vsel %vm2748, %v3928, %v3628
      %v3962 = vsel %vm2748, %v3930, %v3630
      %v3964 = vsel %vm2748, %v3932, %v3632
      %v3966 = vsel %vm2748, %v3934, %v3634
      %v3968 = vsel %vm2748, %v3936, %v3636
      %v3970 = vsel %vm2748, %v3938, %v3638
      %v3972 = vsel %vm2748, %v3940, %v3640
      %v3974 = vsel %vm2748, %v3942, %v3642
      %v3976 = vsel %vm2748, %v3944, %v3644
      %v3978 = vsel %vm2748, %v3946, %v3646
      %v3980 = vsel %vm2748, %v3948, %v3648
      %v3982 = vsel %vm2748, %v3950, %v3650
      %v3984 = vsel %vm2748, %v3952, %v3652
      %v3986 = vsel %vm2781, %v3954, %v3664
      %v3988 = vsel %vm2781, %v3956, %v3666
      %v3990 = vsel %vm2781, %v3958, %v3668
      %v3992 = vsel %vm2781, %v3960, %v3670
      %v3994 = vsel %vm2781, %v3962, %v3672
      %v3996 = vsel %vm2781, %v3964, %v3674
      %v3998 = vsel %vm2781, %v3966, %v3676
      %v4000 = vsel %vm2781, %v3968, %v3678
      %v4002 = vsel %vm2781, %v3970, %v3680
      %v4004 = vsel %vm2781, %v3972, %v3682
      %v4006 = vsel %vm2781, %v3974, %v3684
      %v4008 = vsel %vm2781, %v3976, %v3686
      %v4010 = vsel %vm2781, %v3978, %v3688
      %v4012 = vsel %vm2781, %v3980, %v3690
      %v4014 = vsel %vm2781, %v3982, %v3692
      %v4016 = vsel %vm2781, %v3984, %v3694
      %v4018 = vsel %vm2814, %v3986, %v3719
      %v4020 = vsel %vm2814, %v3988, %v3721
      %v4022 = vsel %vm2814, %v3990, %v3723
      %v4024 = vsel %vm2814, %v3992, %v3725
      %v4026 = vsel %vm2814, %v3994, %v3727
      %v4028 = vsel %vm2814, %v3996, %v3729
      %v4030 = vsel %vm2814, %v3998, %v3731
      %v4032 = vsel %vm2814, %v4000, %v3733
      %v4034 = vsel %vm2814, %v4002, %v3735
      %v4036 = vsel %vm2814, %v4004, %v3737
      %v4038 = vsel %vm2814, %v4006, %v3739
      %v4040 = vsel %vm2814, %v4008, %v3741
      %v4042 = vsel %vm2814, %v4010, %v3743
      %v4044 = vsel %vm2814, %v4012, %v3745
      %v4046 = vsel %vm2814, %v4014, %v3747
      %v4048 = vsel %vm2814, %v4016, %v3749
      %v4050 = vsel %vm2847, %v4018, %v3756
      %v4052 = vsel %vm2847, %v4020, %v3758
      %v4054 = vsel %vm2847, %v4022, %v3760
      %v4056 = vsel %vm2847, %v4024, %v3762
      %v4058 = vsel %vm2847, %v4026, %v3764
      %v4060 = vsel %vm2847, %v4028, %v3766
      %v4062 = vsel %vm2847, %v4030, %v3768
      %v4064 = vsel %vm2847, %v4032, %v3770
      %v4066 = vsel %vm2847, %v4034, %v3772
      %v4068 = vsel %vm2847, %v4036, %v3774
      %v4070 = vsel %vm2847, %v4038, %v3776
      %v4072 = vsel %vm2847, %v4040, %v3778
      %v4074 = vsel %vm2847, %v4042, %v3780
      %v4076 = vsel %vm2847, %v4044, %v3782
      %v4078 = vsel %vm2847, %v4046, %v3784
      %v4080 = vsel %vm2847, %v4048, %v3786
      %v4082 = vsel %vm2880, %v4050, %v3798
      %v4084 = vsel %vm2880, %v4052, %v3800
      %v4086 = vsel %vm2880, %v4054, %v3802
      %v4088 = vsel %vm2880, %v4056, %v3804
      %v4090 = vsel %vm2880, %v4058, %v3806
      %v4092 = vsel %vm2880, %v4060, %v3808
      %v4094 = vsel %vm2880, %v4062, %v3810
      %v4096 = vsel %vm2880, %v4064, %v3812
      %v4098 = vsel %vm2880, %v4066, %v3814
      %v4100 = vsel %vm2880, %v4068, %v3816
      %v4102 = vsel %vm2880, %v4070, %v3818
      %v4104 = vsel %vm2880, %v4072, %v3820
      %v4106 = vsel %vm2880, %v4074, %v3822
      %v4108 = vsel %vm2880, %v4076, %v3824
      %v4110 = vsel %vm2880, %v4078, %v3826
      %v4112 = vsel %vm2880, %v4080, %v3828
      %v4114 = vsel %vm2913, %v4082, %v3853
      %v4116 = vsel %vm2913, %v4084, %v3855
      %v4118 = vsel %vm2913, %v4086, %v3857
      %v4120 = vsel %vm2913, %v4088, %v3859
      %v4122 = vsel %vm2913, %v4090, %v3861
      %v4124 = vsel %vm2913, %v4092, %v3863
      %v4126 = vsel %vm2913, %v4094, %v3865
      %v4128 = vsel %vm2913, %v4096, %v3867
      %v4130 = vsel %vm2913, %v4098, %v3869
      %v4132 = vsel %vm2913, %v4100, %v3871
      %v4134 = vsel %vm2913, %v4102, %v3873
      %v4136 = vsel %vm2913, %v4104, %v3875
      %v4138 = vsel %vm2913, %v4106, %v3877
      %v4140 = vsel %vm2913, %v4108, %v3879
      %v4142 = vsel %vm2913, %v4110, %v3881
      %v4144 = vsel %vm2913, %v4112, %v3883
      %v4146 = vsel %vm2946, %v4114, %v3890
      %v4148 = vsel %vm2946, %v4116, %v3892
      %v4150 = vsel %vm2946, %v4118, %v3894
      %v4152 = vsel %vm2946, %v4120, %v3896
      %v4154 = vsel %vm2946, %v4122, %v3898
      %v4156 = vsel %vm2946, %v4124, %v3900
      %v4158 = vsel %vm2946, %v4126, %v3902
      %v4160 = vsel %vm2946, %v4128, %v3904
      %v4162 = vsel %vm2946, %v4130, %v3906
      %v4164 = vsel %vm2946, %v4132, %v3908
      %v4166 = vsel %vm2946, %v4134, %v3910
      %v4168 = vsel %vm2946, %v4136, %v3912
      %v4170 = vsel %vm2946, %v4138, %v3914
      %v4172 = vsel %vm2946, %v4140, %v3916
      %v4174 = vsel %vm2946, %v4142, %v3918
      %v4176 = vsel %vm2946, %v4144, %v3920
      %v4177 = vld [vmem:[%s210] sm:$0xf]
      %v4178 = vld [vmem:[%s210 + $0x4] sm:$0xf]
      %v4179 = vld [vmem:[%s210 + $0x8] sm:$0xf]
      %v4180 = vld [vmem:[%s210 + $0xc] sm:$0xf]
      %v4181 = vld [vmem:[%s210 + $0x10] sm:$0xf]
      %v4182 = vld [vmem:[%s210 + $0x14] sm:$0xf]
      %v4183 = vld [vmem:[%s210 + $0x18] sm:$0x7]
      %v4184 = vld [vmem:[%s213] sm:$0x1]
      %v4186 = vperm.slane %v4184, 0
      %v4195 = vunpack.c.l.b16 %v4177
      %v4196 = vunpack.c.l.b16 %v4178
      %v4197 = vunpack.c.l.b16 %v4179
      %v4198 = vunpack.c.l.b16 %v4180
      %v4199 = vunpack.c.l.b16 %v4181
      %v4200 = vunpack.c.l.b16 %v4182
      %v4201 = vunpack.c.l.b16 %v4183
      %v4202 = vpack.c.b16 %v4196, %v4195
      %v4203 = vpack.c.b16 %v4198, %v4197
      %v4204 = vpack.c.b16 %v4200, %v4199
      %v4205 = vpack.c.b16 %v4201, %v4201
      %v4209 = vsel %vm3011, %v4146, 0
      %v4211 = vsel %vm3011, %v4148, 0
      %v4213 = vsel %vm3011, %v4150, 0
      %v4215 = vsel %vm3011, %v4152, 0
      %v4217 = vsel %vm3011, %v4154, 0
      %v4219 = vsel %vm3011, %v4156, 0
      %v4221 = vsel %vm3011, %v4158, 0
      %v4223 = vsel %vm3011, %v4160, 0
      %v4225 = vsel %vm3011, %v4162, 0
      %v4227 = vsel %vm3011, %v4164, 0
      %v4229 = vsel %vm3011, %v4166, 0
      %v4231 = vsel %vm3011, %v4168, 0
      %v4233 = vsel %vm3011, %v4170, 0
      %v4235 = vsel %vm3011, %v4172, 0
      %v4237 = vsel %vm3011, %v4174, 0
      %v4239 = vsel %vm3011, %v4176, 0
      %v4242 = vsel %vm3044, %v4205, 0
      %4244 = vmatpush.bf16.msra.mxu0 0
      %4245 = vmatpush.bf16.msra.mxu0 0
      %4246 = vmatpush.bf16.msra.mxu0 0
      %4247 = vmatpush.bf16.msra.mxu0 0
      %4248 = vmatpush.bf16.msra.mxu0 %v4242
      %4249 = vmatpush.bf16.msra.mxu0 %v4204
      %4250 = vmatpush.bf16.msra.mxu0 %v4203
      %4251 = vmatpush.bf16.msra.mxu0 %v4202
      %4252 = vmatmul.bf16.gmra.mxu0 %v4209
      %v4253 = vpop.f32.mrf.mxu0
      %v4254 = vadd.f32 %v4186, %v4253
      %v4255 = vpop.f32.mrf.mxu0
      %v4256 = vadd.f32 %v4186, %v4255
      %4257 = vmatmul.bf16.gmra.mxu0 %v4211
      %v4258 = vpop.f32.mrf.mxu0
      %v4259 = vadd.f32 %v4186, %v4258
      %v4260 = vpop.f32.mrf.mxu0
      %v4261 = vadd.f32 %v4186, %v4260
      %4262 = vmatmul.bf16.gmra.mxu0 %v4213
      %v4263 = vpop.f32.mrf.mxu0
      %v4264 = vadd.f32 %v4186, %v4263
      %v4265 = vpop.f32.mrf.mxu0
      %v4266 = vadd.f32 %v4186, %v4265
      %4267 = vmatmul.bf16.gmra.mxu0 %v4215
      %v4268 = vpop.f32.mrf.mxu0
      %v4269 = vadd.f32 %v4186, %v4268
      %v4270 = vpop.f32.mrf.mxu0
      %v4271 = vadd.f32 %v4186, %v4270
      %4272 = vmatmul.bf16.gmra.mxu0 %v4217
      %v4273 = vpop.f32.mrf.mxu0
      %v4274 = vadd.f32 %v4186, %v4273
      %v4275 = vpop.f32.mrf.mxu0
      %v4276 = vadd.f32 %v4186, %v4275
      %4277 = vmatmul.bf16.gmra.mxu0 %v4219
      %v4278 = vpop.f32.mrf.mxu0
      %v4279 = vadd.f32 %v4186, %v4278
      %v4280 = vpop.f32.mrf.mxu0
      %v4281 = vadd.f32 %v4186, %v4280
      %4282 = vmatmul.bf16.gmra.mxu0 %v4221
      %v4283 = vpop.f32.mrf.mxu0
      %v4284 = vadd.f32 %v4186, %v4283
      %v4285 = vpop.f32.mrf.mxu0
      %v4286 = vadd.f32 %v4186, %v4285
      %4287 = vmatmul.bf16.gmra.mxu0 %v4223
      %v4288 = vpop.f32.mrf.mxu0
      %v4289 = vadd.f32 %v4186, %v4288
      %v4290 = vpop.f32.mrf.mxu0
      %v4291 = vadd.f32 %v4186, %v4290
      %4292 = vmatmul.bf16.gmra.mxu0 %v4225
      %v4293 = vpop.f32.mrf.mxu0
      %v4294 = vadd.f32 %v4186, %v4293
      %v4295 = vpop.f32.mrf.mxu0
      %v4296 = vadd.f32 %v4186, %v4295
      %4297 = vmatmul.bf16.gmra.mxu0 %v4227
      %v4298 = vpop.f32.mrf.mxu0
      %v4299 = vadd.f32 %v4186, %v4298
      %v4300 = vpop.f32.mrf.mxu0
      %v4301 = vadd.f32 %v4186, %v4300
      %4302 = vmatmul.bf16.gmra.mxu0 %v4229
      %v4303 = vpop.f32.mrf.mxu0
      %v4304 = vadd.f32 %v4186, %v4303
      %v4305 = vpop.f32.mrf.mxu0
      %v4306 = vadd.f32 %v4186, %v4305
      %4307 = vmatmul.bf16.gmra.mxu0 %v4231
      %v4308 = vpop.f32.mrf.mxu0
      %v4309 = vadd.f32 %v4186, %v4308
      %v4310 = vpop.f32.mrf.mxu0
      %v4311 = vadd.f32 %v4186, %v4310
      %4312 = vmatmul.bf16.gmra.mxu0 %v4233
      %v4313 = vpop.f32.mrf.mxu0
      %v4314 = vadd.f32 %v4186, %v4313
      %v4315 = vpop.f32.mrf.mxu0
      %v4316 = vadd.f32 %v4186, %v4315
      %4317 = vmatmul.bf16.gmra.mxu0 %v4235
      %v4318 = vpop.f32.mrf.mxu0
      %v4319 = vadd.f32 %v4186, %v4318
      %v4320 = vpop.f32.mrf.mxu0
      %v4321 = vadd.f32 %v4186, %v4320
      %4322 = vmatmul.bf16.gmra.mxu0 %v4237
      %v4323 = vpop.f32.mrf.mxu0
      %v4324 = vadd.f32 %v4186, %v4323
      %v4325 = vpop.f32.mrf.mxu0
      %v4326 = vadd.f32 %v4186, %v4325
      %4327 = vmatmul.bf16.gmra.mxu0 %v4239
      %v4328 = vpop.f32.mrf.mxu0
      %v4329 = vadd.f32 %v4186, %v4328
      %v4330 = vpop.f32.mrf.mxu0
      %v4331 = vadd.f32 %v4186, %v4330
      %4332 = vdwg.mxu0
      %v4333 = vmax.f32 %v4254, 0.0
      %v4334 = vmax.f32 %v4256, 0.0
      %v4335 = vmax.f32 %v4259, 0.0
      %v4336 = vmax.f32 %v4261, 0.0
      %v4337 = vmax.f32 %v4264, 0.0
      %v4338 = vmax.f32 %v4266, 0.0
      %v4339 = vmax.f32 %v4269, 0.0
      %v4340 = vmax.f32 %v4271, 0.0
      %v4341 = vmax.f32 %v4274, 0.0
      %v4342 = vmax.f32 %v4276, 0.0
      %v4343 = vmax.f32 %v4279, 0.0
      %v4344 = vmax.f32 %v4281, 0.0
      %v4345 = vmax.f32 %v4284, 0.0
      %v4346 = vmax.f32 %v4286, 0.0
      %v4347 = vmax.f32 %v4289, 0.0
      %v4348 = vmax.f32 %v4291, 0.0
      %v4349 = vmax.f32 %v4294, 0.0
      %v4350 = vmax.f32 %v4296, 0.0
      %v4351 = vmax.f32 %v4299, 0.0
      %v4352 = vmax.f32 %v4301, 0.0
      %v4353 = vmax.f32 %v4304, 0.0
      %v4354 = vmax.f32 %v4306, 0.0
      %v4355 = vmax.f32 %v4309, 0.0
      %v4356 = vmax.f32 %v4311, 0.0
      %v4357 = vmax.f32 %v4314, 0.0
      %v4358 = vmax.f32 %v4316, 0.0
      %v4359 = vmax.f32 %v4319, 0.0
      %v4360 = vmax.f32 %v4321, 0.0
      %v4361 = vmax.f32 %v4324, 0.0
      %v4362 = vmax.f32 %v4326, 0.0
      %v4363 = vmax.f32 %v4329, 0.0
      %v4364 = vmax.f32 %v4331, 0.0
      %v4365 = vpack.c.bf16 %v4333, %v4333
      %v4366 = vpack.c.bf16 %v4334, %v4334
      %v4367 = vpack.c.bf16 %v4335, %v4335
      %v4368 = vpack.c.bf16 %v4336, %v4336
      %v4369 = vpack.c.bf16 %v4337, %v4337
      %v4370 = vpack.c.bf16 %v4338, %v4338
      %v4371 = vpack.c.bf16 %v4339, %v4339
      %v4372 = vpack.c.bf16 %v4340, %v4340
      %v4373 = vpack.c.bf16 %v4341, %v4341
      %v4374 = vpack.c.bf16 %v4342, %v4342
      %v4375 = vpack.c.bf16 %v4343, %v4343
      %v4376 = vpack.c.bf16 %v4344, %v4344
      %v4377 = vpack.c.bf16 %v4345, %v4345
      %v4378 = vpack.c.bf16 %v4346, %v4346
      %v4379 = vpack.c.bf16 %v4347, %v4347
      %v4380 = vpack.c.bf16 %v4348, %v4348
      %v4381 = vpack.c.bf16 %v4349, %v4349
      %v4382 = vpack.c.bf16 %v4350, %v4350
      %v4383 = vpack.c.bf16 %v4351, %v4351
      %v4384 = vpack.c.bf16 %v4352, %v4352
      %v4385 = vpack.c.bf16 %v4353, %v4353
      %v4386 = vpack.c.bf16 %v4354, %v4354
      %v4387 = vpack.c.bf16 %v4355, %v4355
      %v4388 = vpack.c.bf16 %v4356, %v4356
      %v4389 = vpack.c.bf16 %v4357, %v4357
      %v4390 = vpack.c.bf16 %v4358, %v4358
      %v4391 = vpack.c.bf16 %v4359, %v4359
      %v4392 = vpack.c.bf16 %v4360, %v4360
      %v4393 = vpack.c.bf16 %v4361, %v4361
      %v4394 = vpack.c.bf16 %v4362, %v4362
      %v4395 = vpack.c.bf16 %v4363, %v4363
      %v4396 = vpack.c.bf16 %v4364, %v4364
      %s4397 = scalar_lea.vmem %s221, 128
      %4398 = vst.msk [vmem:[%s4397] sm:$0xf] %vm3201, %v4365
      %4399 = vst.msk [vmem:[%s4397 + $0x4] sm:$0xf] %vm3201, %v4366
      %4400 = vst.msk [vmem:[%s4397 + $0x8] sm:$0xf] %vm3201, %v4367
      %4401 = vst.msk [vmem:[%s4397 + $0xc] sm:$0xf] %vm3201, %v4368
      %4402 = vst.msk [vmem:[%s4397 + $0x10] sm:$0xf] %vm3201, %v4369
      %4403 = vst.msk [vmem:[%s4397 + $0x14] sm:$0xf] %vm3201, %v4370
      %4404 = vst.msk [vmem:[%s4397 + $0x18] sm:$0xf] %vm3201, %v4371
      %4405 = vst.msk [vmem:[%s4397 + $0x1c] sm:$0xf] %vm3201, %v4372
      %4406 = vst.msk [vmem:[%s4397 + $0x20] sm:$0xf] %vm3201, %v4373
      %4407 = vst.msk [vmem:[%s4397 + $0x24] sm:$0xf] %vm3201, %v4374
      %4408 = vst.msk [vmem:[%s4397 + $0x28] sm:$0xf] %vm3201, %v4375
      %4409 = vst.msk [vmem:[%s4397 + $0x2c] sm:$0xf] %vm3201, %v4376
      %4410 = vst.msk [vmem:[%s4397 + $0x30] sm:$0xf] %vm3201, %v4377
      %4411 = vst.msk [vmem:[%s4397 + $0x34] sm:$0xf] %vm3201, %v4378
      %4412 = vst.msk [vmem:[%s4397 + $0x38] sm:$0xf] %vm3201, %v4379
      %4413 = vst.msk [vmem:[%s4397 + $0x3c] sm:$0xf] %vm3201, %v4380
      %4414 = vst.msk [vmem:[%s4397 + $0x40] sm:$0xf] %vm3201, %v4381
      %4415 = vst.msk [vmem:[%s4397 + $0x44] sm:$0xf] %vm3201, %v4382
      %4416 = vst.msk [vmem:[%s4397 + $0x48] sm:$0xf] %vm3201, %v4383
      %4417 = vst.msk [vmem:[%s4397 + $0x4c] sm:$0xf] %vm3201, %v4384
      %4418 = vst.msk [vmem:[%s4397 + $0x50] sm:$0xf] %vm3201, %v4385
      %4419 = vst.msk [vmem:[%s4397 + $0x54] sm:$0xf] %vm3201, %v4386
      %4420 = vst.msk [vmem:[%s4397 + $0x58] sm:$0xf] %vm3201, %v4387
      %4421 = vst.msk [vmem:[%s4397 + $0x5c] sm:$0xf] %vm3201, %v4388
      %4422 = vst.msk [vmem:[%s4397 + $0x60] sm:$0xf] %vm3201, %v4389
      %4423 = vst.msk [vmem:[%s4397 + $0x64] sm:$0xf] %vm3201, %v4390
      %4424 = vst.msk [vmem:[%s4397 + $0x68] sm:$0xf] %vm3201, %v4391
      %4425 = vst.msk [vmem:[%s4397 + $0x6c] sm:$0xf] %vm3201, %v4392
      %4426 = vst.msk [vmem:[%s4397 + $0x70] sm:$0xf] %vm3201, %v4393
      %4427 = vst.msk [vmem:[%s4397 + $0x74] sm:$0xf] %vm3201, %v4394
      %4428 = vst.msk [vmem:[%s4397 + $0x78] sm:$0xf] %vm3201, %v4395
      %4429 = vst.msk [vmem:[%s4397 + $0x7c] sm:$0xf] %vm3201, %v4396
      %s4430 = scalar_lea.vmem [#allocation2], 320
      %v4431 = vld [vmem:[%s4430] sm:$0xf]
      %v4432 = vld [vmem:[%s4430 + $0x4] sm:$0xf]
      %v4433 = vld [vmem:[%s4430 + $0x8] sm:$0xf]
      %v4434 = vld [vmem:[%s4430 + $0xc] sm:$0xf]
      %v4435 = vld [vmem:[%s4430 + $0x10] sm:$0x1]
      %v4436 = vld [vmem:[%s4430 + $0x14] sm:$0xf]
      %v4437 = vld [vmem:[%s4430 + $0x18] sm:$0xf]
      %v4438 = vld [vmem:[%s4430 + $0x1c] sm:$0xf]
      %v4439 = vld [vmem:[%s4430 + $0x20] sm:$0xf]
      %v4440 = vld [vmem:[%s4430 + $0x24] sm:$0x1]
      %v4441 = vld [vmem:[%s4430 + $0x28] sm:$0xf]
      %v4442 = vld [vmem:[%s4430 + $0x2c] sm:$0xf]
      %v4443 = vld [vmem:[%s4430 + $0x30] sm:$0xf]
      %v4444 = vld [vmem:[%s4430 + $0x34] sm:$0xf]
      %v4445 = vld [vmem:[%s4430 + $0x38] sm:$0x1]
      %v4446 = vld [vmem:[%s4430 + $0x3c] sm:$0xf]
      %v4447 = vld [vmem:[%s4430 + $0x40] sm:$0xf]
      %v4448 = vld [vmem:[%s4430 + $0x44] sm:$0xf]
      %v4449 = vld [vmem:[%s4430 + $0x48] sm:$0xf]
      %v4450 = vld [vmem:[%s4430 + $0x4c] sm:$0x1]
      %v4451 = vld [vmem:[%s4430 + $0x50] sm:$0xf]
      %v4452 = vld [vmem:[%s4430 + $0x54] sm:$0xf]
      %v4453 = vld [vmem:[%s4430 + $0x58] sm:$0xf]
      %v4454 = vld [vmem:[%s4430 + $0x5c] sm:$0xf]
      %v4455 = vld [vmem:[%s4430 + $0x60] sm:$0x1]
      %v4456 = vld [vmem:[%s4430 + $0x64] sm:$0xf]
      %v4457 = vld [vmem:[%s4430 + $0x68] sm:$0xf]
      %v4458 = vld [vmem:[%s4430 + $0x6c] sm:$0xf]
      %v4459 = vld [vmem:[%s4430 + $0x70] sm:$0xf]
      %v4460 = vld [vmem:[%s4430 + $0x74] sm:$0x1]
      %v4461 = vld [vmem:[%s4430 + $0x78] sm:$0xf]
      %v4462 = vld [vmem:[%s4430 + $0x7c] sm:$0xf]
      %v4463 = vld [vmem:[%s4430 + $0x80] sm:$0xf]
      %v4464 = vld [vmem:[%s4430 + $0x84] sm:$0xf]
      %v4465 = vld [vmem:[%s4430 + $0x88] sm:$0x1]
      %v4466 = vld [vmem:[%s4430 + $0x8c] sm:$0xf]
      %v4467 = vld [vmem:[%s4430 + $0x90] sm:$0xf]
      %v4468 = vld [vmem:[%s4430 + $0x94] sm:$0xf]
      %v4469 = vld [vmem:[%s4430 + $0x98] sm:$0xf]
      %v4470 = vld [vmem:[%s4430 + $0x9c] sm:$0x1]
      %v4471 = vld [vmem:[%s4430 + $0xa0] sm:$0xf]
      %v4472 = vld [vmem:[%s4430 + $0xa4] sm:$0xf]
      %v4473 = vld [vmem:[%s4430 + $0xa8] sm:$0xf]
      %v4474 = vld [vmem:[%s4430 + $0xac] sm:$0xf]
      %v4475 = vld [vmem:[%s4430 + $0xb0] sm:$0x1]
      %v4476 = vld [vmem:[%s4430 + $0xb4] sm:$0xf]
      %v4477 = vld [vmem:[%s4430 + $0xb8] sm:$0xf]
      %v4478 = vld [vmem:[%s4430 + $0xbc] sm:$0xf]
      %v4479 = vld [vmem:[%s4430 + $0xc0] sm:$0xf]
      %v4480 = vld [vmem:[%s4430 + $0xc4] sm:$0x1]
      %v4513 = vunpack.c.l.b16 %v4431
      %v4514 = vunpack.c.l.b16 %v4432
      %v4515 = vunpack.c.l.b16 %v4433
      %v4516 = vunpack.c.l.b16 %v4434
      %v4517 = vunpack.c.l.b16 %v4436
      %v4518 = vunpack.c.l.b16 %v4437
      %v4519 = vunpack.c.l.b16 %v4438
      %v4520 = vunpack.c.l.b16 %v4439
      %v4521 = vunpack.c.l.b16 %v4441
      %v4522 = vunpack.c.l.b16 %v4442
      %v4523 = vunpack.c.l.b16 %v4443
      %v4524 = vunpack.c.l.b16 %v4444
      %v4525 = vunpack.c.l.b16 %v4446
      %v4526 = vunpack.c.l.b16 %v4447
      %v4527 = vunpack.c.l.b16 %v4448
      %v4528 = vunpack.c.l.b16 %v4449
      %v4529 = vunpack.c.l.b16 %v4451
      %v4530 = vunpack.c.l.b16 %v4452
      %v4531 = vunpack.c.l.b16 %v4453
      %v4532 = vunpack.c.l.b16 %v4454
      %v4533 = vunpack.c.l.b16 %v4456
      %v4534 = vunpack.c.l.b16 %v4457
      %v4535 = vunpack.c.l.b16 %v4458
      %v4536 = vunpack.c.l.b16 %v4459
      %v4537 = vunpack.c.l.b16 %v4461
      %v4538 = vunpack.c.l.b16 %v4462
      %v4539 = vunpack.c.l.b16 %v4463
      %v4540 = vunpack.c.l.b16 %v4464
      %v4541 = vunpack.c.l.b16 %v4466
      %v4542 = vunpack.c.l.b16 %v4467
      %v4543 = vunpack.c.l.b16 %v4468
      %v4544 = vunpack.c.l.b16 %v4469
      %v4545 = vpack.c.b16 %v4514, %v4513
      %v4546 = vpack.c.b16 %v4516, %v4515
      %v4547 = vpack.c.b16 %v4518, %v4517
      %v4548 = vpack.c.b16 %v4520, %v4519
      %v4549 = vpack.c.b16 %v4522, %v4521
      %v4550 = vpack.c.b16 %v4524, %v4523
      %v4551 = vpack.c.b16 %v4526, %v4525
      %v4552 = vpack.c.b16 %v4528, %v4527
      %v4553 = vpack.c.b16 %v4530, %v4529
      %v4554 = vpack.c.b16 %v4532, %v4531
      %v4555 = vpack.c.b16 %v4534, %v4533
      %v4556 = vpack.c.b16 %v4536, %v4535
      %v4557 = vpack.c.b16 %v4538, %v4537
      %v4558 = vpack.c.b16 %v4540, %v4539
      %v4559 = vpack.c.b16 %v4542, %v4541
      %v4560 = vpack.c.b16 %v4544, %v4543
      %v4569 = vunpack.c.l.b16 %v4435
      %v4570 = vunpack.c.l.b16 %v4440
      %v4571 = vunpack.c.l.b16 %v4445
      %v4572 = vunpack.c.l.b16 %v4450
      %v4573 = vunpack.c.l.b16 %v4455
      %v4574 = vunpack.c.l.b16 %v4460
      %v4575 = vunpack.c.l.b16 %v4465
      %v4576 = vunpack.c.l.b16 %v4470
      %v4577 = vpack.c.b16 %v4569, %v4569
      %v4578 = vpack.c.b16 %v4570, %v4570
      %v4579 = vpack.c.b16 %v4571, %v4571
      %v4580 = vpack.c.b16 %v4572, %v4572
      %v4581 = vpack.c.b16 %v4573, %v4573
      %v4582 = vpack.c.b16 %v4574, %v4574
      %v4583 = vpack.c.b16 %v4575, %v4575
      %v4584 = vpack.c.b16 %v4576, %v4576
      %v4586 = vshrl.u32 %v4545, 16
      %v4588 = vshll.u32 %v4545, 16
      %v4590 = vrot.slane %v4588, 1
      %v4591 = vor.u32 %v4586, %v4590
      %v4593 = vshll.u32 %v4546, 16
      %v4595 = vrot.slane %v4593, 1
      %v4596 = vsel %vm2181, %v4591, %v4595
      %v4597 = vshrl.u32 %v4546, 16
      %v4599 = vor.u32 %v4597, %v4595
      %v4601 = vshll.u32 %v4577, 16
      %v4603 = vrot.slane %v4601, 1
      %v4604 = vsel %vm2181, %v4599, %v4603
      %v4606 = vshrl.u32 %v4547, 16
      %v4608 = vshll.u32 %v4547, 16
      %v4610 = vrot.slane %v4608, 1
      %v4611 = vor.u32 %v4606, %v4610
      %v4613 = vshll.u32 %v4548, 16
      %v4615 = vrot.slane %v4613, 1
      %v4616 = vsel %vm2181, %v4611, %v4615
      %v4617 = vshrl.u32 %v4548, 16
      %v4619 = vor.u32 %v4617, %v4615
      %v4621 = vshll.u32 %v4578, 16
      %v4623 = vrot.slane %v4621, 1
      %v4624 = vsel %vm2181, %v4619, %v4623
      %v4626 = vshrl.u32 %v4549, 16
      %v4628 = vshll.u32 %v4549, 16
      %v4630 = vrot.slane %v4628, 1
      %v4631 = vor.u32 %v4626, %v4630
      %v4633 = vshll.u32 %v4550, 16
      %v4635 = vrot.slane %v4633, 1
      %v4636 = vsel %vm2181, %v4631, %v4635
      %v4637 = vshrl.u32 %v4550, 16
      %v4639 = vor.u32 %v4637, %v4635
      %v4641 = vshll.u32 %v4579, 16
      %v4643 = vrot.slane %v4641, 1
      %v4644 = vsel %vm2181, %v4639, %v4643
      %v4646 = vshrl.u32 %v4551, 16
      %v4648 = vshll.u32 %v4551, 16
      %v4650 = vrot.slane %v4648, 1
      %v4651 = vor.u32 %v4646, %v4650
      %v4653 = vshll.u32 %v4552, 16
      %v4655 = vrot.slane %v4653, 1
      %v4656 = vsel %vm2181, %v4651, %v4655
      %v4657 = vshrl.u32 %v4552, 16
      %v4659 = vor.u32 %v4657, %v4655
      %v4661 = vshll.u32 %v4580, 16
      %v4663 = vrot.slane %v4661, 1
      %v4664 = vsel %vm2181, %v4659, %v4663
      %v4666 = vshrl.u32 %v4553, 16
      %v4668 = vshll.u32 %v4553, 16
      %v4670 = vrot.slane %v4668, 1
      %v4671 = vor.u32 %v4666, %v4670
      %v4673 = vshll.u32 %v4554, 16
      %v4675 = vrot.slane %v4673, 1
      %v4676 = vsel %vm2181, %v4671, %v4675
      %v4677 = vshrl.u32 %v4554, 16
      %v4679 = vor.u32 %v4677, %v4675
      %v4681 = vshll.u32 %v4581, 16
      %v4683 = vrot.slane %v4681, 1
      %v4684 = vsel %vm2181, %v4679, %v4683
      %v4686 = vshrl.u32 %v4555, 16
      %v4688 = vshll.u32 %v4555, 16
      %v4690 = vrot.slane %v4688, 1
      %v4691 = vor.u32 %v4686, %v4690
      %v4693 = vshll.u32 %v4556, 16
      %v4695 = vrot.slane %v4693, 1
      %v4696 = vsel %vm2181, %v4691, %v4695
      %v4697 = vshrl.u32 %v4556, 16
      %v4699 = vor.u32 %v4697, %v4695
      %v4701 = vshll.u32 %v4582, 16
      %v4703 = vrot.slane %v4701, 1
      %v4704 = vsel %vm2181, %v4699, %v4703
      %v4706 = vshrl.u32 %v4557, 16
      %v4708 = vshll.u32 %v4557, 16
      %v4710 = vrot.slane %v4708, 1
      %v4711 = vor.u32 %v4706, %v4710
      %v4713 = vshll.u32 %v4558, 16
      %v4715 = vrot.slane %v4713, 1
      %v4716 = vsel %vm2181, %v4711, %v4715
      %v4717 = vshrl.u32 %v4558, 16
      %v4719 = vor.u32 %v4717, %v4715
      %v4721 = vshll.u32 %v4583, 16
      %v4723 = vrot.slane %v4721, 1
      %v4724 = vsel %vm2181, %v4719, %v4723
      %v4726 = vshrl.u32 %v4559, 16
      %v4728 = vshll.u32 %v4559, 16
      %v4730 = vrot.slane %v4728, 1
      %v4731 = vor.u32 %v4726, %v4730
      %v4733 = vshll.u32 %v4560, 16
      %v4735 = vrot.slane %v4733, 1
      %v4736 = vsel %vm2181, %v4731, %v4735
      %v4737 = vshrl.u32 %v4560, 16
      %v4739 = vor.u32 %v4737, %v4735
      %v4741 = vshll.u32 %v4584, 16
      %v4743 = vrot.slane %v4741, 1
      %v4744 = vsel %vm2181, %v4739, %v4743
      %4745 = vrot.lane.b32.xlu0 %v4596, 6
      %v4746 = vpop.permute.xlu0 %4745
      %4747 = vrot.lane.b32.xlu0 %v4604, 6
      %v4748 = vpop.permute.xlu0 %4747
      %4749 = vrot.lane.b32.xlu0 %v4616, 6
      %v4750 = vpop.permute.xlu0 %4749
      %4751 = vrot.lane.b32.xlu0 %v4624, 6
      %v4752 = vpop.permute.xlu0 %4751
      %4753 = vrot.lane.b32.xlu0 %v4636, 6
      %v4754 = vpop.permute.xlu0 %4753
      %4755 = vrot.lane.b32.xlu0 %v4644, 6
      %v4756 = vpop.permute.xlu0 %4755
      %4757 = vrot.lane.b32.xlu0 %v4656, 6
      %v4758 = vpop.permute.xlu0 %4757
      %4759 = vrot.lane.b32.xlu0 %v4664, 6
      %v4760 = vpop.permute.xlu0 %4759
      %4761 = vrot.lane.b32.xlu0 %v4676, 6
      %v4762 = vpop.permute.xlu0 %4761
      %4763 = vrot.lane.b32.xlu0 %v4684, 6
      %v4764 = vpop.permute.xlu0 %4763
      %4765 = vrot.lane.b32.xlu0 %v4696, 6
      %v4766 = vpop.permute.xlu0 %4765
      %4767 = vrot.lane.b32.xlu0 %v4704, 6
      %v4768 = vpop.permute.xlu0 %4767
      %4769 = vrot.lane.b32.xlu0 %v4716, 6
      %v4770 = vpop.permute.xlu0 %4769
      %4771 = vrot.lane.b32.xlu0 %v4724, 6
      %v4772 = vpop.permute.xlu0 %4771
      %4773 = vrot.lane.b32.xlu0 %v4736, 6
      %v4774 = vpop.permute.xlu0 %4773
      %4775 = vrot.lane.b32.xlu0 %v4744, 6
      %v4776 = vpop.permute.xlu0 %4775
      %v4777 = vrot.slane %v4545, 1
      %v4778 = vrot.slane %v4546, 1
      %v4779 = vsel %vm2374, %v4777, %v4778
      %v4780 = vrot.slane %v4577, 1
      %v4781 = vsel %vm2374, %v4778, %v4780
      %v4782 = vrot.slane %v4547, 1
      %v4783 = vrot.slane %v4548, 1
      %v4784 = vsel %vm2374, %v4782, %v4783
      %v4785 = vrot.slane %v4578, 1
      %v4786 = vsel %vm2374, %v4783, %v4785
      %v4787 = vrot.slane %v4549, 1
      %v4788 = vrot.slane %v4550, 1
      %v4789 = vsel %vm2374, %v4787, %v4788
      %v4790 = vrot.slane %v4579, 1
      %v4791 = vsel %vm2374, %v4788, %v4790
      %v4792 = vrot.slane %v4551, 1
      %v4793 = vrot.slane %v4552, 1
      %v4794 = vsel %vm2374, %v4792, %v4793
      %v4795 = vrot.slane %v4580, 1
      %v4796 = vsel %vm2374, %v4793, %v4795
      %v4797 = vrot.slane %v4553, 1
      %v4798 = vrot.slane %v4554, 1
      %v4799 = vsel %vm2374, %v4797, %v4798
      %v4800 = vrot.slane %v4581, 1
      %v4801 = vsel %vm2374, %v4798, %v4800
      %v4802 = vrot.slane %v4555, 1
      %v4803 = vrot.slane %v4556, 1
      %v4804 = vsel %vm2374, %v4802, %v4803
      %v4805 = vrot.slane %v4582, 1
      %v4806 = vsel %vm2374, %v4803, %v4805
      %v4807 = vrot.slane %v4557, 1
      %v4808 = vrot.slane %v4558, 1
      %v4809 = vsel %vm2374, %v4807, %v4808
      %v4810 = vrot.slane %v4583, 1
      %v4811 = vsel %vm2374, %v4808, %v4810
      %v4812 = vrot.slane %v4559, 1
      %v4813 = vrot.slane %v4560, 1
      %v4814 = vsel %vm2374, %v4812, %v4813
      %v4815 = vrot.slane %v4584, 1
      %v4816 = vsel %vm2374, %v4813, %v4815
      %4817 = vrot.lane.b32.xlu0 %v4779, 12
      %v4818 = vpop.permute.xlu0 %4817
      %4819 = vrot.lane.b32.xlu0 %v4781, 12
      %v4820 = vpop.permute.xlu0 %4819
      %4821 = vrot.lane.b32.xlu0 %v4784, 12
      %v4822 = vpop.permute.xlu0 %4821
      %4823 = vrot.lane.b32.xlu0 %v4786, 12
      %v4824 = vpop.permute.xlu0 %4823
      %4825 = vrot.lane.b32.xlu0 %v4789, 12
      %v4826 = vpop.permute.xlu0 %4825
      %4827 = vrot.lane.b32.xlu0 %v4791, 12
      %v4828 = vpop.permute.xlu0 %4827
      %4829 = vrot.lane.b32.xlu0 %v4794, 12
      %v4830 = vpop.permute.xlu0 %4829
      %4831 = vrot.lane.b32.xlu0 %v4796, 12
      %v4832 = vpop.permute.xlu0 %4831
      %4833 = vrot.lane.b32.xlu0 %v4799, 12
      %v4834 = vpop.permute.xlu0 %4833
      %4835 = vrot.lane.b32.xlu0 %v4801, 12
      %v4836 = vpop.permute.xlu0 %4835
      %4837 = vrot.lane.b32.xlu0 %v4804, 12
      %v4838 = vpop.permute.xlu0 %4837
      %4839 = vrot.lane.b32.xlu0 %v4806, 12
      %v4840 = vpop.permute.xlu0 %4839
      %4841 = vrot.lane.b32.xlu0 %v4809, 12
      %v4842 = vpop.permute.xlu0 %4841
      %4843 = vrot.lane.b32.xlu0 %v4811, 12
      %v4844 = vpop.permute.xlu0 %4843
      %4845 = vrot.lane.b32.xlu0 %v4814, 12
      %v4846 = vpop.permute.xlu0 %4845
      %4847 = vrot.lane.b32.xlu0 %v4816, 12
      %v4848 = vpop.permute.xlu0 %4847
      %v4853 = vunpack.c.l.b16 %v4471
      %v4854 = vunpack.c.l.b16 %v4472
      %v4855 = vunpack.c.l.b16 %v4473
      %v4856 = vunpack.c.l.b16 %v4474
      %v4857 = vpack.c.b16 %v4854, %v4853
      %v4858 = vpack.c.b16 %v4856, %v4855
      %4859 = vrot.lane.b32.xlu0 %v4547, 18
      %v4860 = vpop.permute.xlu0 %4859
      %4861 = vrot.lane.b32.xlu0 %v4548, 18
      %v4862 = vpop.permute.xlu0 %4861
      %4863 = vrot.lane.b32.xlu0 %v4549, 18
      %v4864 = vpop.permute.xlu0 %4863
      %4865 = vrot.lane.b32.xlu0 %v4550, 18
      %v4866 = vpop.permute.xlu0 %4865
      %4867 = vrot.lane.b32.xlu0 %v4551, 18
      %v4868 = vpop.permute.xlu0 %4867
      %4869 = vrot.lane.b32.xlu0 %v4552, 18
      %v4870 = vpop.permute.xlu0 %4869
      %4871 = vrot.lane.b32.xlu0 %v4553, 18
      %v4872 = vpop.permute.xlu0 %4871
      %4873 = vrot.lane.b32.xlu0 %v4554, 18
      %v4874 = vpop.permute.xlu0 %4873
      %4875 = vrot.lane.b32.xlu0 %v4555, 18
      %v4876 = vpop.permute.xlu0 %4875
      %4877 = vrot.lane.b32.xlu0 %v4556, 18
      %v4878 = vpop.permute.xlu0 %4877
      %4879 = vrot.lane.b32.xlu0 %v4557, 18
      %v4880 = vpop.permute.xlu0 %4879
      %4881 = vrot.lane.b32.xlu0 %v4558, 18
      %v4882 = vpop.permute.xlu0 %4881
      %4883 = vrot.lane.b32.xlu0 %v4559, 18
      %v4884 = vpop.permute.xlu0 %4883
      %4885 = vrot.lane.b32.xlu0 %v4560, 18
      %v4886 = vpop.permute.xlu0 %4885
      %4887 = vrot.lane.b32.xlu0 %v4857, 18
      %v4888 = vpop.permute.xlu0 %4887
      %4889 = vrot.lane.b32.xlu0 %v4858, 18
      %v4890 = vpop.permute.xlu0 %4889
      %v4892 = vunpack.c.l.b16 %v4475
      %v4893 = vpack.c.b16 %v4892, %v4892
      %v4895 = vshrl.u32 %v4857, 16
      %v4897 = vshll.u32 %v4857, 16
      %v4899 = vrot.slane %v4897, 1
      %v4900 = vor.u32 %v4895, %v4899
      %v4902 = vshll.u32 %v4858, 16
      %v4904 = vrot.slane %v4902, 1
      %v4905 = vsel %vm2181, %v4900, %v4904
      %v4906 = vshrl.u32 %v4858, 16
      %v4908 = vor.u32 %v4906, %v4904
      %v4910 = vshll.u32 %v4893, 16
      %v4912 = vrot.slane %v4910, 1
      %v4913 = vsel %vm2181, %v4908, %v4912
      %4914 = vrot.lane.b32.xlu0 %v4616, 24
      %v4915 = vpop.permute.xlu0 %4914
      %4916 = vrot.lane.b32.xlu0 %v4624, 24
      %v4917 = vpop.permute.xlu0 %4916
      %4918 = vrot.lane.b32.xlu0 %v4636, 24
      %v4919 = vpop.permute.xlu0 %4918
      %4920 = vrot.lane.b32.xlu0 %v4644, 24
      %v4921 = vpop.permute.xlu0 %4920
      %4922 = vrot.lane.b32.xlu0 %v4656, 24
      %v4923 = vpop.permute.xlu0 %4922
      %4924 = vrot.lane.b32.xlu0 %v4664, 24
      %v4925 = vpop.permute.xlu0 %4924
      %4926 = vrot.lane.b32.xlu0 %v4676, 24
      %v4927 = vpop.permute.xlu0 %4926
      %4928 = vrot.lane.b32.xlu0 %v4684, 24
      %v4929 = vpop.permute.xlu0 %4928
      %4930 = vrot.lane.b32.xlu0 %v4696, 24
      %v4931 = vpop.permute.xlu0 %4930
      %4932 = vrot.lane.b32.xlu0 %v4704, 24
      %v4933 = vpop.permute.xlu0 %4932
      %4934 = vrot.lane.b32.xlu0 %v4716, 24
      %v4935 = vpop.permute.xlu0 %4934
      %4936 = vrot.lane.b32.xlu0 %v4724, 24
      %v4937 = vpop.permute.xlu0 %4936
      %4938 = vrot.lane.b32.xlu0 %v4736, 24
      %v4939 = vpop.permute.xlu0 %4938
      %4940 = vrot.lane.b32.xlu0 %v4744, 24
      %v4941 = vpop.permute.xlu0 %4940
      %4942 = vrot.lane.b32.xlu0 %v4905, 24
      %v4943 = vpop.permute.xlu0 %4942
      %4944 = vrot.lane.b32.xlu0 %v4913, 24
      %v4945 = vpop.permute.xlu0 %4944
      %v4946 = vrot.slane %v4857, 1
      %v4947 = vrot.slane %v4858, 1
      %v4948 = vsel %vm2374, %v4946, %v4947
      %v4949 = vrot.slane %v4893, 1
      %v4950 = vsel %vm2374, %v4947, %v4949
      %4951 = vrot.lane.b32.xlu0 %v4784, 30
      %v4952 = vpop.permute.xlu0 %4951
      %4953 = vrot.lane.b32.xlu0 %v4786, 30
      %v4954 = vpop.permute.xlu0 %4953
      %4955 = vrot.lane.b32.xlu0 %v4789, 30
      %v4956 = vpop.permute.xlu0 %4955
      %4957 = vrot.lane.b32.xlu0 %v4791, 30
      %v4958 = vpop.permute.xlu0 %4957
      %4959 = vrot.lane.b32.xlu0 %v4794, 30
      %v4960 = vpop.permute.xlu0 %4959
      %4961 = vrot.lane.b32.xlu0 %v4796, 30
      %v4962 = vpop.permute.xlu0 %4961
      %4963 = vrot.lane.b32.xlu0 %v4799, 30
      %v4964 = vpop.permute.xlu0 %4963
      %4965 = vrot.lane.b32.xlu0 %v4801, 30
      %v4966 = vpop.permute.xlu0 %4965
      %4967 = vrot.lane.b32.xlu0 %v4804, 30
      %v4968 = vpop.permute.xlu0 %4967
      %4969 = vrot.lane.b32.xlu0 %v4806, 30
      %v4970 = vpop.permute.xlu0 %4969
      %4971 = vrot.lane.b32.xlu0 %v4809, 30
      %v4972 = vpop.permute.xlu0 %4971
      %4973 = vrot.lane.b32.xlu0 %v4811, 30
      %v4974 = vpop.permute.xlu0 %4973
      %4975 = vrot.lane.b32.xlu0 %v4814, 30
      %v4976 = vpop.permute.xlu0 %4975
      %4977 = vrot.lane.b32.xlu0 %v4816, 30
      %v4978 = vpop.permute.xlu0 %4977
      %4979 = vrot.lane.b32.xlu0 %v4948, 30
      %v4980 = vpop.permute.xlu0 %4979
      %4981 = vrot.lane.b32.xlu0 %v4950, 30
      %v4982 = vpop.permute.xlu0 %4981
      %v4987 = vunpack.c.l.b16 %v4476
      %v4988 = vunpack.c.l.b16 %v4477
      %v4989 = vunpack.c.l.b16 %v4478
      %v4990 = vunpack.c.l.b16 %v4479
      %v4991 = vpack.c.b16 %v4988, %v4987
      %v4992 = vpack.c.b16 %v4990, %v4989
      %4993 = vrot.lane.b32.xlu0 %v4549, 36
      %v4994 = vpop.permute.xlu0 %4993
      %4995 = vrot.lane.b32.xlu0 %v4550, 36
      %v4996 = vpop.permute.xlu0 %4995
      %4997 = vrot.lane.b32.xlu0 %v4551, 36
      %v4998 = vpop.permute.xlu0 %4997
      %4999 = vrot.lane.b32.xlu0 %v4552, 36
      %v5000 = vpop.permute.xlu0 %4999
      %5001 = vrot.lane.b32.xlu0 %v4553, 36
      %v5002 = vpop.permute.xlu0 %5001
      %5003 = vrot.lane.b32.xlu0 %v4554, 36
      %v5004 = vpop.permute.xlu0 %5003
      %5005 = vrot.lane.b32.xlu0 %v4555, 36
      %v5006 = vpop.permute.xlu0 %5005
      %5007 = vrot.lane.b32.xlu0 %v4556, 36
      %v5008 = vpop.permute.xlu0 %5007
      %5009 = vrot.lane.b32.xlu0 %v4557, 36
      %v5010 = vpop.permute.xlu0 %5009
      %5011 = vrot.lane.b32.xlu0 %v4558, 36
      %v5012 = vpop.permute.xlu0 %5011
      %5013 = vrot.lane.b32.xlu0 %v4559, 36
      %v5014 = vpop.permute.xlu0 %5013
      %5015 = vrot.lane.b32.xlu0 %v4560, 36
      %v5016 = vpop.permute.xlu0 %5015
      %5017 = vrot.lane.b32.xlu0 %v4857, 36
      %v5018 = vpop.permute.xlu0 %5017
      %5019 = vrot.lane.b32.xlu0 %v4858, 36
      %v5020 = vpop.permute.xlu0 %5019
      %5021 = vrot.lane.b32.xlu0 %v4991, 36
      %v5022 = vpop.permute.xlu0 %5021
      %5023 = vrot.lane.b32.xlu0 %v4992, 36
      %v5024 = vpop.permute.xlu0 %5023
      %v5026 = vunpack.c.l.b16 %v4480
      %v5027 = vpack.c.b16 %v5026, %v5026
      %v5029 = vshrl.u32 %v4991, 16
      %v5031 = vshll.u32 %v4991, 16
      %v5033 = vrot.slane %v5031, 1
      %v5034 = vor.u32 %v5029, %v5033
      %v5036 = vshll.u32 %v4992, 16
      %v5038 = vrot.slane %v5036, 1
      %v5039 = vsel %vm2181, %v5034, %v5038
      %v5040 = vshrl.u32 %v4992, 16
      %v5042 = vor.u32 %v5040, %v5038
      %v5044 = vshll.u32 %v5027, 16
      %v5046 = vrot.slane %v5044, 1
      %v5047 = vsel %vm2181, %v5042, %v5046
      %5048 = vrot.lane.b32.xlu0 %v4636, 42
      %v5049 = vpop.permute.xlu0 %5048
      %5050 = vrot.lane.b32.xlu0 %v4644, 42
      %v5051 = vpop.permute.xlu0 %5050
      %5052 = vrot.lane.b32.xlu0 %v4656, 42
      %v5053 = vpop.permute.xlu0 %5052
      %5054 = vrot.lane.b32.xlu0 %v4664, 42
      %v5055 = vpop.permute.xlu0 %5054
      %5056 = vrot.lane.b32.xlu0 %v4676, 42
      %v5057 = vpop.permute.xlu0 %5056
      %5058 = vrot.lane.b32.xlu0 %v4684, 42
      %v5059 = vpop.permute.xlu0 %5058
      %5060 = vrot.lane.b32.xlu0 %v4696, 42
      %v5061 = vpop.permute.xlu0 %5060
      %5062 = vrot.lane.b32.xlu0 %v4704, 42
      %v5063 = vpop.permute.xlu0 %5062
      %5064 = vrot.lane.b32.xlu0 %v4716, 42
      %v5065 = vpop.permute.xlu0 %5064
      %5066 = vrot.lane.b32.xlu0 %v4724, 42
      %v5067 = vpop.permute.xlu0 %5066
      %5068 = vrot.lane.b32.xlu0 %v4736, 42
      %v5069 = vpop.permute.xlu0 %5068
      %5070 = vrot.lane.b32.xlu0 %v4744, 42
      %v5071 = vpop.permute.xlu0 %5070
      %5072 = vrot.lane.b32.xlu0 %v4905, 42
      %v5073 = vpop.permute.xlu0 %5072
      %5074 = vrot.lane.b32.xlu0 %v4913, 42
      %v5075 = vpop.permute.xlu0 %5074
      %5076 = vrot.lane.b32.xlu0 %v5039, 42
      %v5077 = vpop.permute.xlu0 %5076
      %5078 = vrot.lane.b32.xlu0 %v5047, 42
      %v5079 = vpop.permute.xlu0 %5078
      %v5080 = vrot.slane %v4991, 1
      %v5081 = vrot.slane %v4992, 1
      %v5082 = vsel %vm2374, %v5080, %v5081
      %v5083 = vrot.slane %v5027, 1
      %v5084 = vsel %vm2374, %v5081, %v5083
      %5085 = vrot.lane.b32.xlu0 %v4789, 48
      %v5086 = vpop.permute.xlu0 %5085
      %5087 = vrot.lane.b32.xlu0 %v4791, 48
      %v5088 = vpop.permute.xlu0 %5087
      %5089 = vrot.lane.b32.xlu0 %v4794, 48
      %v5090 = vpop.permute.xlu0 %5089
      %5091 = vrot.lane.b32.xlu0 %v4796, 48
      %v5092 = vpop.permute.xlu0 %5091
      %5093 = vrot.lane.b32.xlu0 %v4799, 48
      %v5094 = vpop.permute.xlu0 %5093
      %5095 = vrot.lane.b32.xlu0 %v4801, 48
      %v5096 = vpop.permute.xlu0 %5095
      %5097 = vrot.lane.b32.xlu0 %v4804, 48
      %v5098 = vpop.permute.xlu0 %5097
      %5099 = vrot.lane.b32.xlu0 %v4806, 48
      %v5100 = vpop.permute.xlu0 %5099
      %5101 = vrot.lane.b32.xlu0 %v4809, 48
      %v5102 = vpop.permute.xlu0 %5101
      %5103 = vrot.lane.b32.xlu0 %v4811, 48
      %v5104 = vpop.permute.xlu0 %5103
      %5105 = vrot.lane.b32.xlu0 %v4814, 48
      %v5106 = vpop.permute.xlu0 %5105
      %5107 = vrot.lane.b32.xlu0 %v4816, 48
      %v5108 = vpop.permute.xlu0 %5107
      %5109 = vrot.lane.b32.xlu0 %v4948, 48
      %v5110 = vpop.permute.xlu0 %5109
      %5111 = vrot.lane.b32.xlu0 %v4950, 48
      %v5112 = vpop.permute.xlu0 %5111
      %5113 = vrot.lane.b32.xlu0 %v5082, 48
      %v5114 = vpop.permute.xlu0 %5113
      %5115 = vrot.lane.b32.xlu0 %v5084, 48
      %v5116 = vpop.permute.xlu0 %5115
      %v5118 = vsel %vm2715, %v4545, %v4746
      %v5120 = vsel %vm2715, %v4546, %v4748
      %v5122 = vsel %vm2715, %v4547, %v4750
      %v5124 = vsel %vm2715, %v4548, %v4752
      %v5126 = vsel %vm2715, %v4549, %v4754
      %v5128 = vsel %vm2715, %v4550, %v4756
      %v5130 = vsel %vm2715, %v4551, %v4758
      %v5132 = vsel %vm2715, %v4552, %v4760
      %v5134 = vsel %vm2715, %v4553, %v4762
      %v5136 = vsel %vm2715, %v4554, %v4764
      %v5138 = vsel %vm2715, %v4555, %v4766
      %v5140 = vsel %vm2715, %v4556, %v4768
      %v5142 = vsel %vm2715, %v4557, %v4770
      %v5144 = vsel %vm2715, %v4558, %v4772
      %v5146 = vsel %vm2715, %v4559, %v4774
      %v5148 = vsel %vm2715, %v4560, %v4776
      %v5150 = vsel %vm2748, %v5118, %v4818
      %v5152 = vsel %vm2748, %v5120, %v4820
      %v5154 = vsel %vm2748, %v5122, %v4822
      %v5156 = vsel %vm2748, %v5124, %v4824
      %v5158 = vsel %vm2748, %v5126, %v4826
      %v5160 = vsel %vm2748, %v5128, %v4828
      %v5162 = vsel %vm2748, %v5130, %v4830
      %v5164 = vsel %vm2748, %v5132, %v4832
      %v5166 = vsel %vm2748, %v5134, %v4834
      %v5168 = vsel %vm2748, %v5136, %v4836
      %v5170 = vsel %vm2748, %v5138, %v4838
      %v5172 = vsel %vm2748, %v5140, %v4840
      %v5174 = vsel %vm2748, %v5142, %v4842
      %v5176 = vsel %vm2748, %v5144, %v4844
      %v5178 = vsel %vm2748, %v5146, %v4846
      %v5180 = vsel %vm2748, %v5148, %v4848
      %v5182 = vsel %vm2781, %v5150, %v4860
      %v5184 = vsel %vm2781, %v5152, %v4862
      %v5186 = vsel %vm2781, %v5154, %v4864
      %v5188 = vsel %vm2781, %v5156, %v4866
      %v5190 = vsel %vm2781, %v5158, %v4868
      %v5192 = vsel %vm2781, %v5160, %v4870
      %v5194 = vsel %vm2781, %v5162, %v4872
      %v5196 = vsel %vm2781, %v5164, %v4874
      %v5198 = vsel %vm2781, %v5166, %v4876
      %v5200 = vsel %vm2781, %v5168, %v4878
      %v5202 = vsel %vm2781, %v5170, %v4880
      %v5204 = vsel %vm2781, %v5172, %v4882
      %v5206 = vsel %vm2781, %v5174, %v4884
      %v5208 = vsel %vm2781, %v5176, %v4886
      %v5210 = vsel %vm2781, %v5178, %v4888
      %v5212 = vsel %vm2781, %v5180, %v4890
      %v5214 = vsel %vm2814, %v5182, %v4915
      %v5216 = vsel %vm2814, %v5184, %v4917
      %v5218 = vsel %vm2814, %v5186, %v4919
      %v5220 = vsel %vm2814, %v5188, %v4921
      %v5222 = vsel %vm2814, %v5190, %v4923
      %v5224 = vsel %vm2814, %v5192, %v4925
      %v5226 = vsel %vm2814, %v5194, %v4927
      %v5228 = vsel %vm2814, %v5196, %v4929
      %v5230 = vsel %vm2814, %v5198, %v4931
      %v5232 = vsel %vm2814, %v5200, %v4933
      %v5234 = vsel %vm2814, %v5202, %v4935
      %v5236 = vsel %vm2814, %v5204, %v4937
      %v5238 = vsel %vm2814, %v5206, %v4939
      %v5240 = vsel %vm2814, %v5208, %v4941
      %v5242 = vsel %vm2814, %v5210, %v4943
      %v5244 = vsel %vm2814, %v5212, %v4945
      %v5246 = vsel %vm2847, %v5214, %v4952
      %v5248 = vsel %vm2847, %v5216, %v4954
      %v5250 = vsel %vm2847, %v5218, %v4956
      %v5252 = vsel %vm2847, %v5220, %v4958
      %v5254 = vsel %vm2847, %v5222, %v4960
      %v5256 = vsel %vm2847, %v5224, %v4962
      %v5258 = vsel %vm2847, %v5226, %v4964
      %v5260 = vsel %vm2847, %v5228, %v4966
      %v5262 = vsel %vm2847, %v5230, %v4968
      %v5264 = vsel %vm2847, %v5232, %v4970
      %v5266 = vsel %vm2847, %v5234, %v4972
      %v5268 = vsel %vm2847, %v5236, %v4974
      %v5270 = vsel %vm2847, %v5238, %v4976
      %v5272 = vsel %vm2847, %v5240, %v4978
      %v5274 = vsel %vm2847, %v5242, %v4980
      %v5276 = vsel %vm2847, %v5244, %v4982
      %v5278 = vsel %vm2880, %v5246, %v4994
      %v5280 = vsel %vm2880, %v5248, %v4996
      %v5282 = vsel %vm2880, %v5250, %v4998
      %v5284 = vsel %vm2880, %v5252, %v5000
      %v5286 = vsel %vm2880, %v5254, %v5002
      %v5288 = vsel %vm2880, %v5256, %v5004
      %v5290 = vsel %vm2880, %v5258, %v5006
      %v5292 = vsel %vm2880, %v5260, %v5008
      %v5294 = vsel %vm2880, %v5262, %v5010
      %v5296 = vsel %vm2880, %v5264, %v5012
      %v5298 = vsel %vm2880, %v5266, %v5014
      %v5300 = vsel %vm2880, %v5268, %v5016
      %v5302 = vsel %vm2880, %v5270, %v5018
      %v5304 = vsel %vm2880, %v5272, %v5020
      %v5306 = vsel %vm2880, %v5274, %v5022
      %v5308 = vsel %vm2880, %v5276, %v5024
      %v5310 = vsel %vm2913, %v5278, %v5049
      %v5312 = vsel %vm2913, %v5280, %v5051
      %v5314 = vsel %vm2913, %v5282, %v5053
      %v5316 = vsel %vm2913, %v5284, %v5055
      %v5318 = vsel %vm2913, %v5286, %v5057
      %v5320 = vsel %vm2913, %v5288, %v5059
      %v5322 = vsel %vm2913, %v5290, %v5061
      %v5324 = vsel %vm2913, %v5292, %v5063
      %v5326 = vsel %vm2913, %v5294, %v5065
      %v5328 = vsel %vm2913, %v5296, %v5067
      %v5330 = vsel %vm2913, %v5298, %v5069
      %v5332 = vsel %vm2913, %v5300, %v5071
      %v5334 = vsel %vm2913, %v5302, %v5073
      %v5336 = vsel %vm2913, %v5304, %v5075
      %v5338 = vsel %vm2913, %v5306, %v5077
      %v5340 = vsel %vm2913, %v5308, %v5079
      %v5342 = vsel %vm2946, %v5310, %v5086
      %v5344 = vsel %vm2946, %v5312, %v5088
      %v5346 = vsel %vm2946, %v5314, %v5090
      %v5348 = vsel %vm2946, %v5316, %v5092
      %v5350 = vsel %vm2946, %v5318, %v5094
      %v5352 = vsel %vm2946, %v5320, %v5096
      %v5354 = vsel %vm2946, %v5322, %v5098
      %v5356 = vsel %vm2946, %v5324, %v5100
      %v5358 = vsel %vm2946, %v5326, %v5102
      %v5360 = vsel %vm2946, %v5328, %v5104
      %v5362 = vsel %vm2946, %v5330, %v5106
      %v5364 = vsel %vm2946, %v5332, %v5108
      %v5366 = vsel %vm2946, %v5334, %v5110
      %v5368 = vsel %vm2946, %v5336, %v5112
      %v5370 = vsel %vm2946, %v5338, %v5114
      %v5372 = vsel %vm2946, %v5340, %v5116
      %v5373 = vld [vmem:[%s210] sm:$0xf]
      %v5374 = vld [vmem:[%s210 + $0x4] sm:$0xf]
      %v5375 = vld [vmem:[%s210 + $0x8] sm:$0xf]
      %v5376 = vld [vmem:[%s210 + $0xc] sm:$0xf]
      %v5377 = vld [vmem:[%s210 + $0x10] sm:$0xf]
      %v5378 = vld [vmem:[%s210 + $0x14] sm:$0xf]
      %v5379 = vld [vmem:[%s210 + $0x18] sm:$0x7]
      %v5380 = vld [vmem:[%s213] sm:$0x1]
      %v5382 = vperm.slane %v5380, 0
      %v5391 = vunpack.c.l.b16 %v5373
      %v5392 = vunpack.c.l.b16 %v5374
      %v5393 = vunpack.c.l.b16 %v5375
      %v5394 = vunpack.c.l.b16 %v5376
      %v5395 = vunpack.c.l.b16 %v5377
      %v5396 = vunpack.c.l.b16 %v5378
      %v5397 = vunpack.c.l.b16 %v5379
      %v5398 = vpack.c.b16 %v5392, %v5391
      %v5399 = vpack.c.b16 %v5394, %v5393
      %v5400 = vpack.c.b16 %v5396, %v5395
      %v5401 = vpack.c.b16 %v5397, %v5397
      %v5405 = vsel %vm3011, %v5342, 0
      %v5407 = vsel %vm3011, %v5344, 0
      %v5409 = vsel %vm3011, %v5346, 0
      %v5411 = vsel %vm3011, %v5348, 0
      %v5413 = vsel %vm3011, %v5350, 0
      %v5415 = vsel %vm3011, %v5352, 0
      %v5417 = vsel %vm3011, %v5354, 0
      %v5419 = vsel %vm3011, %v5356, 0
      %v5421 = vsel %vm3011, %v5358, 0
      %v5423 = vsel %vm3011, %v5360, 0
      %v5425 = vsel %vm3011, %v5362, 0
      %v5427 = vsel %vm3011, %v5364, 0
      %v5429 = vsel %vm3011, %v5366, 0
      %v5431 = vsel %vm3011, %v5368, 0
      %v5433 = vsel %vm3011, %v5370, 0
      %v5435 = vsel %vm3011, %v5372, 0
      %v5438 = vsel %vm3044, %v5401, 0
      %5440 = vmatpush.bf16.msra.mxu0 0
      %5441 = vmatpush.bf16.msra.mxu0 0
      %5442 = vmatpush.bf16.msra.mxu0 0
      %5443 = vmatpush.bf16.msra.mxu0 0
      %5444 = vmatpush.bf16.msra.mxu0 %v5438
      %5445 = vmatpush.bf16.msra.mxu0 %v5400
      %5446 = vmatpush.bf16.msra.mxu0 %v5399
      %5447 = vmatpush.bf16.msra.mxu0 %v5398
      %5448 = vmatmul.bf16.gmra.mxu0 %v5405
      %v5449 = vpop.f32.mrf.mxu0
      %v5450 = vadd.f32 %v5382, %v5449
      %v5451 = vpop.f32.mrf.mxu0
      %v5452 = vadd.f32 %v5382, %v5451
      %5453 = vmatmul.bf16.gmra.mxu0 %v5407
      %v5454 = vpop.f32.mrf.mxu0
      %v5455 = vadd.f32 %v5382, %v5454
      %v5456 = vpop.f32.mrf.mxu0
      %v5457 = vadd.f32 %v5382, %v5456
      %5458 = vmatmul.bf16.gmra.mxu0 %v5409
      %v5459 = vpop.f32.mrf.mxu0
      %v5460 = vadd.f32 %v5382, %v5459
      %v5461 = vpop.f32.mrf.mxu0
      %v5462 = vadd.f32 %v5382, %v5461
      %5463 = vmatmul.bf16.gmra.mxu0 %v5411
      %v5464 = vpop.f32.mrf.mxu0
      %v5465 = vadd.f32 %v5382, %v5464
      %v5466 = vpop.f32.mrf.mxu0
      %v5467 = vadd.f32 %v5382, %v5466
      %5468 = vmatmul.bf16.gmra.mxu0 %v5413
      %v5469 = vpop.f32.mrf.mxu0
      %v5470 = vadd.f32 %v5382, %v5469
      %v5471 = vpop.f32.mrf.mxu0
      %v5472 = vadd.f32 %v5382, %v5471
      %5473 = vmatmul.bf16.gmra.mxu0 %v5415
      %v5474 = vpop.f32.mrf.mxu0
      %v5475 = vadd.f32 %v5382, %v5474
      %v5476 = vpop.f32.mrf.mxu0
      %v5477 = vadd.f32 %v5382, %v5476
      %5478 = vmatmul.bf16.gmra.mxu0 %v5417
      %v5479 = vpop.f32.mrf.mxu0
      %v5480 = vadd.f32 %v5382, %v5479
      %v5481 = vpop.f32.mrf.mxu0
      %v5482 = vadd.f32 %v5382, %v5481
      %5483 = vmatmul.bf16.gmra.mxu0 %v5419
      %v5484 = vpop.f32.mrf.mxu0
      %v5485 = vadd.f32 %v5382, %v5484
      %v5486 = vpop.f32.mrf.mxu0
      %v5487 = vadd.f32 %v5382, %v5486
      %5488 = vmatmul.bf16.gmra.mxu0 %v5421
      %v5489 = vpop.f32.mrf.mxu0
      %v5490 = vadd.f32 %v5382, %v5489
      %v5491 = vpop.f32.mrf.mxu0
      %v5492 = vadd.f32 %v5382, %v5491
      %5493 = vmatmul.bf16.gmra.mxu0 %v5423
      %v5494 = vpop.f32.mrf.mxu0
      %v5495 = vadd.f32 %v5382, %v5494
      %v5496 = vpop.f32.mrf.mxu0
      %v5497 = vadd.f32 %v5382, %v5496
      %5498 = vmatmul.bf16.gmra.mxu0 %v5425
      %v5499 = vpop.f32.mrf.mxu0
      %v5500 = vadd.f32 %v5382, %v5499
      %v5501 = vpop.f32.mrf.mxu0
      %v5502 = vadd.f32 %v5382, %v5501
      %5503 = vmatmul.bf16.gmra.mxu0 %v5427
      %v5504 = vpop.f32.mrf.mxu0
      %v5505 = vadd.f32 %v5382, %v5504
      %v5506 = vpop.f32.mrf.mxu0
      %v5507 = vadd.f32 %v5382, %v5506
      %5508 = vmatmul.bf16.gmra.mxu0 %v5429
      %v5509 = vpop.f32.mrf.mxu0
      %v5510 = vadd.f32 %v5382, %v5509
      %v5511 = vpop.f32.mrf.mxu0
      %v5512 = vadd.f32 %v5382, %v5511
      %5513 = vmatmul.bf16.gmra.mxu0 %v5431
      %v5514 = vpop.f32.mrf.mxu0
      %v5515 = vadd.f32 %v5382, %v5514
      %v5516 = vpop.f32.mrf.mxu0
      %v5517 = vadd.f32 %v5382, %v5516
      %5518 = vmatmul.bf16.gmra.mxu0 %v5433
      %v5519 = vpop.f32.mrf.mxu0
      %v5520 = vadd.f32 %v5382, %v5519
      %v5521 = vpop.f32.mrf.mxu0
      %v5522 = vadd.f32 %v5382, %v5521
      %5523 = vmatmul.bf16.gmra.mxu0 %v5435
      %v5524 = vpop.f32.mrf.mxu0
      %v5525 = vadd.f32 %v5382, %v5524
      %v5526 = vpop.f32.mrf.mxu0
      %v5527 = vadd.f32 %v5382, %v5526
      %5528 = vdwg.mxu0
      %v5529 = vmax.f32 %v5450, 0.0
      %v5530 = vmax.f32 %v5452, 0.0
      %v5531 = vmax.f32 %v5455, 0.0
      %v5532 = vmax.f32 %v5457, 0.0
      %v5533 = vmax.f32 %v5460, 0.0
      %v5534 = vmax.f32 %v5462, 0.0
      %v5535 = vmax.f32 %v5465, 0.0
      %v5536 = vmax.f32 %v5467, 0.0
      %v5537 = vmax.f32 %v5470, 0.0
      %v5538 = vmax.f32 %v5472, 0.0
      %v5539 = vmax.f32 %v5475, 0.0
      %v5540 = vmax.f32 %v5477, 0.0
      %v5541 = vmax.f32 %v5480, 0.0
      %v5542 = vmax.f32 %v5482, 0.0
      %v5543 = vmax.f32 %v5485, 0.0
      %v5544 = vmax.f32 %v5487, 0.0
      %v5545 = vmax.f32 %v5490, 0.0
      %v5546 = vmax.f32 %v5492, 0.0
      %v5547 = vmax.f32 %v5495, 0.0
      %v5548 = vmax.f32 %v5497, 0.0
      %v5549 = vmax.f32 %v5500, 0.0
      %v5550 = vmax.f32 %v5502, 0.0
      %v5551 = vmax.f32 %v5505, 0.0
      %v5552 = vmax.f32 %v5507, 0.0
      %v5553 = vmax.f32 %v5510, 0.0
      %v5554 = vmax.f32 %v5512, 0.0
      %v5555 = vmax.f32 %v5515, 0.0
      %v5556 = vmax.f32 %v5517, 0.0
      %v5557 = vmax.f32 %v5520, 0.0
      %v5558 = vmax.f32 %v5522, 0.0
      %v5559 = vmax.f32 %v5525, 0.0
      %v5560 = vmax.f32 %v5527, 0.0
      %v5561 = vpack.c.bf16 %v5529, %v5529
      %v5562 = vpack.c.bf16 %v5530, %v5530
      %v5563 = vpack.c.bf16 %v5531, %v5531
      %v5564 = vpack.c.bf16 %v5532, %v5532
      %v5565 = vpack.c.bf16 %v5533, %v5533
      %v5566 = vpack.c.bf16 %v5534, %v5534
      %v5567 = vpack.c.bf16 %v5535, %v5535
      %v5568 = vpack.c.bf16 %v5536, %v5536
      %v5569 = vpack.c.bf16 %v5537, %v5537
      %v5570 = vpack.c.bf16 %v5538, %v5538
      %v5571 = vpack.c.bf16 %v5539, %v5539
      %v5572 = vpack.c.bf16 %v5540, %v5540
      %v5573 = vpack.c.bf16 %v5541, %v5541
      %v5574 = vpack.c.bf16 %v5542, %v5542
      %v5575 = vpack.c.bf16 %v5543, %v5543
      %v5576 = vpack.c.bf16 %v5544, %v5544
      %v5577 = vpack.c.bf16 %v5545, %v5545
      %v5578 = vpack.c.bf16 %v5546, %v5546
      %v5579 = vpack.c.bf16 %v5547, %v5547
      %v5580 = vpack.c.bf16 %v5548, %v5548
      %v5581 = vpack.c.bf16 %v5549, %v5549
      %v5582 = vpack.c.bf16 %v5550, %v5550
      %v5583 = vpack.c.bf16 %v5551, %v5551
      %v5584 = vpack.c.bf16 %v5552, %v5552
      %v5585 = vpack.c.bf16 %v5553, %v5553
      %v5586 = vpack.c.bf16 %v5554, %v5554
      %v5587 = vpack.c.bf16 %v5555, %v5555
      %v5588 = vpack.c.bf16 %v5556, %v5556
      %v5589 = vpack.c.bf16 %v5557, %v5557
      %v5590 = vpack.c.bf16 %v5558, %v5558
      %v5591 = vpack.c.bf16 %v5559, %v5559
      %v5592 = vpack.c.bf16 %v5560, %v5560
      %s5593 = scalar_lea.vmem %s221, 256
      %5594 = vst.msk [vmem:[%s5593] sm:$0xf] %vm3201, %v5561
      %5595 = vst.msk [vmem:[%s5593 + $0x4] sm:$0xf] %vm3201, %v5562
      %5596 = vst.msk [vmem:[%s5593 + $0x8] sm:$0xf] %vm3201, %v5563
      %5597 = vst.msk [vmem:[%s5593 + $0xc] sm:$0xf] %vm3201, %v5564
      %5598 = vst.msk [vmem:[%s5593 + $0x10] sm:$0xf] %vm3201, %v5565
      %5599 = vst.msk [vmem:[%s5593 + $0x14] sm:$0xf] %vm3201, %v5566
      %5600 = vst.msk [vmem:[%s5593 + $0x18] sm:$0xf] %vm3201, %v5567
      %5601 = vst.msk [vmem:[%s5593 + $0x1c] sm:$0xf] %vm3201, %v5568
      %5602 = vst.msk [vmem:[%s5593 + $0x20] sm:$0xf] %vm3201, %v5569
      %5603 = vst.msk [vmem:[%s5593 + $0x24] sm:$0xf] %vm3201, %v5570
      %5604 = vst.msk [vmem:[%s5593 + $0x28] sm:$0xf] %vm3201, %v5571
      %5605 = vst.msk [vmem:[%s5593 + $0x2c] sm:$0xf] %vm3201, %v5572
      %5606 = vst.msk [vmem:[%s5593 + $0x30] sm:$0xf] %vm3201, %v5573
      %5607 = vst.msk [vmem:[%s5593 + $0x34] sm:$0xf] %vm3201, %v5574
      %5608 = vst.msk [vmem:[%s5593 + $0x38] sm:$0xf] %vm3201, %v5575
      %5609 = vst.msk [vmem:[%s5593 + $0x3c] sm:$0xf] %vm3201, %v5576
      %5610 = vst.msk [vmem:[%s5593 + $0x40] sm:$0xf] %vm3201, %v5577
      %5611 = vst.msk [vmem:[%s5593 + $0x44] sm:$0xf] %vm3201, %v5578
      %5612 = vst.msk [vmem:[%s5593 + $0x48] sm:$0xf] %vm3201, %v5579
      %5613 = vst.msk [vmem:[%s5593 + $0x4c] sm:$0xf] %vm3201, %v5580
      %5614 = vst.msk [vmem:[%s5593 + $0x50] sm:$0xf] %vm3201, %v5581
      %5615 = vst.msk [vmem:[%s5593 + $0x54] sm:$0xf] %vm3201, %v5582
      %5616 = vst.msk [vmem:[%s5593 + $0x58] sm:$0xf] %vm3201, %v5583
      %5617 = vst.msk [vmem:[%s5593 + $0x5c] sm:$0xf] %vm3201, %v5584
      %5618 = vst.msk [vmem:[%s5593 + $0x60] sm:$0xf] %vm3201, %v5585
      %5619 = vst.msk [vmem:[%s5593 + $0x64] sm:$0xf] %vm3201, %v5586
      %5620 = vst.msk [vmem:[%s5593 + $0x68] sm:$0xf] %vm3201, %v5587
      %5621 = vst.msk [vmem:[%s5593 + $0x6c] sm:$0xf] %vm3201, %v5588
      %5622 = vst.msk [vmem:[%s5593 + $0x70] sm:$0xf] %vm3201, %v5589
      %5623 = vst.msk [vmem:[%s5593 + $0x74] sm:$0xf] %vm3201, %v5590
      %5624 = vst.msk [vmem:[%s5593 + $0x78] sm:$0xf] %vm3201, %v5591
      %5625 = vst.msk [vmem:[%s5593 + $0x7c] sm:$0xf] %vm3201, %v5592
      %s5626 = scalar_lea.vmem [#allocation2], 480
      %v5627 = vld [vmem:[%s5626] sm:$0xf]
      %v5628 = vld [vmem:[%s5626 + $0x4] sm:$0xf]
      %v5629 = vld [vmem:[%s5626 + $0x8] sm:$0xf]
      %v5630 = vld [vmem:[%s5626 + $0xc] sm:$0xf]
      %v5631 = vld [vmem:[%s5626 + $0x10] sm:$0x1]
      %v5632 = vld [vmem:[%s5626 + $0x14] sm:$0xf]
      %v5633 = vld [vmem:[%s5626 + $0x18] sm:$0xf]
      %v5634 = vld [vmem:[%s5626 + $0x1c] sm:$0xf]
      %v5635 = vld [vmem:[%s5626 + $0x20] sm:$0xf]
      %v5636 = vld [vmem:[%s5626 + $0x24] sm:$0x1]
      %v5637 = vld [vmem:[%s5626 + $0x28] sm:$0xf]
      %v5638 = vld [vmem:[%s5626 + $0x2c] sm:$0xf]
      %v5639 = vld [vmem:[%s5626 + $0x30] sm:$0xf]
      %v5640 = vld [vmem:[%s5626 + $0x34] sm:$0xf]
      %v5641 = vld [vmem:[%s5626 + $0x38] sm:$0x1]
      %v5642 = vld [vmem:[%s5626 + $0x3c] sm:$0xf]
      %v5643 = vld [vmem:[%s5626 + $0x40] sm:$0xf]
      %v5644 = vld [vmem:[%s5626 + $0x44] sm:$0xf]
      %v5645 = vld [vmem:[%s5626 + $0x48] sm:$0xf]
      %v5646 = vld [vmem:[%s5626 + $0x4c] sm:$0x1]
      %v5647 = vld [vmem:[%s5626 + $0x50] sm:$0xf]
      %v5648 = vld [vmem:[%s5626 + $0x54] sm:$0xf]
      %v5649 = vld [vmem:[%s5626 + $0x58] sm:$0xf]
      %v5650 = vld [vmem:[%s5626 + $0x5c] sm:$0xf]
      %v5651 = vld [vmem:[%s5626 + $0x60] sm:$0x1]
      %v5652 = vld [vmem:[%s5626 + $0x64] sm:$0xf]
      %v5653 = vld [vmem:[%s5626 + $0x68] sm:$0xf]
      %v5654 = vld [vmem:[%s5626 + $0x6c] sm:$0xf]
      %v5655 = vld [vmem:[%s5626 + $0x70] sm:$0xf]
      %v5656 = vld [vmem:[%s5626 + $0x74] sm:$0x1]
      %v5657 = vld [vmem:[%s5626 + $0x78] sm:$0xf]
      %v5658 = vld [vmem:[%s5626 + $0x7c] sm:$0xf]
      %v5659 = vld [vmem:[%s5626 + $0x80] sm:$0xf]
      %v5660 = vld [vmem:[%s5626 + $0x84] sm:$0xf]
      %v5661 = vld [vmem:[%s5626 + $0x88] sm:$0x1]
      %v5662 = vld [vmem:[%s5626 + $0x8c] sm:$0xf]
      %v5663 = vld [vmem:[%s5626 + $0x90] sm:$0xf]
      %v5664 = vld [vmem:[%s5626 + $0x94] sm:$0xf]
      %v5665 = vld [vmem:[%s5626 + $0x98] sm:$0xf]
      %v5666 = vld [vmem:[%s5626 + $0x9c] sm:$0x1]
      %v5667 = vld [vmem:[%s5626 + $0xa0] sm:$0xf]
      %v5668 = vld [vmem:[%s5626 + $0xa4] sm:$0xf]
      %v5669 = vld [vmem:[%s5626 + $0xa8] sm:$0xf]
      %v5670 = vld [vmem:[%s5626 + $0xac] sm:$0xf]
      %v5671 = vld [vmem:[%s5626 + $0xb0] sm:$0x1]
      %v5672 = vld [vmem:[%s5626 + $0xb4] sm:$0xf]
      %v5673 = vld [vmem:[%s5626 + $0xb8] sm:$0xf]
      %v5674 = vld [vmem:[%s5626 + $0xbc] sm:$0xf]
      %v5675 = vld [vmem:[%s5626 + $0xc0] sm:$0xf]
      %v5676 = vld [vmem:[%s5626 + $0xc4] sm:$0x1]
      %v5709 = vunpack.c.l.b16 %v5627
      %v5710 = vunpack.c.l.b16 %v5628
      %v5711 = vunpack.c.l.b16 %v5629
      %v5712 = vunpack.c.l.b16 %v5630
      %v5713 = vunpack.c.l.b16 %v5632
      %v5714 = vunpack.c.l.b16 %v5633
      %v5715 = vunpack.c.l.b16 %v5634
      %v5716 = vunpack.c.l.b16 %v5635
      %v5717 = vunpack.c.l.b16 %v5637
      %v5718 = vunpack.c.l.b16 %v5638
      %v5719 = vunpack.c.l.b16 %v5639
      %v5720 = vunpack.c.l.b16 %v5640
      %v5721 = vunpack.c.l.b16 %v5642
      %v5722 = vunpack.c.l.b16 %v5643
      %v5723 = vunpack.c.l.b16 %v5644
      %v5724 = vunpack.c.l.b16 %v5645
      %v5725 = vunpack.c.l.b16 %v5647
      %v5726 = vunpack.c.l.b16 %v5648
      %v5727 = vunpack.c.l.b16 %v5649
      %v5728 = vunpack.c.l.b16 %v5650
      %v5729 = vunpack.c.l.b16 %v5652
      %v5730 = vunpack.c.l.b16 %v5653
      %v5731 = vunpack.c.l.b16 %v5654
      %v5732 = vunpack.c.l.b16 %v5655
      %v5733 = vunpack.c.l.b16 %v5657
      %v5734 = vunpack.c.l.b16 %v5658
      %v5735 = vunpack.c.l.b16 %v5659
      %v5736 = vunpack.c.l.b16 %v5660
      %v5737 = vunpack.c.l.b16 %v5662
      %v5738 = vunpack.c.l.b16 %v5663
      %v5739 = vunpack.c.l.b16 %v5664
      %v5740 = vunpack.c.l.b16 %v5665
      %v5741 = vpack.c.b16 %v5710, %v5709
      %v5742 = vpack.c.b16 %v5712, %v5711
      %v5743 = vpack.c.b16 %v5714, %v5713
      %v5744 = vpack.c.b16 %v5716, %v5715
      %v5745 = vpack.c.b16 %v5718, %v5717
      %v5746 = vpack.c.b16 %v5720, %v5719
      %v5747 = vpack.c.b16 %v5722, %v5721
      %v5748 = vpack.c.b16 %v5724, %v5723
      %v5749 = vpack.c.b16 %v5726, %v5725
      %v5750 = vpack.c.b16 %v5728, %v5727
      %v5751 = vpack.c.b16 %v5730, %v5729
      %v5752 = vpack.c.b16 %v5732, %v5731
      %v5753 = vpack.c.b16 %v5734, %v5733
      %v5754 = vpack.c.b16 %v5736, %v5735
      %v5755 = vpack.c.b16 %v5738, %v5737
      %v5756 = vpack.c.b16 %v5740, %v5739
      %v5765 = vunpack.c.l.b16 %v5631
      %v5766 = vunpack.c.l.b16 %v5636
      %v5767 = vunpack.c.l.b16 %v5641
      %v5768 = vunpack.c.l.b16 %v5646
      %v5769 = vunpack.c.l.b16 %v5651
      %v5770 = vunpack.c.l.b16 %v5656
      %v5771 = vunpack.c.l.b16 %v5661
      %v5772 = vunpack.c.l.b16 %v5666
      %v5773 = vpack.c.b16 %v5765, %v5765
      %v5774 = vpack.c.b16 %v5766, %v5766
      %v5775 = vpack.c.b16 %v5767, %v5767
      %v5776 = vpack.c.b16 %v5768, %v5768
      %v5777 = vpack.c.b16 %v5769, %v5769
      %v5778 = vpack.c.b16 %v5770, %v5770
      %v5779 = vpack.c.b16 %v5771, %v5771
      %v5780 = vpack.c.b16 %v5772, %v5772
      %v5782 = vshrl.u32 %v5741, 16
      %v5784 = vshll.u32 %v5741, 16
      %v5786 = vrot.slane %v5784, 1
      %v5787 = vor.u32 %v5782, %v5786
      %v5789 = vshll.u32 %v5742, 16
      %v5791 = vrot.slane %v5789, 1
      %v5792 = vsel %vm2181, %v5787, %v5791
      %v5793 = vshrl.u32 %v5742, 16
      %v5795 = vor.u32 %v5793, %v5791
      %v5797 = vshll.u32 %v5773, 16
      %v5799 = vrot.slane %v5797, 1
      %v5800 = vsel %vm2181, %v5795, %v5799
      %v5802 = vshrl.u32 %v5743, 16
      %v5804 = vshll.u32 %v5743, 16
      %v5806 = vrot.slane %v5804, 1
      %v5807 = vor.u32 %v5802, %v5806
      %v5809 = vshll.u32 %v5744, 16
      %v5811 = vrot.slane %v5809, 1
      %v5812 = vsel %vm2181, %v5807, %v5811
      %v5813 = vshrl.u32 %v5744, 16
      %v5815 = vor.u32 %v5813, %v5811
      %v5817 = vshll.u32 %v5774, 16
      %v5819 = vrot.slane %v5817, 1
      %v5820 = vsel %vm2181, %v5815, %v5819
      %v5822 = vshrl.u32 %v5745, 16
      %v5824 = vshll.u32 %v5745, 16
      %v5826 = vrot.slane %v5824, 1
      %v5827 = vor.u32 %v5822, %v5826
      %v5829 = vshll.u32 %v5746, 16
      %v5831 = vrot.slane %v5829, 1
      %v5832 = vsel %vm2181, %v5827, %v5831
      %v5833 = vshrl.u32 %v5746, 16
      %v5835 = vor.u32 %v5833, %v5831
      %v5837 = vshll.u32 %v5775, 16
      %v5839 = vrot.slane %v5837, 1
      %v5840 = vsel %vm2181, %v5835, %v5839
      %v5842 = vshrl.u32 %v5747, 16
      %v5844 = vshll.u32 %v5747, 16
      %v5846 = vrot.slane %v5844, 1
      %v5847 = vor.u32 %v5842, %v5846
      %v5849 = vshll.u32 %v5748, 16
      %v5851 = vrot.slane %v5849, 1
      %v5852 = vsel %vm2181, %v5847, %v5851
      %v5853 = vshrl.u32 %v5748, 16
      %v5855 = vor.u32 %v5853, %v5851
      %v5857 = vshll.u32 %v5776, 16
      %v5859 = vrot.slane %v5857, 1
      %v5860 = vsel %vm2181, %v5855, %v5859
      %v5862 = vshrl.u32 %v5749, 16
      %v5864 = vshll.u32 %v5749, 16
      %v5866 = vrot.slane %v5864, 1
      %v5867 = vor.u32 %v5862, %v5866
      %v5869 = vshll.u32 %v5750, 16
      %v5871 = vrot.slane %v5869, 1
      %v5872 = vsel %vm2181, %v5867, %v5871
      %v5873 = vshrl.u32 %v5750, 16
      %v5875 = vor.u32 %v5873, %v5871
      %v5877 = vshll.u32 %v5777, 16
      %v5879 = vrot.slane %v5877, 1
      %v5880 = vsel %vm2181, %v5875, %v5879
      %v5882 = vshrl.u32 %v5751, 16
      %v5884 = vshll.u32 %v5751, 16
      %v5886 = vrot.slane %v5884, 1
      %v5887 = vor.u32 %v5882, %v5886
      %v5889 = vshll.u32 %v5752, 16
      %v5891 = vrot.slane %v5889, 1
      %v5892 = vsel %vm2181, %v5887, %v5891
      %v5893 = vshrl.u32 %v5752, 16
      %v5895 = vor.u32 %v5893, %v5891
      %v5897 = vshll.u32 %v5778, 16
      %v5899 = vrot.slane %v5897, 1
      %v5900 = vsel %vm2181, %v5895, %v5899
      %v5902 = vshrl.u32 %v5753, 16
      %v5904 = vshll.u32 %v5753, 16
      %v5906 = vrot.slane %v5904, 1
      %v5907 = vor.u32 %v5902, %v5906
      %v5909 = vshll.u32 %v5754, 16
      %v5911 = vrot.slane %v5909, 1
      %v5912 = vsel %vm2181, %v5907, %v5911
      %v5913 = vshrl.u32 %v5754, 16
      %v5915 = vor.u32 %v5913, %v5911
      %v5917 = vshll.u32 %v5779, 16
      %v5919 = vrot.slane %v5917, 1
      %v5920 = vsel %vm2181, %v5915, %v5919
      %v5922 = vshrl.u32 %v5755, 16
      %v5924 = vshll.u32 %v5755, 16
      %v5926 = vrot.slane %v5924, 1
      %v5927 = vor.u32 %v5922, %v5926
      %v5929 = vshll.u32 %v5756, 16
      %v5931 = vrot.slane %v5929, 1
      %v5932 = vsel %vm2181, %v5927, %v5931
      %v5933 = vshrl.u32 %v5756, 16
      %v5935 = vor.u32 %v5933, %v5931
      %v5937 = vshll.u32 %v5780, 16
      %v5939 = vrot.slane %v5937, 1
      %v5940 = vsel %vm2181, %v5935, %v5939
      %5941 = vrot.lane.b32.xlu0 %v5792, 6
      %v5942 = vpop.permute.xlu0 %5941
      %5943 = vrot.lane.b32.xlu0 %v5800, 6
      %v5944 = vpop.permute.xlu0 %5943
      %5945 = vrot.lane.b32.xlu0 %v5812, 6
      %v5946 = vpop.permute.xlu0 %5945
      %5947 = vrot.lane.b32.xlu0 %v5820, 6
      %v5948 = vpop.permute.xlu0 %5947
      %5949 = vrot.lane.b32.xlu0 %v5832, 6
      %v5950 = vpop.permute.xlu0 %5949
      %5951 = vrot.lane.b32.xlu0 %v5840, 6
      %v5952 = vpop.permute.xlu0 %5951
      %5953 = vrot.lane.b32.xlu0 %v5852, 6
      %v5954 = vpop.permute.xlu0 %5953
      %5955 = vrot.lane.b32.xlu0 %v5860, 6
      %v5956 = vpop.permute.xlu0 %5955
      %5957 = vrot.lane.b32.xlu0 %v5872, 6
      %v5958 = vpop.permute.xlu0 %5957
      %5959 = vrot.lane.b32.xlu0 %v5880, 6
      %v5960 = vpop.permute.xlu0 %5959
      %5961 = vrot.lane.b32.xlu0 %v5892, 6
      %v5962 = vpop.permute.xlu0 %5961
      %5963 = vrot.lane.b32.xlu0 %v5900, 6
      %v5964 = vpop.permute.xlu0 %5963
      %5965 = vrot.lane.b32.xlu0 %v5912, 6
      %v5966 = vpop.permute.xlu0 %5965
      %5967 = vrot.lane.b32.xlu0 %v5920, 6
      %v5968 = vpop.permute.xlu0 %5967
      %5969 = vrot.lane.b32.xlu0 %v5932, 6
      %v5970 = vpop.permute.xlu0 %5969
      %5971 = vrot.lane.b32.xlu0 %v5940, 6
      %v5972 = vpop.permute.xlu0 %5971
      %v5973 = vrot.slane %v5741, 1
      %v5974 = vrot.slane %v5742, 1
      %v5975 = vsel %vm2374, %v5973, %v5974
      %v5976 = vrot.slane %v5773, 1
      %v5977 = vsel %vm2374, %v5974, %v5976
      %v5978 = vrot.slane %v5743, 1
      %v5979 = vrot.slane %v5744, 1
      %v5980 = vsel %vm2374, %v5978, %v5979
      %v5981 = vrot.slane %v5774, 1
      %v5982 = vsel %vm2374, %v5979, %v5981
      %v5983 = vrot.slane %v5745, 1
      %v5984 = vrot.slane %v5746, 1
      %v5985 = vsel %vm2374, %v5983, %v5984
      %v5986 = vrot.slane %v5775, 1
      %v5987 = vsel %vm2374, %v5984, %v5986
      %v5988 = vrot.slane %v5747, 1
      %v5989 = vrot.slane %v5748, 1
      %v5990 = vsel %vm2374, %v5988, %v5989
      %v5991 = vrot.slane %v5776, 1
      %v5992 = vsel %vm2374, %v5989, %v5991
      %v5993 = vrot.slane %v5749, 1
      %v5994 = vrot.slane %v5750, 1
      %v5995 = vsel %vm2374, %v5993, %v5994
      %v5996 = vrot.slane %v5777, 1
      %v5997 = vsel %vm2374, %v5994, %v5996
      %v5998 = vrot.slane %v5751, 1
      %v5999 = vrot.slane %v5752, 1
      %v6000 = vsel %vm2374, %v5998, %v5999
      %v6001 = vrot.slane %v5778, 1
      %v6002 = vsel %vm2374, %v5999, %v6001
      %v6003 = vrot.slane %v5753, 1
      %v6004 = vrot.slane %v5754, 1
      %v6005 = vsel %vm2374, %v6003, %v6004
      %v6006 = vrot.slane %v5779, 1
      %v6007 = vsel %vm2374, %v6004, %v6006
      %v6008 = vrot.slane %v5755, 1
      %v6009 = vrot.slane %v5756, 1
      %v6010 = vsel %vm2374, %v6008, %v6009
      %v6011 = vrot.slane %v5780, 1
      %v6012 = vsel %vm2374, %v6009, %v6011
      %6013 = vrot.lane.b32.xlu0 %v5975, 12
      %v6014 = vpop.permute.xlu0 %6013
      %6015 = vrot.lane.b32.xlu0 %v5977, 12
      %v6016 = vpop.permute.xlu0 %6015
      %6017 = vrot.lane.b32.xlu0 %v5980, 12
      %v6018 = vpop.permute.xlu0 %6017
      %6019 = vrot.lane.b32.xlu0 %v5982, 12
      %v6020 = vpop.permute.xlu0 %6019
      %6021 = vrot.lane.b32.xlu0 %v5985, 12
      %v6022 = vpop.permute.xlu0 %6021
      %6023 = vrot.lane.b32.xlu0 %v5987, 12
      %v6024 = vpop.permute.xlu0 %6023
      %6025 = vrot.lane.b32.xlu0 %v5990, 12
      %v6026 = vpop.permute.xlu0 %6025
      %6027 = vrot.lane.b32.xlu0 %v5992, 12
      %v6028 = vpop.permute.xlu0 %6027
      %6029 = vrot.lane.b32.xlu0 %v5995, 12
      %v6030 = vpop.permute.xlu0 %6029
      %6031 = vrot.lane.b32.xlu0 %v5997, 12
      %v6032 = vpop.permute.xlu0 %6031
      %6033 = vrot.lane.b32.xlu0 %v6000, 12
      %v6034 = vpop.permute.xlu0 %6033
      %6035 = vrot.lane.b32.xlu0 %v6002, 12
      %v6036 = vpop.permute.xlu0 %6035
      %6037 = vrot.lane.b32.xlu0 %v6005, 12
      %v6038 = vpop.permute.xlu0 %6037
      %6039 = vrot.lane.b32.xlu0 %v6007, 12
      %v6040 = vpop.permute.xlu0 %6039
      %6041 = vrot.lane.b32.xlu0 %v6010, 12
      %v6042 = vpop.permute.xlu0 %6041
      %6043 = vrot.lane.b32.xlu0 %v6012, 12
      %v6044 = vpop.permute.xlu0 %6043
      %v6049 = vunpack.c.l.b16 %v5667
      %v6050 = vunpack.c.l.b16 %v5668
      %v6051 = vunpack.c.l.b16 %v5669
      %v6052 = vunpack.c.l.b16 %v5670
      %v6053 = vpack.c.b16 %v6050, %v6049
      %v6054 = vpack.c.b16 %v6052, %v6051
      %6055 = vrot.lane.b32.xlu0 %v5743, 18
      %v6056 = vpop.permute.xlu0 %6055
      %6057 = vrot.lane.b32.xlu0 %v5744, 18
      %v6058 = vpop.permute.xlu0 %6057
      %6059 = vrot.lane.b32.xlu0 %v5745, 18
      %v6060 = vpop.permute.xlu0 %6059
      %6061 = vrot.lane.b32.xlu0 %v5746, 18
      %v6062 = vpop.permute.xlu0 %6061
      %6063 = vrot.lane.b32.xlu0 %v5747, 18
      %v6064 = vpop.permute.xlu0 %6063
      %6065 = vrot.lane.b32.xlu0 %v5748, 18
      %v6066 = vpop.permute.xlu0 %6065
      %6067 = vrot.lane.b32.xlu0 %v5749, 18
      %v6068 = vpop.permute.xlu0 %6067
      %6069 = vrot.lane.b32.xlu0 %v5750, 18
      %v6070 = vpop.permute.xlu0 %6069
      %6071 = vrot.lane.b32.xlu0 %v5751, 18
      %v6072 = vpop.permute.xlu0 %6071
      %6073 = vrot.lane.b32.xlu0 %v5752, 18
      %v6074 = vpop.permute.xlu0 %6073
      %6075 = vrot.lane.b32.xlu0 %v5753, 18
      %v6076 = vpop.permute.xlu0 %6075
      %6077 = vrot.lane.b32.xlu0 %v5754, 18
      %v6078 = vpop.permute.xlu0 %6077
      %6079 = vrot.lane.b32.xlu0 %v5755, 18
      %v6080 = vpop.permute.xlu0 %6079
      %6081 = vrot.lane.b32.xlu0 %v5756, 18
      %v6082 = vpop.permute.xlu0 %6081
      %6083 = vrot.lane.b32.xlu0 %v6053, 18
      %v6084 = vpop.permute.xlu0 %6083
      %6085 = vrot.lane.b32.xlu0 %v6054, 18
      %v6086 = vpop.permute.xlu0 %6085
      %v6088 = vunpack.c.l.b16 %v5671
      %v6089 = vpack.c.b16 %v6088, %v6088
      %v6091 = vshrl.u32 %v6053, 16
      %v6093 = vshll.u32 %v6053, 16
      %v6095 = vrot.slane %v6093, 1
      %v6096 = vor.u32 %v6091, %v6095
      %v6098 = vshll.u32 %v6054, 16
      %v6100 = vrot.slane %v6098, 1
      %v6101 = vsel %vm2181, %v6096, %v6100
      %v6102 = vshrl.u32 %v6054, 16
      %v6104 = vor.u32 %v6102, %v6100
      %v6106 = vshll.u32 %v6089, 16
      %v6108 = vrot.slane %v6106, 1
      %v6109 = vsel %vm2181, %v6104, %v6108
      %6110 = vrot.lane.b32.xlu0 %v5812, 24
      %v6111 = vpop.permute.xlu0 %6110
      %6112 = vrot.lane.b32.xlu0 %v5820, 24
      %v6113 = vpop.permute.xlu0 %6112
      %6114 = vrot.lane.b32.xlu0 %v5832, 24
      %v6115 = vpop.permute.xlu0 %6114
      %6116 = vrot.lane.b32.xlu0 %v5840, 24
      %v6117 = vpop.permute.xlu0 %6116
      %6118 = vrot.lane.b32.xlu0 %v5852, 24
      %v6119 = vpop.permute.xlu0 %6118
      %6120 = vrot.lane.b32.xlu0 %v5860, 24
      %v6121 = vpop.permute.xlu0 %6120
      %6122 = vrot.lane.b32.xlu0 %v5872, 24
      %v6123 = vpop.permute.xlu0 %6122
      %6124 = vrot.lane.b32.xlu0 %v5880, 24
      %v6125 = vpop.permute.xlu0 %6124
      %6126 = vrot.lane.b32.xlu0 %v5892, 24
      %v6127 = vpop.permute.xlu0 %6126
      %6128 = vrot.lane.b32.xlu0 %v5900, 24
      %v6129 = vpop.permute.xlu0 %6128
      %6130 = vrot.lane.b32.xlu0 %v5912, 24
      %v6131 = vpop.permute.xlu0 %6130
      %6132 = vrot.lane.b32.xlu0 %v5920, 24
      %v6133 = vpop.permute.xlu0 %6132
      %6134 = vrot.lane.b32.xlu0 %v5932, 24
      %v6135 = vpop.permute.xlu0 %6134
      %6136 = vrot.lane.b32.xlu0 %v5940, 24
      %v6137 = vpop.permute.xlu0 %6136
      %6138 = vrot.lane.b32.xlu0 %v6101, 24
      %v6139 = vpop.permute.xlu0 %6138
      %6140 = vrot.lane.b32.xlu0 %v6109, 24
      %v6141 = vpop.permute.xlu0 %6140
      %v6142 = vrot.slane %v6053, 1
      %v6143 = vrot.slane %v6054, 1
      %v6144 = vsel %vm2374, %v6142, %v6143
      %v6145 = vrot.slane %v6089, 1
      %v6146 = vsel %vm2374, %v6143, %v6145
      %6147 = vrot.lane.b32.xlu0 %v5980, 30
      %v6148 = vpop.permute.xlu0 %6147
      %6149 = vrot.lane.b32.xlu0 %v5982, 30
      %v6150 = vpop.permute.xlu0 %6149
      %6151 = vrot.lane.b32.xlu0 %v5985, 30
      %v6152 = vpop.permute.xlu0 %6151
      %6153 = vrot.lane.b32.xlu0 %v5987, 30
      %v6154 = vpop.permute.xlu0 %6153
      %6155 = vrot.lane.b32.xlu0 %v5990, 30
      %v6156 = vpop.permute.xlu0 %6155
      %6157 = vrot.lane.b32.xlu0 %v5992, 30
      %v6158 = vpop.permute.xlu0 %6157
      %6159 = vrot.lane.b32.xlu0 %v5995, 30
      %v6160 = vpop.permute.xlu0 %6159
      %6161 = vrot.lane.b32.xlu0 %v5997, 30
      %v6162 = vpop.permute.xlu0 %6161
      %6163 = vrot.lane.b32.xlu0 %v6000, 30
      %v6164 = vpop.permute.xlu0 %6163
      %6165 = vrot.lane.b32.xlu0 %v6002, 30
      %v6166 = vpop.permute.xlu0 %6165
      %6167 = vrot.lane.b32.xlu0 %v6005, 30
      %v6168 = vpop.permute.xlu0 %6167
      %6169 = vrot.lane.b32.xlu0 %v6007, 30
      %v6170 = vpop.permute.xlu0 %6169
      %6171 = vrot.lane.b32.xlu0 %v6010, 30
      %v6172 = vpop.permute.xlu0 %6171
      %6173 = vrot.lane.b32.xlu0 %v6012, 30
      %v6174 = vpop.permute.xlu0 %6173
      %6175 = vrot.lane.b32.xlu0 %v6144, 30
      %v6176 = vpop.permute.xlu0 %6175
      %6177 = vrot.lane.b32.xlu0 %v6146, 30
      %v6178 = vpop.permute.xlu0 %6177
      %v6183 = vunpack.c.l.b16 %v5672
      %v6184 = vunpack.c.l.b16 %v5673
      %v6185 = vunpack.c.l.b16 %v5674
      %v6186 = vunpack.c.l.b16 %v5675
      %v6187 = vpack.c.b16 %v6184, %v6183
      %v6188 = vpack.c.b16 %v6186, %v6185
      %6189 = vrot.lane.b32.xlu0 %v5745, 36
      %v6190 = vpop.permute.xlu0 %6189
      %6191 = vrot.lane.b32.xlu0 %v5746, 36
      %v6192 = vpop.permute.xlu0 %6191
      %6193 = vrot.lane.b32.xlu0 %v5747, 36
      %v6194 = vpop.permute.xlu0 %6193
      %6195 = vrot.lane.b32.xlu0 %v5748, 36
      %v6196 = vpop.permute.xlu0 %6195
      %6197 = vrot.lane.b32.xlu0 %v5749, 36
      %v6198 = vpop.permute.xlu0 %6197
      %6199 = vrot.lane.b32.xlu0 %v5750, 36
      %v6200 = vpop.permute.xlu0 %6199
      %6201 = vrot.lane.b32.xlu0 %v5751, 36
      %v6202 = vpop.permute.xlu0 %6201
      %6203 = vrot.lane.b32.xlu0 %v5752, 36
      %v6204 = vpop.permute.xlu0 %6203
      %6205 = vrot.lane.b32.xlu0 %v5753, 36
      %v6206 = vpop.permute.xlu0 %6205
      %6207 = vrot.lane.b32.xlu0 %v5754, 36
      %v6208 = vpop.permute.xlu0 %6207
      %6209 = vrot.lane.b32.xlu0 %v5755, 36
      %v6210 = vpop.permute.xlu0 %6209
      %6211 = vrot.lane.b32.xlu0 %v5756, 36
      %v6212 = vpop.permute.xlu0 %6211
      %6213 = vrot.lane.b32.xlu0 %v6053, 36
      %v6214 = vpop.permute.xlu0 %6213
      %6215 = vrot.lane.b32.xlu0 %v6054, 36
      %v6216 = vpop.permute.xlu0 %6215
      %6217 = vrot.lane.b32.xlu0 %v6187, 36
      %v6218 = vpop.permute.xlu0 %6217
      %6219 = vrot.lane.b32.xlu0 %v6188, 36
      %v6220 = vpop.permute.xlu0 %6219
      %v6222 = vunpack.c.l.b16 %v5676
      %v6223 = vpack.c.b16 %v6222, %v6222
      %v6225 = vshrl.u32 %v6187, 16
      %v6227 = vshll.u32 %v6187, 16
      %v6229 = vrot.slane %v6227, 1
      %v6230 = vor.u32 %v6225, %v6229
      %v6232 = vshll.u32 %v6188, 16
      %v6234 = vrot.slane %v6232, 1
      %v6235 = vsel %vm2181, %v6230, %v6234
      %v6236 = vshrl.u32 %v6188, 16
      %v6238 = vor.u32 %v6236, %v6234
      %v6240 = vshll.u32 %v6223, 16
      %v6242 = vrot.slane %v6240, 1
      %v6243 = vsel %vm2181, %v6238, %v6242
      %6244 = vrot.lane.b32.xlu0 %v5832, 42
      %v6245 = vpop.permute.xlu0 %6244
      %6246 = vrot.lane.b32.xlu0 %v5840, 42
      %v6247 = vpop.permute.xlu0 %6246
      %6248 = vrot.lane.b32.xlu0 %v5852, 42
      %v6249 = vpop.permute.xlu0 %6248
      %6250 = vrot.lane.b32.xlu0 %v5860, 42
      %v6251 = vpop.permute.xlu0 %6250
      %6252 = vrot.lane.b32.xlu0 %v5872, 42
      %v6253 = vpop.permute.xlu0 %6252
      %6254 = vrot.lane.b32.xlu0 %v5880, 42
      %v6255 = vpop.permute.xlu0 %6254
      %6256 = vrot.lane.b32.xlu0 %v5892, 42
      %v6257 = vpop.permute.xlu0 %6256
      %6258 = vrot.lane.b32.xlu0 %v5900, 42
      %v6259 = vpop.permute.xlu0 %6258
      %6260 = vrot.lane.b32.xlu0 %v5912, 42
      %v6261 = vpop.permute.xlu0 %6260
      %6262 = vrot.lane.b32.xlu0 %v5920, 42
      %v6263 = vpop.permute.xlu0 %6262
      %6264 = vrot.lane.b32.xlu0 %v5932, 42
      %v6265 = vpop.permute.xlu0 %6264
      %6266 = vrot.lane.b32.xlu0 %v5940, 42
      %v6267 = vpop.permute.xlu0 %6266
      %6268 = vrot.lane.b32.xlu0 %v6101, 42
      %v6269 = vpop.permute.xlu0 %6268
      %6270 = vrot.lane.b32.xlu0 %v6109, 42
      %v6271 = vpop.permute.xlu0 %6270
      %6272 = vrot.lane.b32.xlu0 %v6235, 42
      %v6273 = vpop.permute.xlu0 %6272
      %6274 = vrot.lane.b32.xlu0 %v6243, 42
      %v6275 = vpop.permute.xlu0 %6274
      %v6276 = vrot.slane %v6187, 1
      %v6277 = vrot.slane %v6188, 1
      %v6278 = vsel %vm2374, %v6276, %v6277
      %v6279 = vrot.slane %v6223, 1
      %v6280 = vsel %vm2374, %v6277, %v6279
      %6281 = vrot.lane.b32.xlu0 %v5985, 48
      %v6282 = vpop.permute.xlu0 %6281
      %6283 = vrot.lane.b32.xlu0 %v5987, 48
      %v6284 = vpop.permute.xlu0 %6283
      %6285 = vrot.lane.b32.xlu0 %v5990, 48
      %v6286 = vpop.permute.xlu0 %6285
      %6287 = vrot.lane.b32.xlu0 %v5992, 48
      %v6288 = vpop.permute.xlu0 %6287
      %6289 = vrot.lane.b32.xlu0 %v5995, 48
      %v6290 = vpop.permute.xlu0 %6289
      %6291 = vrot.lane.b32.xlu0 %v5997, 48
      %v6292 = vpop.permute.xlu0 %6291
      %6293 = vrot.lane.b32.xlu0 %v6000, 48
      %v6294 = vpop.permute.xlu0 %6293
      %6295 = vrot.lane.b32.xlu0 %v6002, 48
      %v6296 = vpop.permute.xlu0 %6295
      %6297 = vrot.lane.b32.xlu0 %v6005, 48
      %v6298 = vpop.permute.xlu0 %6297
      %6299 = vrot.lane.b32.xlu0 %v6007, 48
      %v6300 = vpop.permute.xlu0 %6299
      %6301 = vrot.lane.b32.xlu0 %v6010, 48
      %v6302 = vpop.permute.xlu0 %6301
      %6303 = vrot.lane.b32.xlu0 %v6012, 48
      %v6304 = vpop.permute.xlu0 %6303
      %6305 = vrot.lane.b32.xlu0 %v6144, 48
      %v6306 = vpop.permute.xlu0 %6305
      %6307 = vrot.lane.b32.xlu0 %v6146, 48
      %v6308 = vpop.permute.xlu0 %6307
      %6309 = vrot.lane.b32.xlu0 %v6278, 48
      %v6310 = vpop.permute.xlu0 %6309
      %6311 = vrot.lane.b32.xlu0 %v6280, 48
      %v6312 = vpop.permute.xlu0 %6311
      %v6314 = vsel %vm2715, %v5741, %v5942
      %v6316 = vsel %vm2715, %v5742, %v5944
      %v6318 = vsel %vm2715, %v5743, %v5946
      %v6320 = vsel %vm2715, %v5744, %v5948
      %v6322 = vsel %vm2715, %v5745, %v5950
      %v6324 = vsel %vm2715, %v5746, %v5952
      %v6326 = vsel %vm2715, %v5747, %v5954
      %v6328 = vsel %vm2715, %v5748, %v5956
      %v6330 = vsel %vm2715, %v5749, %v5958
      %v6332 = vsel %vm2715, %v5750, %v5960
      %v6334 = vsel %vm2715, %v5751, %v5962
      %v6336 = vsel %vm2715, %v5752, %v5964
      %v6338 = vsel %vm2715, %v5753, %v5966
      %v6340 = vsel %vm2715, %v5754, %v5968
      %v6342 = vsel %vm2715, %v5755, %v5970
      %v6344 = vsel %vm2715, %v5756, %v5972
      %v6346 = vsel %vm2748, %v6314, %v6014
      %v6348 = vsel %vm2748, %v6316, %v6016
      %v6350 = vsel %vm2748, %v6318, %v6018
      %v6352 = vsel %vm2748, %v6320, %v6020
      %v6354 = vsel %vm2748, %v6322, %v6022
      %v6356 = vsel %vm2748, %v6324, %v6024
      %v6358 = vsel %vm2748, %v6326, %v6026
      %v6360 = vsel %vm2748, %v6328, %v6028
      %v6362 = vsel %vm2748, %v6330, %v6030
      %v6364 = vsel %vm2748, %v6332, %v6032
      %v6366 = vsel %vm2748, %v6334, %v6034
      %v6368 = vsel %vm2748, %v6336, %v6036
      %v6370 = vsel %vm2748, %v6338, %v6038
      %v6372 = vsel %vm2748, %v6340, %v6040
      %v6374 = vsel %vm2748, %v6342, %v6042
      %v6376 = vsel %vm2748, %v6344, %v6044
      %v6378 = vsel %vm2781, %v6346, %v6056
      %v6380 = vsel %vm2781, %v6348, %v6058
      %v6382 = vsel %vm2781, %v6350, %v6060
      %v6384 = vsel %vm2781, %v6352, %v6062
      %v6386 = vsel %vm2781, %v6354, %v6064
      %v6388 = vsel %vm2781, %v6356, %v6066
      %v6390 = vsel %vm2781, %v6358, %v6068
      %v6392 = vsel %vm2781, %v6360, %v6070
      %v6394 = vsel %vm2781, %v6362, %v6072
      %v6396 = vsel %vm2781, %v6364, %v6074
      %v6398 = vsel %vm2781, %v6366, %v6076
      %v6400 = vsel %vm2781, %v6368, %v6078
      %v6402 = vsel %vm2781, %v6370, %v6080
      %v6404 = vsel %vm2781, %v6372, %v6082
      %v6406 = vsel %vm2781, %v6374, %v6084
      %v6408 = vsel %vm2781, %v6376, %v6086
      %v6410 = vsel %vm2814, %v6378, %v6111
      %v6412 = vsel %vm2814, %v6380, %v6113
      %v6414 = vsel %vm2814, %v6382, %v6115
      %v6416 = vsel %vm2814, %v6384, %v6117
      %v6418 = vsel %vm2814, %v6386, %v6119
      %v6420 = vsel %vm2814, %v6388, %v6121
      %v6422 = vsel %vm2814, %v6390, %v6123
      %v6424 = vsel %vm2814, %v6392, %v6125
      %v6426 = vsel %vm2814, %v6394, %v6127
      %v6428 = vsel %vm2814, %v6396, %v6129
      %v6430 = vsel %vm2814, %v6398, %v6131
      %v6432 = vsel %vm2814, %v6400, %v6133
      %v6434 = vsel %vm2814, %v6402, %v6135
      %v6436 = vsel %vm2814, %v6404, %v6137
      %v6438 = vsel %vm2814, %v6406, %v6139
      %v6440 = vsel %vm2814, %v6408, %v6141
      %v6442 = vsel %vm2847, %v6410, %v6148
      %v6444 = vsel %vm2847, %v6412, %v6150
      %v6446 = vsel %vm2847, %v6414, %v6152
      %v6448 = vsel %vm2847, %v6416, %v6154
      %v6450 = vsel %vm2847, %v6418, %v6156
      %v6452 = vsel %vm2847, %v6420, %v6158
      %v6454 = vsel %vm2847, %v6422, %v6160
      %v6456 = vsel %vm2847, %v6424, %v6162
      %v6458 = vsel %vm2847, %v6426, %v6164
      %v6460 = vsel %vm2847, %v6428, %v6166
      %v6462 = vsel %vm2847, %v6430, %v6168
      %v6464 = vsel %vm2847, %v6432, %v6170
      %v6466 = vsel %vm2847, %v6434, %v6172
      %v6468 = vsel %vm2847, %v6436, %v6174
      %v6470 = vsel %vm2847, %v6438, %v6176
      %v6472 = vsel %vm2847, %v6440, %v6178
      %v6474 = vsel %vm2880, %v6442, %v6190
      %v6476 = vsel %vm2880, %v6444, %v6192
      %v6478 = vsel %vm2880, %v6446, %v6194
      %v6480 = vsel %vm2880, %v6448, %v6196
      %v6482 = vsel %vm2880, %v6450, %v6198
      %v6484 = vsel %vm2880, %v6452, %v6200
      %v6486 = vsel %vm2880, %v6454, %v6202
      %v6488 = vsel %vm2880, %v6456, %v6204
      %v6490 = vsel %vm2880, %v6458, %v6206
      %v6492 = vsel %vm2880, %v6460, %v6208
      %v6494 = vsel %vm2880, %v6462, %v6210
      %v6496 = vsel %vm2880, %v6464, %v6212
      %v6498 = vsel %vm2880, %v6466, %v6214
      %v6500 = vsel %vm2880, %v6468, %v6216
      %v6502 = vsel %vm2880, %v6470, %v6218
      %v6504 = vsel %vm2880, %v6472, %v6220
      %v6506 = vsel %vm2913, %v6474, %v6245
      %v6508 = vsel %vm2913, %v6476, %v6247
      %v6510 = vsel %vm2913, %v6478, %v6249
      %v6512 = vsel %vm2913, %v6480, %v6251
      %v6514 = vsel %vm2913, %v6482, %v6253
      %v6516 = vsel %vm2913, %v6484, %v6255
      %v6518 = vsel %vm2913, %v6486, %v6257
      %v6520 = vsel %vm2913, %v6488, %v6259
      %v6522 = vsel %vm2913, %v6490, %v6261
      %v6524 = vsel %vm2913, %v6492, %v6263
      %v6526 = vsel %vm2913, %v6494, %v6265
      %v6528 = vsel %vm2913, %v6496, %v6267
      %v6530 = vsel %vm2913, %v6498, %v6269
      %v6532 = vsel %vm2913, %v6500, %v6271
      %v6534 = vsel %vm2913, %v6502, %v6273
      %v6536 = vsel %vm2913, %v6504, %v6275
      %v6538 = vsel %vm2946, %v6506, %v6282
      %v6540 = vsel %vm2946, %v6508, %v6284
      %v6542 = vsel %vm2946, %v6510, %v6286
      %v6544 = vsel %vm2946, %v6512, %v6288
      %v6546 = vsel %vm2946, %v6514, %v6290
      %v6548 = vsel %vm2946, %v6516, %v6292
      %v6550 = vsel %vm2946, %v6518, %v6294
      %v6552 = vsel %vm2946, %v6520, %v6296
      %v6554 = vsel %vm2946, %v6522, %v6298
      %v6556 = vsel %vm2946, %v6524, %v6300
      %v6558 = vsel %vm2946, %v6526, %v6302
      %v6560 = vsel %vm2946, %v6528, %v6304
      %v6562 = vsel %vm2946, %v6530, %v6306
      %v6564 = vsel %vm2946, %v6532, %v6308
      %v6566 = vsel %vm2946, %v6534, %v6310
      %v6568 = vsel %vm2946, %v6536, %v6312
      %v6569 = vld [vmem:[%s210] sm:$0xf]
      %v6570 = vld [vmem:[%s210 + $0x4] sm:$0xf]
      %v6571 = vld [vmem:[%s210 + $0x8] sm:$0xf]
      %v6572 = vld [vmem:[%s210 + $0xc] sm:$0xf]
      %v6573 = vld [vmem:[%s210 + $0x10] sm:$0xf]
      %v6574 = vld [vmem:[%s210 + $0x14] sm:$0xf]
      %v6575 = vld [vmem:[%s210 + $0x18] sm:$0x7]
      %v6576 = vld [vmem:[%s213] sm:$0x1]
      %v6578 = vperm.slane %v6576, 0
      %v6587 = vunpack.c.l.b16 %v6569
      %v6588 = vunpack.c.l.b16 %v6570
      %v6589 = vunpack.c.l.b16 %v6571
      %v6590 = vunpack.c.l.b16 %v6572
      %v6591 = vunpack.c.l.b16 %v6573
      %v6592 = vunpack.c.l.b16 %v6574
      %v6593 = vunpack.c.l.b16 %v6575
      %v6594 = vpack.c.b16 %v6588, %v6587
      %v6595 = vpack.c.b16 %v6590, %v6589
      %v6596 = vpack.c.b16 %v6592, %v6591
      %v6597 = vpack.c.b16 %v6593, %v6593
      %v6601 = vsel %vm3011, %v6538, 0
      %v6603 = vsel %vm3011, %v6540, 0
      %v6605 = vsel %vm3011, %v6542, 0
      %v6607 = vsel %vm3011, %v6544, 0
      %v6609 = vsel %vm3011, %v6546, 0
      %v6611 = vsel %vm3011, %v6548, 0
      %v6613 = vsel %vm3011, %v6550, 0
      %v6615 = vsel %vm3011, %v6552, 0
      %v6617 = vsel %vm3011, %v6554, 0
      %v6619 = vsel %vm3011, %v6556, 0
      %v6621 = vsel %vm3011, %v6558, 0
      %v6623 = vsel %vm3011, %v6560, 0
      %v6625 = vsel %vm3011, %v6562, 0
      %v6627 = vsel %vm3011, %v6564, 0
      %v6629 = vsel %vm3011, %v6566, 0
      %v6631 = vsel %vm3011, %v6568, 0
      %v6634 = vsel %vm3044, %v6597, 0
      %6636 = vmatpush.bf16.msra.mxu0 0
      %6637 = vmatpush.bf16.msra.mxu0 0
      %6638 = vmatpush.bf16.msra.mxu0 0
      %6639 = vmatpush.bf16.msra.mxu0 0
      %6640 = vmatpush.bf16.msra.mxu0 %v6634
      %6641 = vmatpush.bf16.msra.mxu0 %v6596
      %6642 = vmatpush.bf16.msra.mxu0 %v6595
      %6643 = vmatpush.bf16.msra.mxu0 %v6594
      %6644 = vmatmul.bf16.gmra.mxu0 %v6601
      %v6645 = vpop.f32.mrf.mxu0
      %v6646 = vadd.f32 %v6578, %v6645
      %v6647 = vpop.f32.mrf.mxu0
      %v6648 = vadd.f32 %v6578, %v6647
      %6649 = vmatmul.bf16.gmra.mxu0 %v6603
      %v6650 = vpop.f32.mrf.mxu0
      %v6651 = vadd.f32 %v6578, %v6650
      %v6652 = vpop.f32.mrf.mxu0
      %v6653 = vadd.f32 %v6578, %v6652
      %6654 = vmatmul.bf16.gmra.mxu0 %v6605
      %v6655 = vpop.f32.mrf.mxu0
      %v6656 = vadd.f32 %v6578, %v6655
      %v6657 = vpop.f32.mrf.mxu0
      %v6658 = vadd.f32 %v6578, %v6657
      %6659 = vmatmul.bf16.gmra.mxu0 %v6607
      %v6660 = vpop.f32.mrf.mxu0
      %v6661 = vadd.f32 %v6578, %v6660
      %v6662 = vpop.f32.mrf.mxu0
      %v6663 = vadd.f32 %v6578, %v6662
      %6664 = vmatmul.bf16.gmra.mxu0 %v6609
      %v6665 = vpop.f32.mrf.mxu0
      %v6666 = vadd.f32 %v6578, %v6665
      %v6667 = vpop.f32.mrf.mxu0
      %v6668 = vadd.f32 %v6578, %v6667
      %6669 = vmatmul.bf16.gmra.mxu0 %v6611
      %v6670 = vpop.f32.mrf.mxu0
      %v6671 = vadd.f32 %v6578, %v6670
      %v6672 = vpop.f32.mrf.mxu0
      %v6673 = vadd.f32 %v6578, %v6672
      %6674 = vmatmul.bf16.gmra.mxu0 %v6613
      %v6675 = vpop.f32.mrf.mxu0
      %v6676 = vadd.f32 %v6578, %v6675
      %v6677 = vpop.f32.mrf.mxu0
      %v6678 = vadd.f32 %v6578, %v6677
      %6679 = vmatmul.bf16.gmra.mxu0 %v6615
      %v6680 = vpop.f32.mrf.mxu0
      %v6681 = vadd.f32 %v6578, %v6680
      %v6682 = vpop.f32.mrf.mxu0
      %v6683 = vadd.f32 %v6578, %v6682
      %6684 = vmatmul.bf16.gmra.mxu0 %v6617
      %v6685 = vpop.f32.mrf.mxu0
      %v6686 = vadd.f32 %v6578, %v6685
      %v6687 = vpop.f32.mrf.mxu0
      %v6688 = vadd.f32 %v6578, %v6687
      %6689 = vmatmul.bf16.gmra.mxu0 %v6619
      %v6690 = vpop.f32.mrf.mxu0
      %v6691 = vadd.f32 %v6578, %v6690
      %v6692 = vpop.f32.mrf.mxu0
      %v6693 = vadd.f32 %v6578, %v6692
      %6694 = vmatmul.bf16.gmra.mxu0 %v6621
      %v6695 = vpop.f32.mrf.mxu0
      %v6696 = vadd.f32 %v6578, %v6695
      %v6697 = vpop.f32.mrf.mxu0
      %v6698 = vadd.f32 %v6578, %v6697
      %6699 = vmatmul.bf16.gmra.mxu0 %v6623
      %v6700 = vpop.f32.mrf.mxu0
      %v6701 = vadd.f32 %v6578, %v6700
      %v6702 = vpop.f32.mrf.mxu0
      %v6703 = vadd.f32 %v6578, %v6702
      %6704 = vmatmul.bf16.gmra.mxu0 %v6625
      %v6705 = vpop.f32.mrf.mxu0
      %v6706 = vadd.f32 %v6578, %v6705
      %v6707 = vpop.f32.mrf.mxu0
      %v6708 = vadd.f32 %v6578, %v6707
      %6709 = vmatmul.bf16.gmra.mxu0 %v6627
      %v6710 = vpop.f32.mrf.mxu0
      %v6711 = vadd.f32 %v6578, %v6710
      %v6712 = vpop.f32.mrf.mxu0
      %v6713 = vadd.f32 %v6578, %v6712
      %6714 = vmatmul.bf16.gmra.mxu0 %v6629
      %v6715 = vpop.f32.mrf.mxu0
      %v6716 = vadd.f32 %v6578, %v6715
      %v6717 = vpop.f32.mrf.mxu0
      %v6718 = vadd.f32 %v6578, %v6717
      %6719 = vmatmul.bf16.gmra.mxu0 %v6631
      %v6720 = vpop.f32.mrf.mxu0
      %v6721 = vadd.f32 %v6578, %v6720
      %v6722 = vpop.f32.mrf.mxu0
      %v6723 = vadd.f32 %v6578, %v6722
      %6724 = vdwg.mxu0
      %v6725 = vmax.f32 %v6646, 0.0
      %v6726 = vmax.f32 %v6648, 0.0
      %v6727 = vmax.f32 %v6651, 0.0
      %v6728 = vmax.f32 %v6653, 0.0
      %v6729 = vmax.f32 %v6656, 0.0
      %v6730 = vmax.f32 %v6658, 0.0
      %v6731 = vmax.f32 %v6661, 0.0
      %v6732 = vmax.f32 %v6663, 0.0
      %v6733 = vmax.f32 %v6666, 0.0
      %v6734 = vmax.f32 %v6668, 0.0
      %v6735 = vmax.f32 %v6671, 0.0
      %v6736 = vmax.f32 %v6673, 0.0
      %v6737 = vmax.f32 %v6676, 0.0
      %v6738 = vmax.f32 %v6678, 0.0
      %v6739 = vmax.f32 %v6681, 0.0
      %v6740 = vmax.f32 %v6683, 0.0
      %v6741 = vmax.f32 %v6686, 0.0
      %v6742 = vmax.f32 %v6688, 0.0
      %v6743 = vmax.f32 %v6691, 0.0
      %v6744 = vmax.f32 %v6693, 0.0
      %v6745 = vmax.f32 %v6696, 0.0
      %v6746 = vmax.f32 %v6698, 0.0
      %v6747 = vmax.f32 %v6701, 0.0
      %v6748 = vmax.f32 %v6703, 0.0
      %v6749 = vmax.f32 %v6706, 0.0
      %v6750 = vmax.f32 %v6708, 0.0
      %v6751 = vmax.f32 %v6711, 0.0
      %v6752 = vmax.f32 %v6713, 0.0
      %v6753 = vmax.f32 %v6716, 0.0
      %v6754 = vmax.f32 %v6718, 0.0
      %v6755 = vmax.f32 %v6721, 0.0
      %v6756 = vmax.f32 %v6723, 0.0
      %v6757 = vpack.c.bf16 %v6725, %v6725
      %v6758 = vpack.c.bf16 %v6726, %v6726
      %v6759 = vpack.c.bf16 %v6727, %v6727
      %v6760 = vpack.c.bf16 %v6728, %v6728
      %v6761 = vpack.c.bf16 %v6729, %v6729
      %v6762 = vpack.c.bf16 %v6730, %v6730
      %v6763 = vpack.c.bf16 %v6731, %v6731
      %v6764 = vpack.c.bf16 %v6732, %v6732
      %v6765 = vpack.c.bf16 %v6733, %v6733
      %v6766 = vpack.c.bf16 %v6734, %v6734
      %v6767 = vpack.c.bf16 %v6735, %v6735
      %v6768 = vpack.c.bf16 %v6736, %v6736
      %v6769 = vpack.c.bf16 %v6737, %v6737
      %v6770 = vpack.c.bf16 %v6738, %v6738
      %v6771 = vpack.c.bf16 %v6739, %v6739
      %v6772 = vpack.c.bf16 %v6740, %v6740
      %v6773 = vpack.c.bf16 %v6741, %v6741
      %v6774 = vpack.c.bf16 %v6742, %v6742
      %v6775 = vpack.c.bf16 %v6743, %v6743
      %v6776 = vpack.c.bf16 %v6744, %v6744
      %v6777 = vpack.c.bf16 %v6745, %v6745
      %v6778 = vpack.c.bf16 %v6746, %v6746
      %v6779 = vpack.c.bf16 %v6747, %v6747
      %v6780 = vpack.c.bf16 %v6748, %v6748
      %v6781 = vpack.c.bf16 %v6749, %v6749
      %v6782 = vpack.c.bf16 %v6750, %v6750
      %v6783 = vpack.c.bf16 %v6751, %v6751
      %v6784 = vpack.c.bf16 %v6752, %v6752
      %v6785 = vpack.c.bf16 %v6753, %v6753
      %v6786 = vpack.c.bf16 %v6754, %v6754
      %v6787 = vpack.c.bf16 %v6755, %v6755
      %v6788 = vpack.c.bf16 %v6756, %v6756
      %s6789 = scalar_lea.vmem %s221, 384
      %6790 = vst.msk [vmem:[%s6789] sm:$0xf] %vm3201, %v6757
      %6791 = vst.msk [vmem:[%s6789 + $0x4] sm:$0xf] %vm3201, %v6758
      %6792 = vst.msk [vmem:[%s6789 + $0x8] sm:$0xf] %vm3201, %v6759
      %6793 = vst.msk [vmem:[%s6789 + $0xc] sm:$0xf] %vm3201, %v6760
      %6794 = vst.msk [vmem:[%s6789 + $0x10] sm:$0xf] %vm3201, %v6761
      %6795 = vst.msk [vmem:[%s6789 + $0x14] sm:$0xf] %vm3201, %v6762
      %6796 = vst.msk [vmem:[%s6789 + $0x18] sm:$0xf] %vm3201, %v6763
      %6797 = vst.msk [vmem:[%s6789 + $0x1c] sm:$0xf] %vm3201, %v6764
      %6798 = vst.msk [vmem:[%s6789 + $0x20] sm:$0xf] %vm3201, %v6765
      %6799 = vst.msk [vmem:[%s6789 + $0x24] sm:$0xf] %vm3201, %v6766
      %6800 = vst.msk [vmem:[%s6789 + $0x28] sm:$0xf] %vm3201, %v6767
      %6801 = vst.msk [vmem:[%s6789 + $0x2c] sm:$0xf] %vm3201, %v6768
      %6802 = vst.msk [vmem:[%s6789 + $0x30] sm:$0xf] %vm3201, %v6769
      %6803 = vst.msk [vmem:[%s6789 + $0x34] sm:$0xf] %vm3201, %v6770
      %6804 = vst.msk [vmem:[%s6789 + $0x38] sm:$0xf] %vm3201, %v6771
      %6805 = vst.msk [vmem:[%s6789 + $0x3c] sm:$0xf] %vm3201, %v6772
      %6806 = vst.msk [vmem:[%s6789 + $0x40] sm:$0xf] %vm3201, %v6773
      %6807 = vst.msk [vmem:[%s6789 + $0x44] sm:$0xf] %vm3201, %v6774
      %6808 = vst.msk [vmem:[%s6789 + $0x48] sm:$0xf] %vm3201, %v6775
      %6809 = vst.msk [vmem:[%s6789 + $0x4c] sm:$0xf] %vm3201, %v6776
      %6810 = vst.msk [vmem:[%s6789 + $0x50] sm:$0xf] %vm3201, %v6777
      %6811 = vst.msk [vmem:[%s6789 + $0x54] sm:$0xf] %vm3201, %v6778
      %6812 = vst.msk [vmem:[%s6789 + $0x58] sm:$0xf] %vm3201, %v6779
      %6813 = vst.msk [vmem:[%s6789 + $0x5c] sm:$0xf] %vm3201, %v6780
      %6814 = vst.msk [vmem:[%s6789 + $0x60] sm:$0xf] %vm3201, %v6781
      %6815 = vst.msk [vmem:[%s6789 + $0x64] sm:$0xf] %vm3201, %v6782
      %6816 = vst.msk [vmem:[%s6789 + $0x68] sm:$0xf] %vm3201, %v6783
      %6817 = vst.msk [vmem:[%s6789 + $0x6c] sm:$0xf] %vm3201, %v6784
      %6818 = vst.msk [vmem:[%s6789 + $0x70] sm:$0xf] %vm3201, %v6785
      %6819 = vst.msk [vmem:[%s6789 + $0x74] sm:$0xf] %vm3201, %v6786
      %6820 = vst.msk [vmem:[%s6789 + $0x78] sm:$0xf] %vm3201, %v6787
      %6821 = vst.msk [vmem:[%s6789 + $0x7c] sm:$0xf] %vm3201, %v6788
      %p6822 = scmp.lt.s32.totalorder %s18, 3
      %s6823 = scalar_select %p6822, %s18, 3
      %p6824 = scmp.lt.s32.totalorder %s19, 0
      %s6825 = scalar_select %p6824, %s19, 0
      %s6826 = smul.addr %s6823, 128
      %s6827 = sadd.s32 %s6825, %s6826
      %s6828 = smul.addr %s6827, 4
      %s6829 = scalar_lea.vmem %s3, %s6828
      // Predicated region
      $region33: #{tpu_custom_call.1} parent=31 // pred_check
        %p6830 = pneg %p124
      $region34: #{tpu_custom_call.1} parent=31 // pred_check_branch
        %6832 = sbr.rel (%p6830) target = $region36
      $region35: #{tpu_custom_call.1} parent=31 // pred_region
        _
      $region36: #{tpu_custom_call.1} parent=31 // pred_fallthru
        _
    $region32: #{tpu_custom_call.1} parent=5 // pred_fallthru
      _
    %p6833 = scmp.le.s32.totalorder 2, %s9
    // Predicated region
    $region37: #{tpu_custom_call.1} parent=5 // pred_check
      %p6834 = pneg %p6833
    $region38: #{tpu_custom_call.1} parent=5 // pred_check_branch
      %6836 = sbr.rel (%p6834) target = $region40
    $region39: #{tpu_custom_call.1} parent=5 // pred_region
      %s6837 = ssub.s32 %s9, 2
      // Predicated region
      $region41: #{tpu_custom_call.1} parent=39 // pred_check
        %p6838 = pneg %p130
      $region42: #{tpu_custom_call.1} parent=39 // pred_check_branch
        %6840 = sbr.rel (%p6838) target = $region44
      $region43: #{tpu_custom_call.1} parent=39 // pred_region
        %p6841 = scmp.lt.s32.totalorder %s20, 3
        %s6842 = scalar_select %p6841, %s20, 3
        %p6843 = scmp.lt.s32.totalorder %s21, 0
        %s6844 = scalar_select %p6843, %s21, 0
        %s6845 = smul.addr %s6842, 128
        %s6846 = sadd.s32 %s6844, %s6845
        %s6847 = smul.addr %s6846, 4
        %s6848 = scalar_lea.vmem %s3, %s6847
      $region44: #{tpu_custom_call.1} parent=39 // pred_fallthru
        _
    $region40: #{tpu_custom_call.1} parent=5 // pred_fallthru
      _
  $region6: #{tpu_custom_call.1} parent=0 // loop_footer
    %s13 = sadd.s32 1, %s9
  $region7: #{tpu_custom_call.1} parent=0 // loop_footer_branch
    %8 = sbr.rel target = $region3
  $region8: #{tpu_custom_call.1} parent=0 // loop_exit
    _

</llo_original>
